<compile_context>
chip_gen: v5e
topology: v5e:2x2
jax: 0.10.0
libtpu: 0.0.40
codegen_flags: <defaults>
</compile_context>

<pallas_src>
import functools

import jax
import jax.numpy as jnp
import numpy as np
from jax.experimental import pallas as pl
from jax.experimental.pallas import tpu as pltpu


# --------------------------------------------------------------------------
# Fused Pallas kernel (one 128-row batch tile per grid step)
# --------------------------------------------------------------------------
def _fused_dlrm_kernel(n_bot, n_tables, n_top_rest, L, TB, pairs, table_rows,
                       *refs):
    """Ref layout (in order):
      n_tables               index tiles (VMEM)              [TB, L] int32
      1                      dense_x tile                    [TB, K0]
      2*n_bot                bottom MLP (W [K,N], b [1,N]) pairs
      n_tables               embedding tables                [n_k, d]
      3                      top layer 0: W0x [d,N0], W0p_exp [P*d,N0], b0 [1,N0]
      2*n_top_rest           remaining top layers (W [K,N], b [1,N])
      1                      output ref                      [TB, 1]
    """
    pos = 0
    idx_refs = refs[pos:pos + n_tables]; pos += n_tables
    x_ref = refs[pos]; pos += 1
    bot_refs = [(refs[pos + 2 * i], refs[pos + 2 * i + 1]) for i in range(n_bot)]
    pos += 2 * n_bot
    emb_refs = refs[pos:pos + n_tables]; pos += n_tables
    w0x_ref, w0p_ref, b0_ref = refs[pos], refs[pos + 1], refs[pos + 2]; pos += 3
    top_refs = [(refs[pos + 2 * i], refs[pos + 2 * i + 1])
                for i in range(n_top_rest)]
    pos += 2 * n_top_rest
    o_ref = refs[pos]

    # ---- bottom MLP: (Linear + ReLU)* ------------------------------------
    x = x_ref[...]
    for w_ref, b_ref in bot_refs:
        x = jnp.dot(x, w_ref[...], preferred_element_type=jnp.float32)
        x = jnp.maximum(x + b_ref[...], 0.0)

    # ---- embedding bags (mode='sum'), vectorized one-hot matmul ----------
    # counts[b, r] = #occurrences of row r among the L indices of sample b
    # bag = counts @ table   (one MXU matmul per table, handles repeats)
    feats = [x]
    for k in range(n_tables):
        idx = idx_refs[k][...]                                    # [TB, L] i32
        n_rows = table_rows[k]
        row_ids = jax.lax.broadcasted_iota(jnp.int32, (TB, n_rows), 1)
        counts = jnp.zeros((TB, n_rows), jnp.float32)
        for l in range(L):                                        # L is tiny
            counts = counts + (idx[:, l:l + 1] == row_ids).astype(jnp.float32)
        bag = jnp.dot(counts, emb_refs[k][...],
                      preferred_element_type=jnp.float32)          # [TB, d]
        feats.append(bag)

    # ---- dot interaction folded into top-MLP layer 0 -----------------------
    # original: y0 = concat([x, Zflat]) @ W0^T + b0, Zflat[p] = <f_i, f_j>.
    # Here: y0 = x @ W0x + b0 + (fi * fj) @ W0p_exp, where W0p_exp repeats
    # each pair row d times, so the sum over d happens inside the matmul.
    y = jnp.dot(x, w0x_ref[...], preferred_element_type=jnp.float32)
    y = y + b0_ref[...]
    fi = jnp.concatenate([feats[i] for (i, _) in pairs], axis=-1)   # [TB, P*d]
    fj = jnp.concatenate([feats[j] for (_, j) in pairs], axis=-1)   # [TB, P*d]
    y = y + jnp.dot(fi * fj, w0p_ref[...], preferred_element_type=jnp.float32)
    y = jax.nn.sigmoid(y) if n_top_rest == 0 else jnp.maximum(y, 0.0)

    # ---- remaining top layers (ReLU ..., Sigmoid on the last) -------------
    for li, (w_ref, b_ref) in enumerate(top_refs):
        y = jnp.dot(y, w_ref[...], preferred_element_type=jnp.float32)
        y = y + b_ref[...]
        y = jax.nn.sigmoid(y) if li == n_top_rest - 1 else jnp.maximum(y, 0.0)

    o_ref[...] = y.astype(o_ref.dtype)


# --------------------------------------------------------------------------
# Wrapper: one pallas_call for the whole forward, tiled over batch
# --------------------------------------------------------------------------
def dlrm_forward(dense_x, lS_i, bot, top0, top_rest, emb_tables, *, TB=128):
    B, K0 = dense_x.shape
    n_tables = len(emb_tables)
    d = emb_tables[0].shape[1]
    nf = 1 + n_tables
    # torch: li = [i for i in range(ni) for j in range(i)], lj analogous
    pairs = tuple((i, j) for i in range(nf) for j in range(i))
    L = lS_i[0].shape[1]
    n_bot = len(bot)
    n_top_rest = len(top_rest)
    table_rows = tuple(int(t.shape[0]) for t in emb_tables)
    assert B % TB == 0, "batch must be divisible by the batch tile"

    const_map = lambda i: (0, 0)     # weights / tables: resident across grid
    batch_map = lambda i: (i, 0)     # activations / indices / output: batch-tiled

    in_specs = []
    flat_inputs = []
    # sparse index tiles (int32, VMEM)
    for ids in lS_i:
        in_specs.append(pl.BlockSpec((TB, L), batch_map))
        flat_inputs.append(ids)
    # dense features
    in_specs.append(pl.BlockSpec((TB, K0), batch_map))
    flat_inputs.append(dense_x)
    # bottom MLP
    for (W, b) in bot:
        in_specs += [pl.BlockSpec(W.shape, const_map),
                     pl.BlockSpec(b.shape, const_map)]
        flat_inputs += [W, b]
    # embedding tables
    for t in emb_tables:
        in_specs.append(pl.BlockSpec(t.shape, const_map))
        flat_inputs.append(t)
    # top layer 0 (split + pair-expanded)
    w0x, w0p_exp, b0 = top0
    in_specs += [pl.BlockSpec(w0x.shape, const_map),
                 pl.BlockSpec(w0p_exp.shape, const_map),
                 pl.BlockSpec(b0.shape, const_map)]
    flat_inputs += [w0x, w0p_exp, b0]
    # remaining top layers
    for (W, b) in top_rest:
        in_specs += [pl.BlockSpec(W.shape, const_map),
                     pl.BlockSpec(b.shape, const_map)]
        flat_inputs += [W, b]

    kernel = functools.partial(_fused_dlrm_kernel, n_bot, n_tables, n_top_rest,
                               L, TB, pairs, table_rows)

    grid_spec = pltpu.PrefetchScalarGridSpec(
        num_scalar_prefetch=0,
        grid=(B // TB,),
        in_specs=in_specs,
        out_specs=pl.BlockSpec((TB, 1), batch_map),
    )

    return pl.pallas_call(
        kernel,
        out_shape=jax.ShapeDtypeStruct((B, 1), jnp.float32),
        grid_spec=grid_spec,
        compiler_params=pltpu.CompilerParams(
            dimension_semantics=("parallel",),
            vmem_limit_bytes=32 * 1024 * 1024),
    )(*flat_inputs)


# --------------------------------------------------------------------------
# Parameter construction (deterministic, mirrors DLRM_Net_multi_GPU.__init__)
# --------------------------------------------------------------------------
def create_mlp_params(key, ln):
    params = []
    for i in range(len(ln) - 1):
        n, m = int(ln[i]), int(ln[i + 1])
        key, kw, kb = jax.random.split(key, 3)
        W = jax.random.normal(kw, (m, n), jnp.float32) * np.sqrt(2.0 / (m + n))
        b = jax.random.normal(kb, (m,), jnp.float32) * np.sqrt(1.0 / m)
        params.append((W, b))                      # PyTorch layout [out, in]
    return params, key


def create_emb_params(key, m, ln):
    tables = []
    for n in ln:
        key, kt = jax.random.split(key)
        bound = np.sqrt(1.0 / n)
        tables.append(jax.random.uniform(kt, (int(n), int(m)), jnp.float32,
                                         minval=-bound, maxval=bound))
    return tables, key


def prep_params(bot_params, top_params, d):
    """One-time conversion to kernel layout:
       - transpose weights to [in, out], make biases 2-D,
       - split top layer-0 into dense part W0x [d, N0] and pair part,
       - expand the pair part so the per-pair dot products fold into a single
         matmul: W0p_exp[p*d + c, :] = W0p[p, :]  (row repeated d times)."""
    bot = [(jnp.transpose(W), b.reshape(1, -1)) for (W, b) in bot_params]
    W0, b0 = top_params[0]
    W0t = jnp.transpose(W0)                        # [d + npairs, N0]
    w0x = W0t[:d, :]
    w0p_exp = jnp.repeat(W0t[d:, :], d, axis=0)    # [npairs * d, N0]
    top0 = (w0x, w0p_exp, b0.reshape(1, -1))
    top_rest = [(jnp.transpose(W), b.reshape(1, -1)) for (W, b) in top_params[1:]]
    return bot, top0, top_rest


# --------------------------------------------------------------------------
# Pure-JAX reference (correctness check only; original concat/triangle math)
# --------------------------------------------------------------------------
def dlrm_reference(dense_x, lS_i, bot_params, top_params, emb_tables):
    x = dense_x
    for (W, b) in bot_params:
        x = jnp.maximum(x @ W.T + b, 0.0)
    ly = [jnp.take(emb_tables[k], lS_i[k], axis=0).sum(axis=1)
          for k in range(len(emb_tables))]
    T = jnp.concatenate([x[:, None, :]] + [v[:, None, :] for v in ly], axis=1)
    Z = jnp.einsum("bnd,bmd->bnm", T, T)
    nf = T.shape[1]
    li = [i for i in range(nf) for j in range(i)]
    lj = [j for i in range(nf) for j in range(i)]
    Zflat = Z[:, jnp.array(li), jnp.array(lj)]
    p = jnp.concatenate([x, Zflat], axis=1)
    for k, (W, b) in enumerate(top_params):
        p = p @ W.T + b
        p = jax.nn.sigmoid(p) if k == len(top_params) - 1 else jnp.maximum(p, 0.0)
    return p


# --------------------------------------------------------------------------
if __name__ == "__main__":
    # Small DLRM config (batch sized so the grid has >= 2 tiles of 128 rows)
    B = 256                    # batch
    TB = 128                   # batch tile per grid step
    dim_feature = 16           # embedding dim d (== ln_bot[-1])
    list_emb = [32, 48, 24]    # embedding table sizes (3 sparse features)
    list_bot = [8, 32, dim_feature]
    nf = 1 + len(list_emb)
    top_in = dim_feature + nf * (nf - 1) // 2
    list_top = [top_in, 32, 1]
    L = 3                      # indices per bag

    key = jax.random.PRNGKey(0)
    bot_params, key = create_mlp_params(key, list_bot)
    top_params, key = create_mlp_params(key, list_top)
    emb_tables, key = create_emb_params(key, dim_feature, list_emb)

    key, kx = jax.random.split(key)
    dense_x = jax.random.normal(kx, (B, list_bot[0]), jnp.float32)
    lS_i = []
    for n in list_emb:
        key, ki = jax.random.split(key)
        lS_i.append(jax.random.randint(ki, (B, L), 0, n, dtype=jnp.int32))

    # one-time param prep (no per-forward transposes / reshapes)
    bot, top0, top_rest = prep_params(bot_params, top_params, dim_feature)

    out = dlrm_forward(dense_x, lS_i, bot, top0, top_rest, emb_tables, TB=TB)
    out = jax.block_until_ready(out)

    ref = dlrm_reference(dense_x, lS_i, bot_params, top_params, emb_tables)
    np.testing.assert_allclose(np.asarray(out), np.asarray(ref),
                               rtol=1e-4, atol=1e-4)
    assert out.shape == (B, 1)
    print("KERNEL_OK")
</pallas_src>

<mosaic_0001>
module attributes {stable_mosaic.version = 11 : i64} {
  func.func @_fused_dlrm_kernel(%arg0: i32, %arg1: memref<128x3xi32, #tpu.memory_space<vmem>>, %arg2: memref<128x3xi32, #tpu.memory_space<vmem>>, %arg3: memref<128x3xi32, #tpu.memory_space<vmem>>, %arg4: memref<128x8xf32, #tpu.memory_space<vmem>>, %arg5: memref<8x32xf32, #tpu.memory_space<vmem>>, %arg6: memref<1x32xf32, #tpu.memory_space<vmem>>, %arg7: memref<32x16xf32, #tpu.memory_space<vmem>>, %arg8: memref<1x16xf32, #tpu.memory_space<vmem>>, %arg9: memref<32x16xf32, #tpu.memory_space<vmem>>, %arg10: memref<48x16xf32, #tpu.memory_space<vmem>>, %arg11: memref<24x16xf32, #tpu.memory_space<vmem>>, %arg12: memref<16x32xf32, #tpu.memory_space<vmem>>, %arg13: memref<96x32xf32, #tpu.memory_space<vmem>>, %arg14: memref<1x32xf32, #tpu.memory_space<vmem>>, %arg15: memref<32x1xf32, #tpu.memory_space<vmem>>, %arg16: memref<1x1xf32, #tpu.memory_space<vmem>>, %arg17: memref<128x1xf32, #tpu.memory_space<vmem>>) attributes {dimension_semantics = [#tpu.dimension_semantics<parallel>], iteration_bounds = array<i64: 2>, scalar_prefetch = 0 : i64, scratch_operands = 0 : i64, tpu.core_type = #tpu.core_type<tc>, window_params = [{transform_indices = @transform_0, window_bounds = array<i64: 128, 3>}, {transform_indices = @transform_1, window_bounds = array<i64: 128, 3>}, {transform_indices = @transform_2, window_bounds = array<i64: 128, 3>}, {transform_indices = @transform_3, window_bounds = array<i64: 128, 8>}, {pipeline_mode = #tpu.pipeline_mode<synchronous>, transform_indices = @transform_4, window_bounds = array<i64: 8, 32>}, {pipeline_mode = #tpu.pipeline_mode<synchronous>, transform_indices = @transform_5, window_bounds = array<i64: 1, 32>}, {pipeline_mode = #tpu.pipeline_mode<synchronous>, transform_indices = @transform_6, window_bounds = array<i64: 32, 16>}, {pipeline_mode = #tpu.pipeline_mode<synchronous>, transform_indices = @transform_7, window_bounds = array<i64: 1, 16>}, {pipeline_mode = #tpu.pipeline_mode<synchronous>, transform_indices = @transform_8, window_bounds = array<i64: 32, 16>}, {pipeline_mode = #tpu.pipeline_mode<synchronous>, transform_indices = @transform_9, window_bounds = array<i64: 48, 16>}, {pipeline_mode = #tpu.pipeline_mode<synchronous>, transform_indices = @transform_10, window_bounds = array<i64: 24, 16>}, {pipeline_mode = #tpu.pipeline_mode<synchronous>, transform_indices = @transform_11, window_bounds = array<i64: 16, 32>}, {pipeline_mode = #tpu.pipeline_mode<synchronous>, transform_indices = @transform_12, window_bounds = array<i64: 96, 32>}, {pipeline_mode = #tpu.pipeline_mode<synchronous>, transform_indices = @transform_13, window_bounds = array<i64: 1, 32>}, {pipeline_mode = #tpu.pipeline_mode<synchronous>, transform_indices = @transform_14, window_bounds = array<i64: 32, 1>}, {pipeline_mode = #tpu.pipeline_mode<synchronous>, transform_indices = @transform_15, window_bounds = array<i64: 1, 1>}, {transform_indices = @transform_16, window_bounds = array<i64: 128, 1>}]} {
    %c0 = arith.constant 0 : index
    %c0_0 = arith.constant 0 : index
    %0 = vector.load %arg4[%c0, %c0_0] : memref<128x8xf32, #tpu.memory_space<vmem>>, vector<128x8xf32>
    %c0_1 = arith.constant 0 : index
    %c0_2 = arith.constant 0 : index
    %1 = vector.load %arg5[%c0_1, %c0_2] : memref<8x32xf32, #tpu.memory_space<vmem>>, vector<8x32xf32>
    %cst = arith.constant dense<0.000000e+00> : vector<128x32xf32>
    %2 = tpu.matmul %0, %1, %cst {dimension_numbers = #tpu.dot_dimension_numbers<[1], [0], [0], [1], [0, 0, 1, 1], [], []>} : vector<128x8xf32>, vector<8x32xf32>, vector<128x32xf32> -> vector<128x32xf32>
    %c0_3 = arith.constant 0 : index
    %c0_4 = arith.constant 0 : index
    %3 = vector.load %arg6[%c0_3, %c0_4] : memref<1x32xf32, #tpu.memory_space<vmem>>, vector<1x32xf32>
    %4 = vector.broadcast %3 : vector<1x32xf32> to vector<128x32xf32>
    %5 = arith.addf %2, %4 : vector<128x32xf32>
    %cst_5 = arith.constant 0.000000e+00 : f32
    %6 = vector.broadcast %cst_5 : f32 to vector<128x32xf32>
    %7 = arith.maximumf %5, %6 : vector<128x32xf32>
    %c0_6 = arith.constant 0 : index
    %c0_7 = arith.constant 0 : index
    %8 = vector.load %arg7[%c0_6, %c0_7] : memref<32x16xf32, #tpu.memory_space<vmem>>, vector<32x16xf32>
    %cst_8 = arith.constant dense<0.000000e+00> : vector<128x16xf32>
    %9 = tpu.matmul %7, %8, %cst_8 {dimension_numbers = #tpu.dot_dimension_numbers<[1], [0], [0], [1], [0, 0, 1, 1], [], []>} : vector<128x32xf32>, vector<32x16xf32>, vector<128x16xf32> -> vector<128x16xf32>
    %c0_9 = arith.constant 0 : index
    %c0_10 = arith.constant 0 : index
    %10 = vector.load %arg8[%c0_9, %c0_10] : memref<1x16xf32, #tpu.memory_space<vmem>>, vector<1x16xf32>
    %11 = vector.broadcast %10 : vector<1x16xf32> to vector<128x16xf32>
    %12 = arith.addf %9, %11 : vector<128x16xf32>
    %cst_11 = arith.constant 0.000000e+00 : f32
    %13 = vector.broadcast %cst_11 : f32 to vector<128x16xf32>
    %14 = arith.maximumf %12, %13 : vector<128x16xf32>
    %c0_12 = arith.constant 0 : index
    %c0_13 = arith.constant 0 : index
    %15 = vector.load %arg1[%c0_12, %c0_13] : memref<128x3xi32, #tpu.memory_space<vmem>>, vector<128x3xi32>
    %16 = tpu.iota {dimensions = array<i32: 1>} : vector<128x32xi32>
    %cst_14 = arith.constant 0.000000e+00 : f32
    %17 = vector.broadcast %cst_14 : f32 to vector<128x32xf32>
    %18 = vector.extract_strided_slice %15 {offsets = [0, 0], sizes = [128, 1], strides = [1, 1]} : vector<128x3xi32> to vector<128x1xi32>
    %19 = vector.broadcast %18 : vector<128x1xi32> to vector<128x32xi32>
    %20 = arith.cmpi eq, %19, %16 : vector<128x32xi32>
    %21 = arith.extui %20 : vector<128x32xi1> to vector<128x32xi32>
    %22 = arith.sitofp %21 : vector<128x32xi32> to vector<128x32xf32>
    %23 = arith.addf %17, %22 : vector<128x32xf32>
    %24 = vector.extract_strided_slice %15 {offsets = [0, 1], sizes = [128, 1], strides = [1, 1]} : vector<128x3xi32> to vector<128x1xi32>
    %25 = vector.broadcast %24 : vector<128x1xi32> to vector<128x32xi32>
    %26 = arith.cmpi eq, %25, %16 : vector<128x32xi32>
    %27 = arith.extui %26 : vector<128x32xi1> to vector<128x32xi32>
    %28 = arith.sitofp %27 : vector<128x32xi32> to vector<128x32xf32>
    %29 = arith.addf %23, %28 : vector<128x32xf32>
    %30 = vector.extract_strided_slice %15 {offsets = [0, 2], sizes = [128, 1], strides = [1, 1]} : vector<128x3xi32> to vector<128x1xi32>
    %31 = vector.broadcast %30 : vector<128x1xi32> to vector<128x32xi32>
    %32 = arith.cmpi eq, %31, %16 : vector<128x32xi32>
    %33 = arith.extui %32 : vector<128x32xi1> to vector<128x32xi32>
    %34 = arith.sitofp %33 : vector<128x32xi32> to vector<128x32xf32>
    %35 = arith.addf %29, %34 : vector<128x32xf32>
    %c0_15 = arith.constant 0 : index
    %c0_16 = arith.constant 0 : index
    %36 = vector.load %arg9[%c0_15, %c0_16] : memref<32x16xf32, #tpu.memory_space<vmem>>, vector<32x16xf32>
    %cst_17 = arith.constant dense<0.000000e+00> : vector<128x16xf32>
    %37 = tpu.matmul %35, %36, %cst_17 {dimension_numbers = #tpu.dot_dimension_numbers<[1], [0], [0], [1], [0, 0, 1, 1], [], []>} : vector<128x32xf32>, vector<32x16xf32>, vector<128x16xf32> -> vector<128x16xf32>
    %c0_18 = arith.constant 0 : index
    %c0_19 = arith.constant 0 : index
    %38 = vector.load %arg2[%c0_18, %c0_19] : memref<128x3xi32, #tpu.memory_space<vmem>>, vector<128x3xi32>
    %39 = tpu.iota {dimensions = array<i32: 1>} : vector<128x48xi32>
    %cst_20 = arith.constant 0.000000e+00 : f32
    %40 = vector.broadcast %cst_20 : f32 to vector<128x48xf32>
    %41 = vector.extract_strided_slice %38 {offsets = [0, 0], sizes = [128, 1], strides = [1, 1]} : vector<128x3xi32> to vector<128x1xi32>
    %42 = vector.broadcast %41 : vector<128x1xi32> to vector<128x48xi32>
    %43 = arith.cmpi eq, %42, %39 : vector<128x48xi32>
    %44 = arith.extui %43 : vector<128x48xi1> to vector<128x48xi32>
    %45 = arith.sitofp %44 : vector<128x48xi32> to vector<128x48xf32>
    %46 = arith.addf %40, %45 : vector<128x48xf32>
    %47 = vector.extract_strided_slice %38 {offsets = [0, 1], sizes = [128, 1], strides = [1, 1]} : vector<128x3xi32> to vector<128x1xi32>
    %48 = vector.broadcast %47 : vector<128x1xi32> to vector<128x48xi32>
    %49 = arith.cmpi eq, %48, %39 : vector<128x48xi32>
    %50 = arith.extui %49 : vector<128x48xi1> to vector<128x48xi32>
    %51 = arith.sitofp %50 : vector<128x48xi32> to vector<128x48xf32>
    %52 = arith.addf %46, %51 : vector<128x48xf32>
    %53 = vector.extract_strided_slice %38 {offsets = [0, 2], sizes = [128, 1], strides = [1, 1]} : vector<128x3xi32> to vector<128x1xi32>
    %54 = vector.broadcast %53 : vector<128x1xi32> to vector<128x48xi32>
    %55 = arith.cmpi eq, %54, %39 : vector<128x48xi32>
    %56 = arith.extui %55 : vector<128x48xi1> to vector<128x48xi32>
    %57 = arith.sitofp %56 : vector<128x48xi32> to vector<128x48xf32>
    %58 = arith.addf %52, %57 : vector<128x48xf32>
    %c0_21 = arith.constant 0 : index
    %c0_22 = arith.constant 0 : index
    %59 = vector.load %arg10[%c0_21, %c0_22] : memref<48x16xf32, #tpu.memory_space<vmem>>, vector<48x16xf32>
    %cst_23 = arith.constant dense<0.000000e+00> : vector<128x16xf32>
    %60 = tpu.matmul %58, %59, %cst_23 {dimension_numbers = #tpu.dot_dimension_numbers<[1], [0], [0], [1], [0, 0, 1, 1], [], []>} : vector<128x48xf32>, vector<48x16xf32>, vector<128x16xf32> -> vector<128x16xf32>
    %c0_24 = arith.constant 0 : index
    %c0_25 = arith.constant 0 : index
    %61 = vector.load %arg3[%c0_24, %c0_25] : memref<128x3xi32, #tpu.memory_space<vmem>>, vector<128x3xi32>
    %62 = tpu.iota {dimensions = array<i32: 1>} : vector<128x24xi32>
    %cst_26 = arith.constant 0.000000e+00 : f32
    %63 = vector.broadcast %cst_26 : f32 to vector<128x24xf32>
    %64 = vector.extract_strided_slice %61 {offsets = [0, 0], sizes = [128, 1], strides = [1, 1]} : vector<128x3xi32> to vector<128x1xi32>
    %65 = vector.broadcast %64 : vector<128x1xi32> to vector<128x24xi32>
    %66 = arith.cmpi eq, %65, %62 : vector<128x24xi32>
    %67 = arith.extui %66 : vector<128x24xi1> to vector<128x24xi32>
    %68 = arith.sitofp %67 : vector<128x24xi32> to vector<128x24xf32>
    %69 = arith.addf %63, %68 : vector<128x24xf32>
    %70 = vector.extract_strided_slice %61 {offsets = [0, 1], sizes = [128, 1], strides = [1, 1]} : vector<128x3xi32> to vector<128x1xi32>
    %71 = vector.broadcast %70 : vector<128x1xi32> to vector<128x24xi32>
    %72 = arith.cmpi eq, %71, %62 : vector<128x24xi32>
    %73 = arith.extui %72 : vector<128x24xi1> to vector<128x24xi32>
    %74 = arith.sitofp %73 : vector<128x24xi32> to vector<128x24xf32>
    %75 = arith.addf %69, %74 : vector<128x24xf32>
    %76 = vector.extract_strided_slice %61 {offsets = [0, 2], sizes = [128, 1], strides = [1, 1]} : vector<128x3xi32> to vector<128x1xi32>
    %77 = vector.broadcast %76 : vector<128x1xi32> to vector<128x24xi32>
    %78 = arith.cmpi eq, %77, %62 : vector<128x24xi32>
    %79 = arith.extui %78 : vector<128x24xi1> to vector<128x24xi32>
    %80 = arith.sitofp %79 : vector<128x24xi32> to vector<128x24xf32>
    %81 = arith.addf %75, %80 : vector<128x24xf32>
    %c0_27 = arith.constant 0 : index
    %c0_28 = arith.constant 0 : index
    %82 = vector.load %arg11[%c0_27, %c0_28] : memref<24x16xf32, #tpu.memory_space<vmem>>, vector<24x16xf32>
    %cst_29 = arith.constant dense<0.000000e+00> : vector<128x16xf32>
    %83 = tpu.matmul %81, %82, %cst_29 {dimension_numbers = #tpu.dot_dimension_numbers<[1], [0], [0], [1], [0, 0, 1, 1], [], []>} : vector<128x24xf32>, vector<24x16xf32>, vector<128x16xf32> -> vector<128x16xf32>
    %c0_30 = arith.constant 0 : index
    %c0_31 = arith.constant 0 : index
    %84 = vector.load %arg12[%c0_30, %c0_31] : memref<16x32xf32, #tpu.memory_space<vmem>>, vector<16x32xf32>
    %cst_32 = arith.constant dense<0.000000e+00> : vector<128x32xf32>
    %85 = tpu.matmul %14, %84, %cst_32 {dimension_numbers = #tpu.dot_dimension_numbers<[1], [0], [0], [1], [0, 0, 1, 1], [], []>} : vector<128x16xf32>, vector<16x32xf32>, vector<128x32xf32> -> vector<128x32xf32>
    %c0_33 = arith.constant 0 : index
    %c0_34 = arith.constant 0 : index
    %86 = vector.load %arg14[%c0_33, %c0_34] : memref<1x32xf32, #tpu.memory_space<vmem>>, vector<1x32xf32>
    %87 = vector.broadcast %86 : vector<1x32xf32> to vector<128x32xf32>
    %88 = arith.addf %85, %87 : vector<128x32xf32>
    %89 = tpu.concatenate %37, %60, %60, %83, %83, %83 in 1 : vector<128x16xf32>, vector<128x16xf32>, vector<128x16xf32>, vector<128x16xf32>, vector<128x16xf32>, vector<128x16xf32> -> vector<128x96xf32>
    %90 = tpu.concatenate %14, %14, %37, %14, %37, %60 in 1 : vector<128x16xf32>, vector<128x16xf32>, vector<128x16xf32>, vector<128x16xf32>, vector<128x16xf32>, vector<128x16xf32> -> vector<128x96xf32>
    %91 = arith.mulf %89, %90 : vector<128x96xf32>
    %c0_35 = arith.constant 0 : index
    %c0_36 = arith.constant 0 : index
    %92 = vector.load %arg13[%c0_35, %c0_36] : memref<96x32xf32, #tpu.memory_space<vmem>>, vector<96x32xf32>
    %cst_37 = arith.constant dense<0.000000e+00> : vector<128x32xf32>
    %93 = tpu.matmul %91, %92, %cst_37 {dimension_numbers = #tpu.dot_dimension_numbers<[1], [0], [0], [1], [0, 0, 1, 1], [], []>} : vector<128x96xf32>, vector<96x32xf32>, vector<128x32xf32> -> vector<128x32xf32>
    %94 = arith.addf %88, %93 : vector<128x32xf32>
    %cst_38 = arith.constant 0.000000e+00 : f32
    %95 = vector.broadcast %cst_38 : f32 to vector<128x32xf32>
    %96 = arith.maximumf %94, %95 : vector<128x32xf32>
    %c0_39 = arith.constant 0 : index
    %c0_40 = arith.constant 0 : index
    %97 = vector.load %arg15[%c0_39, %c0_40] : memref<32x1xf32, #tpu.memory_space<vmem>>, vector<32x1xf32>
    %cst_41 = arith.constant dense<0.000000e+00> : vector<128x1xf32>
    %98 = tpu.matmul %96, %97, %cst_41 {dimension_numbers = #tpu.dot_dimension_numbers<[1], [0], [0], [1], [0, 0, 1, 1], [], []>} : vector<128x32xf32>, vector<32x1xf32>, vector<128x1xf32> -> vector<128x1xf32>
    %c0_42 = arith.constant 0 : index
    %c0_43 = arith.constant 0 : index
    %99 = vector.load %arg16[%c0_42, %c0_43] : memref<1x1xf32, #tpu.memory_space<vmem>>, vector<1x1xf32>
    %100 = vector.broadcast %99 : vector<1x1xf32> to vector<128x1xf32>
    %101 = arith.addf %98, %100 : vector<128x1xf32>
    %102 = arith.negf %101 : vector<128x1xf32>
    %103 = math.exp %102 : vector<128x1xf32>
    %cst_44 = arith.constant 1.000000e+00 : f32
    %104 = vector.broadcast %cst_44 : f32 to vector<128x1xf32>
    %105 = arith.addf %104, %103 : vector<128x1xf32>
    %106 = arith.divf %104, %105 : vector<128x1xf32>
    %c0_45 = arith.constant 0 : index
    %c0_46 = arith.constant 0 : index
    %107 = vector.load %arg17[%c0_45, %c0_46] : memref<128x1xf32, #tpu.memory_space<vmem>>, vector<128x1xf32>
    tpu.vector_store %arg17[%c0_45, %c0_46], %106 {strides = array<i32>} : memref<128x1xf32, #tpu.memory_space<vmem>>, vector<128x1xf32>,
    return
  }
  func.func @transform_0(%arg0: i32) -> (i32, i32) {
    %c0_i32 = arith.constant 0 : i32
    %c0_i32_0 = arith.constant 0 : i32
    return %arg0, %c0_i32 : i32, i32
  }
  func.func @transform_1(%arg0: i32) -> (i32, i32) {
    %c0_i32 = arith.constant 0 : i32
    %c0_i32_0 = arith.constant 0 : i32
    return %arg0, %c0_i32 : i32, i32
  }
  func.func @transform_2(%arg0: i32) -> (i32, i32) {
    %c0_i32 = arith.constant 0 : i32
    %c0_i32_0 = arith.constant 0 : i32
    return %arg0, %c0_i32 : i32, i32
  }
  func.func @transform_3(%arg0: i32) -> (i32, i32) {
    %c0_i32 = arith.constant 0 : i32
    %c0_i32_0 = arith.constant 0 : i32
    return %arg0, %c0_i32 : i32, i32
  }
  func.func @transform_4(%arg0: i32) -> (i32, i32) {
    %c0_i32 = arith.constant 0 : i32
    %c0_i32_0 = arith.constant 0 : i32
    %c0_i32_1 = arith.constant 0 : i32
    return %c0_i32, %c0_i32_0 : i32, i32
  }
  func.func @transform_5(%arg0: i32) -> (i32, i32) {
    %c0_i32 = arith.constant 0 : i32
    %c0_i32_0 = arith.constant 0 : i32
    %c0_i32_1 = arith.constant 0 : i32
    return %c0_i32, %c0_i32_0 : i32, i32
  }
  func.func @transform_6(%arg0: i32) -> (i32, i32) {
    %c0_i32 = arith.constant 0 : i32
    %c0_i32_0 = arith.constant 0 : i32
    %c0_i32_1 = arith.constant 0 : i32
    return %c0_i32, %c0_i32_0 : i32, i32
  }
  func.func @transform_7(%arg0: i32) -> (i32, i32) {
    %c0_i32 = arith.constant 0 : i32
    %c0_i32_0 = arith.constant 0 : i32
    %c0_i32_1 = arith.constant 0 : i32
    return %c0_i32, %c0_i32_0 : i32, i32
  }
  func.func @transform_8(%arg0: i32) -> (i32, i32) {
    %c0_i32 = arith.constant 0 : i32
    %c0_i32_0 = arith.constant 0 : i32
    %c0_i32_1 = arith.constant 0 : i32
    return %c0_i32, %c0_i32_0 : i32, i32
  }
  func.func @transform_9(%arg0: i32) -> (i32, i32) {
    %c0_i32 = arith.constant 0 : i32
    %c0_i32_0 = arith.constant 0 : i32
    %c0_i32_1 = arith.constant 0 : i32
    return %c0_i32, %c0_i32_0 : i32, i32
  }
  func.func @transform_10(%arg0: i32) -> (i32, i32) {
    %c0_i32 = arith.constant 0 : i32
    %c0_i32_0 = arith.constant 0 : i32
    %c0_i32_1 = arith.constant 0 : i32
    return %c0_i32, %c0_i32_0 : i32, i32
  }
  func.func @transform_11(%arg0: i32) -> (i32, i32) {
    %c0_i32 = arith.constant 0 : i32
    %c0_i32_0 = arith.constant 0 : i32
    %c0_i32_1 = arith.constant 0 : i32
    return %c0_i32, %c0_i32_0 : i32, i32
  }
  func.func @transform_12(%arg0: i32) -> (i32, i32) {
    %c0_i32 = arith.constant 0 : i32
    %c0_i32_0 = arith.constant 0 : i32
    %c0_i32_1 = arith.constant 0 : i32
    return %c0_i32, %c0_i32_0 : i32, i32
  }
  func.func @transform_13(%arg0: i32) -> (i32, i32) {
    %c0_i32 = arith.constant 0 : i32
    %c0_i32_0 = arith.constant 0 : i32
    %c0_i32_1 = arith.constant 0 : i32
    return %c0_i32, %c0_i32_0 : i32, i32
  }
  func.func @transform_14(%arg0: i32) -> (i32, i32) {
    %c0_i32 = arith.constant 0 : i32
    %c0_i32_0 = arith.constant 0 : i32
    %c0_i32_1 = arith.constant 0 : i32
    return %c0_i32, %c0_i32_0 : i32, i32
  }
  func.func @transform_15(%arg0: i32) -> (i32, i32) {
    %c0_i32 = arith.constant 0 : i32
    %c0_i32_0 = arith.constant 0 : i32
    %c0_i32_1 = arith.constant 0 : i32
    return %c0_i32, %c0_i32_0 : i32, i32
  }
  func.func @transform_16(%arg0: i32) -> (i32, i32) {
    %c0_i32 = arith.constant 0 : i32
    %c0_i32_0 = arith.constant 0 : i32
    return %arg0, %c0_i32 : i32, i32
  }
}

</mosaic_0001>

<llo_original>
// kernel: tpu_custom_call.1
$region0: #{tpu_custom_call.1}
  #allocation0 [shape = 'u32[]', space=smem, size = 0x4, offset = 0x4, fixed_abs, tag = 'smem constant byte address 0x4 - core index']
  #allocation1 [shape = 'u32[72,128]{1,0:T(1,128)}', space=vmem, size = 0x9000, scoped, tag = 'internal scratch']
  #allocation2 [shape = 'f32[1,1]{1,0:T(1,128)S(1)}', space=vmem, size = 0x200, scoped, tag = 'scoped memory for tpu_custom_call.1']
  %s0 = inlined_call_operand.vmem [shape: s32[256,3], index: 0, kind: input, shape index: {}]
  %s1 = inlined_call_operand.vmem [shape: s32[256,3], index: 1, kind: input, shape index: {}]
  %s2 = inlined_call_operand.vmem [shape: s32[256,3], index: 2, kind: input, shape index: {}]
  %s3 = inlined_call_operand.vmem [shape: f32[256,8], index: 3, kind: input, shape index: {}]
  %s4 = inlined_call_operand.vmem [shape: f32[8,32], index: 4, kind: input, shape index: {}]
  %s5 = inlined_call_operand.vmem [shape: f32[1,32], index: 5, kind: input, shape index: {}]
  %s6 = inlined_call_operand.vmem [shape: f32[32,16], index: 6, kind: input, shape index: {}]
  %s7 = inlined_call_operand.vmem [shape: f32[1,16], index: 7, kind: input, shape index: {}]
  %s8 = inlined_call_operand.vmem [shape: f32[32,16], index: 8, kind: input, shape index: {}]
  %s9 = inlined_call_operand.vmem [shape: f32[48,16], index: 9, kind: input, shape index: {}]
  %s10 = inlined_call_operand.vmem [shape: f32[24,16], index: 10, kind: input, shape index: {}]
  %s11 = inlined_call_operand.vmem [shape: f32[16,32], index: 11, kind: input, shape index: {}]
  %s12 = inlined_call_operand.vmem [shape: f32[96,32], index: 12, kind: input, shape index: {}]
  %s13 = inlined_call_operand.vmem [shape: f32[1,32], index: 13, kind: input, shape index: {}]
  %s14 = inlined_call_operand.vmem [shape: f32[32,1], index: 14, kind: input, shape index: {}]
  %s15 = inlined_call_operand.<no memory space> [shape: f32[1,1], index: 15, kind: input, shape index: {}]
  %s16 = inlined_call_operand.vmem [shape: f32[256,1], index: 16, kind: output, shape index: {}]
  %s17 = sld [smem:[#allocation0]]
  $region97: #{tpu_custom_call.1} parent=0
    _
  %s19 = ssub.s32 1, %s17
  %s20 = scalar_select 0, %s19, %s17
  %v21 = vstv %s15
  %22 = vst [vmem:[#allocation2] sm:$0x1] %v21
  loop: start=0, step=1, limit=4
  $region2: #{tpu_custom_call.1} parent=0 // loop_pre_header
    _
  $region3: #{tpu_custom_call.1} parent=0 // loop_header
    %s24 = sphi 0, %s28
    %p25 = scmp.ge.s32.totalorder %s24, 4
    %s34 = sphi 0, %s36
    %s37 = sphi 0, %s34
    %s38 = sphi 0, %s37
    %s54 = sphi 0, %s38
    %s60 = sphi 0, %s62
    %s63 = sphi 0, %s60
    %s64 = sphi 0, %s63
    %s80 = sphi 0, %s64
    %s86 = sphi 0, %s88
    %s89 = sphi 0, %s86
    %s90 = sphi 0, %s89
    %s106 = sphi 0, %s90
    %s112 = sphi 0, %s114
    %s115 = sphi 0, %s112
    %s116 = sphi 0, %s115
    %s132 = sphi 0, %s116
    %s136 = sphi 0, %s136
    %s138 = sphi 0, %s136
    %s139 = sphi 0, %s138
    %s153 = sphi 0, %s139
    %s157 = sphi 0, %s157
    %s159 = sphi 0, %s157
    %s160 = sphi 0, %s159
    %s174 = sphi 0, %s160
    %s178 = sphi 0, %s178
    %s180 = sphi 0, %s178
    %s181 = sphi 0, %s180
    %s195 = sphi 0, %s181
    %s199 = sphi 0, %s199
    %s201 = sphi 0, %s199
    %s202 = sphi 0, %s201
    %s216 = sphi 0, %s202
    %s220 = sphi 0, %s220
    %s222 = sphi 0, %s220
    %s223 = sphi 0, %s222
    %s237 = sphi 0, %s223
    %s241 = sphi 0, %s241
    %s243 = sphi 0, %s241
    %s244 = sphi 0, %s243
    %s258 = sphi 0, %s244
    %s262 = sphi 0, %s262
    %s264 = sphi 0, %s262
    %s265 = sphi 0, %s264
    %s279 = sphi 0, %s265
    %s283 = sphi 0, %s283
    %s285 = sphi 0, %s283
    %s286 = sphi 0, %s285
    %s300 = sphi 0, %s286
    %s304 = sphi 0, %s304
    %s306 = sphi 0, %s304
    %s307 = sphi 0, %s306
    %s321 = sphi 0, %s307
    %s325 = sphi 0, %s325
    %s327 = sphi 0, %s325
    %s328 = sphi 0, %s327
    %s342 = sphi 0, %s328
    %s346 = sphi 0, %s346
    %s348 = sphi 0, %s346
    %s349 = sphi 0, %s348
    %s363 = sphi 0, %s349
    %s367 = sphi 0, %s367
    %s369 = sphi 0, %s367
    %s370 = sphi 0, %s369
    %s384 = sphi 0, %s370
    %s390 = sphi 0, %s392
    %s393 = sphi 0, %s390
    %s394 = sphi 0, %s393
    %s410 = sphi 0, %s394
  $region4: #{tpu_custom_call.1} parent=0 // loop_header_branch
    %27 = sbr.rel (%p25) target = $region8
  $region5: #{tpu_custom_call.1} parent=0 // loop_body
    %s29 = ssub.s32 %s24, 1
    %s30 = ssub.s32 %s24, 2
    %s31 = sadd.s32 %s24, 1
    %s32 = ssub.s32 %s24, %s31
    %p33 = scmp.eq.s32.totalorder %s32, 0
    %s35 = sadd.s32 %s34, 1
    %s36 = scalar_select %p33, %s34, %s35
    %p39 = pneg %p33
    %p40 = scmp.eq.s32.totalorder %s24, 1
    %p41 = por %p39, %p40
    %p42 = scmp.ne.s32.totalorder %s34, %s37
    %p43 = scmp.eq.s32.totalorder %s24, 0
    %p44 = por %p42, %p43
    %p45 = scmp.ne.s32.totalorder %s34, %s37
    %p46 = scmp.eq.s32.totalorder %s29, 1
    %p47 = por %p45, %p46
    %p48 = scmp.ne.s32.totalorder %s37, %s38
    %p49 = scmp.eq.s32.totalorder %s29, 0
    %p50 = por %p48, %p49
    %p51 = scmp.ne.s32.totalorder %s37, %s38
    %p52 = scmp.eq.s32.totalorder %s30, 1
    %p53 = por %p51, %p52
    %p55 = scmp.ne.s32.totalorder %s38, %s54
    %p56 = scmp.eq.s32.totalorder %s30, 0
    %p57 = por %p55, %p56
    %s58 = ssub.s32 %s24, %s31
    %p59 = scmp.eq.s32.totalorder %s58, 0
    %s61 = sadd.s32 %s60, 1
    %s62 = scalar_select %p59, %s60, %s61
    %p65 = pneg %p59
    %p66 = scmp.eq.s32.totalorder %s24, 1
    %p67 = por %p65, %p66
    %p68 = scmp.ne.s32.totalorder %s60, %s63
    %p69 = scmp.eq.s32.totalorder %s24, 0
    %p70 = por %p68, %p69
    %p71 = scmp.ne.s32.totalorder %s60, %s63
    %p72 = scmp.eq.s32.totalorder %s29, 1
    %p73 = por %p71, %p72
    %p74 = scmp.ne.s32.totalorder %s63, %s64
    %p75 = scmp.eq.s32.totalorder %s29, 0
    %p76 = por %p74, %p75
    %p77 = scmp.ne.s32.totalorder %s63, %s64
    %p78 = scmp.eq.s32.totalorder %s30, 1
    %p79 = por %p77, %p78
    %p81 = scmp.ne.s32.totalorder %s64, %s80
    %p82 = scmp.eq.s32.totalorder %s30, 0
    %p83 = por %p81, %p82
    %s84 = ssub.s32 %s24, %s31
    %p85 = scmp.eq.s32.totalorder %s84, 0
    %s87 = sadd.s32 %s86, 1
    %s88 = scalar_select %p85, %s86, %s87
    %p91 = pneg %p85
    %p92 = scmp.eq.s32.totalorder %s24, 1
    %p93 = por %p91, %p92
    %p94 = scmp.ne.s32.totalorder %s86, %s89
    %p95 = scmp.eq.s32.totalorder %s24, 0
    %p96 = por %p94, %p95
    %p97 = scmp.ne.s32.totalorder %s86, %s89
    %p98 = scmp.eq.s32.totalorder %s29, 1
    %p99 = por %p97, %p98
    %p100 = scmp.ne.s32.totalorder %s89, %s90
    %p101 = scmp.eq.s32.totalorder %s29, 0
    %p102 = por %p100, %p101
    %p103 = scmp.ne.s32.totalorder %s89, %s90
    %p104 = scmp.eq.s32.totalorder %s30, 1
    %p105 = por %p103, %p104
    %p107 = scmp.ne.s32.totalorder %s90, %s106
    %p108 = scmp.eq.s32.totalorder %s30, 0
    %p109 = por %p107, %p108
    %s110 = ssub.s32 %s24, %s31
    %p111 = scmp.eq.s32.totalorder %s110, 0
    %s113 = sadd.s32 %s112, 1
    %s114 = scalar_select %p111, %s112, %s113
    %p117 = pneg %p111
    %p118 = scmp.eq.s32.totalorder %s24, 1
    %p119 = por %p117, %p118
    %p120 = scmp.ne.s32.totalorder %s112, %s115
    %p121 = scmp.eq.s32.totalorder %s24, 0
    %p122 = por %p120, %p121
    %p123 = scmp.ne.s32.totalorder %s112, %s115
    %p124 = scmp.eq.s32.totalorder %s29, 1
    %p125 = por %p123, %p124
    %p126 = scmp.ne.s32.totalorder %s115, %s116
    %p127 = scmp.eq.s32.totalorder %s29, 0
    %p128 = por %p126, %p127
    %p129 = scmp.ne.s32.totalorder %s115, %s116
    %p130 = scmp.eq.s32.totalorder %s30, 1
    %p131 = por %p129, %p130
    %p133 = scmp.ne.s32.totalorder %s116, %s132
    %p134 = scmp.eq.s32.totalorder %s30, 0
    %p135 = por %p133, %p134
    %s137 = sadd.s32 %s136, 1
    %p140 = scmp.eq.s32.totalorder %s24, 1
    %p141 = scmp.ne.s32.totalorder %s136, %s138
    %p142 = scmp.eq.s32.totalorder %s24, 0
    %p143 = por %p141, %p142
    %p144 = scmp.ne.s32.totalorder %s136, %s138
    %p145 = scmp.eq.s32.totalorder %s29, 1
    %p146 = por %p144, %p145
    %p147 = scmp.ne.s32.totalorder %s138, %s139
    %p148 = scmp.eq.s32.totalorder %s29, 0
    %p149 = por %p147, %p148
    %p150 = scmp.ne.s32.totalorder %s138, %s139
    %p151 = scmp.eq.s32.totalorder %s30, 1
    %p152 = por %p150, %p151
    %p154 = scmp.ne.s32.totalorder %s139, %s153
    %p155 = scmp.eq.s32.totalorder %s30, 0
    %p156 = por %p154, %p155
    %s158 = sadd.s32 %s157, 1
    %p161 = scmp.eq.s32.totalorder %s24, 1
    %p162 = scmp.ne.s32.totalorder %s157, %s159
    %p163 = scmp.eq.s32.totalorder %s24, 0
    %p164 = por %p162, %p163
    %p165 = scmp.ne.s32.totalorder %s157, %s159
    %p166 = scmp.eq.s32.totalorder %s29, 1
    %p167 = por %p165, %p166
    %p168 = scmp.ne.s32.totalorder %s159, %s160
    %p169 = scmp.eq.s32.totalorder %s29, 0
    %p170 = por %p168, %p169
    %p171 = scmp.ne.s32.totalorder %s159, %s160
    %p172 = scmp.eq.s32.totalorder %s30, 1
    %p173 = por %p171, %p172
    %p175 = scmp.ne.s32.totalorder %s160, %s174
    %p176 = scmp.eq.s32.totalorder %s30, 0
    %p177 = por %p175, %p176
    %s179 = sadd.s32 %s178, 1
    %p182 = scmp.eq.s32.totalorder %s24, 1
    %p183 = scmp.ne.s32.totalorder %s178, %s180
    %p184 = scmp.eq.s32.totalorder %s24, 0
    %p185 = por %p183, %p184
    %p186 = scmp.ne.s32.totalorder %s178, %s180
    %p187 = scmp.eq.s32.totalorder %s29, 1
    %p188 = por %p186, %p187
    %p189 = scmp.ne.s32.totalorder %s180, %s181
    %p190 = scmp.eq.s32.totalorder %s29, 0
    %p191 = por %p189, %p190
    %p192 = scmp.ne.s32.totalorder %s180, %s181
    %p193 = scmp.eq.s32.totalorder %s30, 1
    %p194 = por %p192, %p193
    %p196 = scmp.ne.s32.totalorder %s181, %s195
    %p197 = scmp.eq.s32.totalorder %s30, 0
    %p198 = por %p196, %p197
    %s200 = sadd.s32 %s199, 1
    %p203 = scmp.eq.s32.totalorder %s24, 1
    %p204 = scmp.ne.s32.totalorder %s199, %s201
    %p205 = scmp.eq.s32.totalorder %s24, 0
    %p206 = por %p204, %p205
    %p207 = scmp.ne.s32.totalorder %s199, %s201
    %p208 = scmp.eq.s32.totalorder %s29, 1
    %p209 = por %p207, %p208
    %p210 = scmp.ne.s32.totalorder %s201, %s202
    %p211 = scmp.eq.s32.totalorder %s29, 0
    %p212 = por %p210, %p211
    %p213 = scmp.ne.s32.totalorder %s201, %s202
    %p214 = scmp.eq.s32.totalorder %s30, 1
    %p215 = por %p213, %p214
    %p217 = scmp.ne.s32.totalorder %s202, %s216
    %p218 = scmp.eq.s32.totalorder %s30, 0
    %p219 = por %p217, %p218
    %s221 = sadd.s32 %s220, 1
    %p224 = scmp.eq.s32.totalorder %s24, 1
    %p225 = scmp.ne.s32.totalorder %s220, %s222
    %p226 = scmp.eq.s32.totalorder %s24, 0
    %p227 = por %p225, %p226
    %p228 = scmp.ne.s32.totalorder %s220, %s222
    %p229 = scmp.eq.s32.totalorder %s29, 1
    %p230 = por %p228, %p229
    %p231 = scmp.ne.s32.totalorder %s222, %s223
    %p232 = scmp.eq.s32.totalorder %s29, 0
    %p233 = por %p231, %p232
    %p234 = scmp.ne.s32.totalorder %s222, %s223
    %p235 = scmp.eq.s32.totalorder %s30, 1
    %p236 = por %p234, %p235
    %p238 = scmp.ne.s32.totalorder %s223, %s237
    %p239 = scmp.eq.s32.totalorder %s30, 0
    %p240 = por %p238, %p239
    %s242 = sadd.s32 %s241, 1
    %p245 = scmp.eq.s32.totalorder %s24, 1
    %p246 = scmp.ne.s32.totalorder %s241, %s243
    %p247 = scmp.eq.s32.totalorder %s24, 0
    %p248 = por %p246, %p247
    %p249 = scmp.ne.s32.totalorder %s241, %s243
    %p250 = scmp.eq.s32.totalorder %s29, 1
    %p251 = por %p249, %p250
    %p252 = scmp.ne.s32.totalorder %s243, %s244
    %p253 = scmp.eq.s32.totalorder %s29, 0
    %p254 = por %p252, %p253
    %p255 = scmp.ne.s32.totalorder %s243, %s244
    %p256 = scmp.eq.s32.totalorder %s30, 1
    %p257 = por %p255, %p256
    %p259 = scmp.ne.s32.totalorder %s244, %s258
    %p260 = scmp.eq.s32.totalorder %s30, 0
    %p261 = por %p259, %p260
    %s263 = sadd.s32 %s262, 1
    %p266 = scmp.eq.s32.totalorder %s24, 1
    %p267 = scmp.ne.s32.totalorder %s262, %s264
    %p268 = scmp.eq.s32.totalorder %s24, 0
    %p269 = por %p267, %p268
    %p270 = scmp.ne.s32.totalorder %s262, %s264
    %p271 = scmp.eq.s32.totalorder %s29, 1
    %p272 = por %p270, %p271
    %p273 = scmp.ne.s32.totalorder %s264, %s265
    %p274 = scmp.eq.s32.totalorder %s29, 0
    %p275 = por %p273, %p274
    %p276 = scmp.ne.s32.totalorder %s264, %s265
    %p277 = scmp.eq.s32.totalorder %s30, 1
    %p278 = por %p276, %p277
    %p280 = scmp.ne.s32.totalorder %s265, %s279
    %p281 = scmp.eq.s32.totalorder %s30, 0
    %p282 = por %p280, %p281
    %s284 = sadd.s32 %s283, 1
    %p287 = scmp.eq.s32.totalorder %s24, 1
    %p288 = scmp.ne.s32.totalorder %s283, %s285
    %p289 = scmp.eq.s32.totalorder %s24, 0
    %p290 = por %p288, %p289
    %p291 = scmp.ne.s32.totalorder %s283, %s285
    %p292 = scmp.eq.s32.totalorder %s29, 1
    %p293 = por %p291, %p292
    %p294 = scmp.ne.s32.totalorder %s285, %s286
    %p295 = scmp.eq.s32.totalorder %s29, 0
    %p296 = por %p294, %p295
    %p297 = scmp.ne.s32.totalorder %s285, %s286
    %p298 = scmp.eq.s32.totalorder %s30, 1
    %p299 = por %p297, %p298
    %p301 = scmp.ne.s32.totalorder %s286, %s300
    %p302 = scmp.eq.s32.totalorder %s30, 0
    %p303 = por %p301, %p302
    %s305 = sadd.s32 %s304, 1
    %p308 = scmp.eq.s32.totalorder %s24, 1
    %p309 = scmp.ne.s32.totalorder %s304, %s306
    %p310 = scmp.eq.s32.totalorder %s24, 0
    %p311 = por %p309, %p310
    %p312 = scmp.ne.s32.totalorder %s304, %s306
    %p313 = scmp.eq.s32.totalorder %s29, 1
    %p314 = por %p312, %p313
    %p315 = scmp.ne.s32.totalorder %s306, %s307
    %p316 = scmp.eq.s32.totalorder %s29, 0
    %p317 = por %p315, %p316
    %p318 = scmp.ne.s32.totalorder %s306, %s307
    %p319 = scmp.eq.s32.totalorder %s30, 1
    %p320 = por %p318, %p319
    %p322 = scmp.ne.s32.totalorder %s307, %s321
    %p323 = scmp.eq.s32.totalorder %s30, 0
    %p324 = por %p322, %p323
    %s326 = sadd.s32 %s325, 1
    %p329 = scmp.eq.s32.totalorder %s24, 1
    %p330 = scmp.ne.s32.totalorder %s325, %s327
    %p331 = scmp.eq.s32.totalorder %s24, 0
    %p332 = por %p330, %p331
    %p333 = scmp.ne.s32.totalorder %s325, %s327
    %p334 = scmp.eq.s32.totalorder %s29, 1
    %p335 = por %p333, %p334
    %p336 = scmp.ne.s32.totalorder %s327, %s328
    %p337 = scmp.eq.s32.totalorder %s29, 0
    %p338 = por %p336, %p337
    %p339 = scmp.ne.s32.totalorder %s327, %s328
    %p340 = scmp.eq.s32.totalorder %s30, 1
    %p341 = por %p339, %p340
    %p343 = scmp.ne.s32.totalorder %s328, %s342
    %p344 = scmp.eq.s32.totalorder %s30, 0
    %p345 = por %p343, %p344
    %s347 = sadd.s32 %s346, 1
    %p350 = scmp.eq.s32.totalorder %s24, 1
    %p351 = scmp.ne.s32.totalorder %s346, %s348
    %p352 = scmp.eq.s32.totalorder %s24, 0
    %p353 = por %p351, %p352
    %p354 = scmp.ne.s32.totalorder %s346, %s348
    %p355 = scmp.eq.s32.totalorder %s29, 1
    %p356 = por %p354, %p355
    %p357 = scmp.ne.s32.totalorder %s348, %s349
    %p358 = scmp.eq.s32.totalorder %s29, 0
    %p359 = por %p357, %p358
    %p360 = scmp.ne.s32.totalorder %s348, %s349
    %p361 = scmp.eq.s32.totalorder %s30, 1
    %p362 = por %p360, %p361
    %p364 = scmp.ne.s32.totalorder %s349, %s363
    %p365 = scmp.eq.s32.totalorder %s30, 0
    %p366 = por %p364, %p365
    %s368 = sadd.s32 %s367, 1
    %p371 = scmp.eq.s32.totalorder %s24, 1
    %p372 = scmp.ne.s32.totalorder %s367, %s369
    %p373 = scmp.eq.s32.totalorder %s24, 0
    %p374 = por %p372, %p373
    %p375 = scmp.ne.s32.totalorder %s367, %s369
    %p376 = scmp.eq.s32.totalorder %s29, 1
    %p377 = por %p375, %p376
    %p378 = scmp.ne.s32.totalorder %s369, %s370
    %p379 = scmp.eq.s32.totalorder %s29, 0
    %p380 = por %p378, %p379
    %p381 = scmp.ne.s32.totalorder %s369, %s370
    %p382 = scmp.eq.s32.totalorder %s30, 1
    %p383 = por %p381, %p382
    %p385 = scmp.ne.s32.totalorder %s370, %s384
    %p386 = scmp.eq.s32.totalorder %s30, 0
    %p387 = por %p385, %p386
    %s388 = ssub.s32 %s24, %s31
    %p389 = scmp.eq.s32.totalorder %s388, 0
    %s391 = sadd.s32 %s390, 1
    %s392 = scalar_select %p389, %s390, %s391
    %p395 = pneg %p389
    %p396 = scmp.eq.s32.totalorder %s24, 1
    %p397 = por %p395, %p396
    %p398 = scmp.ne.s32.totalorder %s390, %s393
    %p399 = scmp.eq.s32.totalorder %s24, 0
    %p400 = por %p398, %p399
    %p401 = scmp.ne.s32.totalorder %s390, %s393
    %p402 = scmp.eq.s32.totalorder %s29, 1
    %p403 = por %p401, %p402
    %p404 = scmp.ne.s32.totalorder %s393, %s394
    %p405 = scmp.eq.s32.totalorder %s29, 0
    %p406 = por %p404, %p405
    %p407 = scmp.ne.s32.totalorder %s393, %s394
    %p408 = scmp.eq.s32.totalorder %s30, 1
    %p409 = por %p407, %p408
    %p411 = scmp.ne.s32.totalorder %s394, %s410
    %p412 = scmp.eq.s32.totalorder %s30, 0
    %p413 = por %p411, %p412
    %p414 = scmp.le.s32.totalorder 1, %s24
    %p415 = scmp.lt.s32.totalorder %s24, 3
    %p416 = pnand %p414, %p415
    %p417 = pneg %p416
    // Predicated region
    $region9: #{tpu_custom_call.1} parent=5 // pred_check
      _
    $region10: #{tpu_custom_call.1} parent=5 // pred_check_branch
      %419 = sbr.rel (%p416) target = $region12
    $region11: #{tpu_custom_call.1} parent=5 // pred_region
      %s420 = ssub.s32 %s24, 1
      // Predicated region
      $region13: #{tpu_custom_call.1} parent=11 // pred_check
        %p421 = pneg %p149
      $region14: #{tpu_custom_call.1} parent=11 // pred_check_branch
        %423 = sbr.rel (%p421) target = $region16
      $region15: #{tpu_custom_call.1} parent=11 // pred_region
        _
      $region16: #{tpu_custom_call.1} parent=11 // pred_fallthru
        _
      // Predicated region
      $region17: #{tpu_custom_call.1} parent=11 // pred_check
        %p424 = pneg %p170
      $region18: #{tpu_custom_call.1} parent=11 // pred_check_branch
        %426 = sbr.rel (%p424) target = $region20
      $region19: #{tpu_custom_call.1} parent=11 // pred_region
        _
      $region20: #{tpu_custom_call.1} parent=11 // pred_fallthru
        _
      // Predicated region
      $region21: #{tpu_custom_call.1} parent=11 // pred_check
        %p427 = pneg %p191
      $region22: #{tpu_custom_call.1} parent=11 // pred_check_branch
        %429 = sbr.rel (%p427) target = $region24
      $region23: #{tpu_custom_call.1} parent=11 // pred_region
        _
      $region24: #{tpu_custom_call.1} parent=11 // pred_fallthru
        _
      // Predicated region
      $region25: #{tpu_custom_call.1} parent=11 // pred_check
        %p430 = pneg %p212
      $region26: #{tpu_custom_call.1} parent=11 // pred_check_branch
        %432 = sbr.rel (%p430) target = $region28
      $region27: #{tpu_custom_call.1} parent=11 // pred_region
        _
      $region28: #{tpu_custom_call.1} parent=11 // pred_fallthru
        _
      // Predicated region
      $region29: #{tpu_custom_call.1} parent=11 // pred_check
        %p433 = pneg %p233
      $region30: #{tpu_custom_call.1} parent=11 // pred_check_branch
        %435 = sbr.rel (%p433) target = $region32
      $region31: #{tpu_custom_call.1} parent=11 // pred_region
        _
      $region32: #{tpu_custom_call.1} parent=11 // pred_fallthru
        _
      // Predicated region
      $region33: #{tpu_custom_call.1} parent=11 // pred_check
        %p436 = pneg %p254
      $region34: #{tpu_custom_call.1} parent=11 // pred_check_branch
        %438 = sbr.rel (%p436) target = $region36
      $region35: #{tpu_custom_call.1} parent=11 // pred_region
        _
      $region36: #{tpu_custom_call.1} parent=11 // pred_fallthru
        _
      // Predicated region
      $region37: #{tpu_custom_call.1} parent=11 // pred_check
        %p439 = pneg %p275
      $region38: #{tpu_custom_call.1} parent=11 // pred_check_branch
        %441 = sbr.rel (%p439) target = $region40
      $region39: #{tpu_custom_call.1} parent=11 // pred_region
        _
      $region40: #{tpu_custom_call.1} parent=11 // pred_fallthru
        _
      // Predicated region
      $region41: #{tpu_custom_call.1} parent=11 // pred_check
        %p442 = pneg %p296
      $region42: #{tpu_custom_call.1} parent=11 // pred_check_branch
        %444 = sbr.rel (%p442) target = $region44
      $region43: #{tpu_custom_call.1} parent=11 // pred_region
        _
      $region44: #{tpu_custom_call.1} parent=11 // pred_fallthru
        _
      // Predicated region
      $region45: #{tpu_custom_call.1} parent=11 // pred_check
        %p445 = pneg %p317
      $region46: #{tpu_custom_call.1} parent=11 // pred_check_branch
        %447 = sbr.rel (%p445) target = $region48
      $region47: #{tpu_custom_call.1} parent=11 // pred_region
        _
      $region48: #{tpu_custom_call.1} parent=11 // pred_fallthru
        _
      // Predicated region
      $region49: #{tpu_custom_call.1} parent=11 // pred_check
        %p448 = pneg %p338
      $region50: #{tpu_custom_call.1} parent=11 // pred_check_branch
        %450 = sbr.rel (%p448) target = $region52
      $region51: #{tpu_custom_call.1} parent=11 // pred_region
        _
      $region52: #{tpu_custom_call.1} parent=11 // pred_fallthru
        _
      // Predicated region
      $region53: #{tpu_custom_call.1} parent=11 // pred_check
        %p451 = pneg %p359
      $region54: #{tpu_custom_call.1} parent=11 // pred_check_branch
        %453 = sbr.rel (%p451) target = $region56
      $region55: #{tpu_custom_call.1} parent=11 // pred_region
        _
      $region56: #{tpu_custom_call.1} parent=11 // pred_fallthru
        _
      // Predicated region
      $region57: #{tpu_custom_call.1} parent=11 // pred_check
        %p454 = pneg %p380
      $region58: #{tpu_custom_call.1} parent=11 // pred_check_branch
        %456 = sbr.rel (%p454) target = $region60
      $region59: #{tpu_custom_call.1} parent=11 // pred_region
        _
      $region60: #{tpu_custom_call.1} parent=11 // pred_fallthru
        _
    $region12: #{tpu_custom_call.1} parent=5 // pred_fallthru
      _
    %p457 = scmp.lt.s32.totalorder %s24, 2
    // Predicated region
    $region61: #{tpu_custom_call.1} parent=5 // pred_check
      %p458 = pneg %p457
    $region62: #{tpu_custom_call.1} parent=5 // pred_check_branch
      %460 = sbr.rel (%p458) target = $region64
    $region63: #{tpu_custom_call.1} parent=5 // pred_region
      // Predicated region
      $region65: #{tpu_custom_call.1} parent=63 // pred_check
        %p461 = pneg %p44
      $region66: #{tpu_custom_call.1} parent=63 // pred_check_branch
        %463 = sbr.rel (%p461) target = $region68
      $region67: #{tpu_custom_call.1} parent=63 // pred_region
        %s464 = smul.u32 16, %s24
        %p465 = scmp.lt.s32.totalorder %s464, 31
        %s466 = scalar_select %p465, %s464, 31
        %s467 = smul.addr %s466, 8
        %s468 = scalar_lea.vmem %s0, %s467
        %s469 = smul.u32 16, %s24
      $region68: #{tpu_custom_call.1} parent=63 // pred_fallthru
        _
      // Predicated region
      $region69: #{tpu_custom_call.1} parent=63 // pred_check
        %p470 = pneg %p70
      $region70: #{tpu_custom_call.1} parent=63 // pred_check_branch
        %472 = sbr.rel (%p470) target = $region72
      $region71: #{tpu_custom_call.1} parent=63 // pred_region
        %s473 = smul.u32 16, %s24
        %p474 = scmp.lt.s32.totalorder %s473, 31
        %s475 = scalar_select %p474, %s473, 31
        %s476 = smul.addr %s475, 8
        %s477 = scalar_lea.vmem %s1, %s476
        %s478 = smul.u32 16, %s24
      $region72: #{tpu_custom_call.1} parent=63 // pred_fallthru
        _
      // Predicated region
      $region73: #{tpu_custom_call.1} parent=63 // pred_check
        %p479 = pneg %p96
      $region74: #{tpu_custom_call.1} parent=63 // pred_check_branch
        %481 = sbr.rel (%p479) target = $region76
      $region75: #{tpu_custom_call.1} parent=63 // pred_region
        %s482 = smul.u32 16, %s24
        %p483 = scmp.lt.s32.totalorder %s482, 31
        %s484 = scalar_select %p483, %s482, 31
        %s485 = smul.addr %s484, 8
        %s486 = scalar_lea.vmem %s2, %s485
        %s487 = smul.u32 16, %s24
      $region76: #{tpu_custom_call.1} parent=63 // pred_fallthru
        _
      // Predicated region
      $region77: #{tpu_custom_call.1} parent=63 // pred_check
        %p488 = pneg %p122
      $region78: #{tpu_custom_call.1} parent=63 // pred_check_branch
        %490 = sbr.rel (%p488) target = $region80
      $region79: #{tpu_custom_call.1} parent=63 // pred_region
        %s491 = smul.u32 16, %s24
        %p492 = scmp.lt.s32.totalorder %s491, 31
        %s493 = scalar_select %p492, %s491, 31
        %s494 = smul.addr %s493, 8
        %s495 = scalar_lea.vmem %s3, %s494
        %s496 = smul.u32 16, %s24
      $region80: #{tpu_custom_call.1} parent=63 // pred_fallthru
        _
    $region64: #{tpu_custom_call.1} parent=5 // pred_fallthru
      _
    %p497 = scmp.le.s32.totalorder 1, %s24
    %p498 = scmp.lt.s32.totalorder %s24, 3
    %p499 = pnand %p497, %p498
    %p500 = pneg %p499
    // Predicated region
    $region81: #{tpu_custom_call.1} parent=5 // pred_check
      _
    $region82: #{tpu_custom_call.1} parent=5 // pred_check_branch
      %502 = sbr.rel (%p499) target = $region84
    $region83: #{tpu_custom_call.1} parent=5 // pred_region
      %s503 = ssub.s32 %s24, 1
      %s504 = smul.u32 16, %s29
      %p505 = scmp.lt.s32.totalorder %s504, 31
      %s506 = scalar_select %p505, %s504, 31
      %s507 = smul.addr %s506, 8
      %s508 = scalar_lea.vmem %s0, %s507
      %p509 = pneg %p50
      %p510 = pneg %p47
      %s511 = smul.u32 16, %s29
      %p512 = scmp.lt.s32.totalorder %s511, 31
      %s513 = scalar_select %p512, %s511, 31
      %s514 = smul.addr %s513, 8
      %s515 = scalar_lea.vmem %s1, %s514
      %p516 = pneg %p76
      %p517 = pneg %p73
      %s518 = smul.u32 16, %s29
      %p519 = scmp.lt.s32.totalorder %s518, 31
      %s520 = scalar_select %p519, %s518, 31
      %s521 = smul.addr %s520, 8
      %s522 = scalar_lea.vmem %s2, %s521
      %p523 = pneg %p102
      %p524 = pneg %p99
      %s525 = smul.u32 16, %s29
      %p526 = scmp.lt.s32.totalorder %s525, 31
      %s527 = scalar_select %p526, %s525, 31
      %s528 = smul.addr %s527, 8
      %s529 = scalar_lea.vmem %s3, %s528
      %p530 = pneg %p128
      %p531 = pneg %p125
      %p532 = pneg %p149
      %p533 = pneg %p146
      %p534 = pneg %p170
      %p535 = pneg %p167
      %p536 = pneg %p191
      %p537 = pneg %p188
      %p538 = pneg %p212
      %p539 = pneg %p209
      %p540 = pneg %p233
      %p541 = pneg %p230
      %p542 = pneg %p254
      %p543 = pneg %p251
      %p544 = pneg %p275
      %p545 = pneg %p272
      %p546 = pneg %p296
      %p547 = pneg %p293
      %p548 = pneg %p317
      %p549 = pneg %p314
      %p550 = pneg %p338
      %p551 = pneg %p335
      %p552 = pneg %p359
      %p553 = pneg %p356
      %p554 = pneg %p380
      %p555 = pneg %p377
      %p556 = pneg %p406
      %p557 = pneg %p403
      %s558 = smul.u32 16, %s29
      %p559 = scmp.lt.s32.totalorder %s558, 31
      %s560 = scalar_select %p559, %s558, 31
      %s561 = smul.addr %s560, 8
      %s562 = scalar_lea.vmem %s16, %s561
      %s563 = smul.u32 16, %s29
      %p564 = scmp.lt.s32.totalorder %s563, 31
      %s565 = scalar_select %p564, %s563, 31
      %s566 = smul.addr %s565, 8
      %s567 = scalar_lea.vmem %s0, %s566
      %s568 = smul.u32 16, %s29
      %s569 = smul.u32 16, %s29
      %p570 = scmp.lt.s32.totalorder %s569, 31
      %s571 = scalar_select %p570, %s569, 31
      %s572 = smul.addr %s571, 8
      %s573 = scalar_lea.vmem %s1, %s572
      %s574 = smul.u32 16, %s29
      %s575 = smul.u32 16, %s29
      %p576 = scmp.lt.s32.totalorder %s575, 31
      %s577 = scalar_select %p576, %s575, 31
      %s578 = smul.addr %s577, 8
      %s579 = scalar_lea.vmem %s2, %s578
      %s580 = smul.u32 16, %s29
      %s581 = smul.u32 16, %s29
      %p582 = scmp.lt.s32.totalorder %s581, 31
      %s583 = scalar_select %p582, %s581, 31
      %s584 = smul.addr %s583, 8
      %s585 = scalar_lea.vmem %s3, %s584
      %s586 = smul.u32 16, %s29
      %s587 = smul.u32 16, %s29
      %p588 = scmp.lt.s32.totalorder %s587, 31
      %s589 = scalar_select %p588, %s587, 31
      %s590 = smul.addr %s589, 8
      %s591 = scalar_lea.vmem %s16, %s590
      %s592 = smul.u32 16, %s29
      %v593 = vld [vmem:[%s585] sm:$0xff]
      %v594 = vld [vmem:[%s585 + $0x8] sm:$0xff]
      %v595 = vld [vmem:[%s585 + $0x10] sm:$0xff]
      %v596 = vld [vmem:[%s585 + $0x18] sm:$0xff]
      %v597 = vld [vmem:[%s585 + $0x20] sm:$0xff]
      %v598 = vld [vmem:[%s585 + $0x28] sm:$0xff]
      %v599 = vld [vmem:[%s585 + $0x30] sm:$0xff]
      %v600 = vld [vmem:[%s585 + $0x38] sm:$0xff]
      %v601 = vld [vmem:[%s585 + $0x40] sm:$0xff]
      %v602 = vld [vmem:[%s585 + $0x48] sm:$0xff]
      %v603 = vld [vmem:[%s585 + $0x50] sm:$0xff]
      %v604 = vld [vmem:[%s585 + $0x58] sm:$0xff]
      %v605 = vld [vmem:[%s585 + $0x60] sm:$0xff]
      %v606 = vld [vmem:[%s585 + $0x68] sm:$0xff]
      %v607 = vld [vmem:[%s585 + $0x70] sm:$0xff]
      %v608 = vld [vmem:[%s585 + $0x78] sm:$0xff]
      %v609 = vld [vmem:[%s4] sm:$0xff]
      %v610 = vld [vmem:[%s5] sm:$0x1]
      %v612 = vperm.slane %v610, 0
      %vm614 = vcmask 64512
      %v616 = vsel %vm614, %v593, 0
      %v619 = vsel %vm614, %v594, 0
      %v622 = vsel %vm614, %v595, 0
      %v625 = vsel %vm614, %v596, 0
      %v628 = vsel %vm614, %v597, 0
      %v631 = vsel %vm614, %v598, 0
      %v634 = vsel %vm614, %v599, 0
      %v637 = vsel %vm614, %v600, 0
      %v640 = vsel %vm614, %v601, 0
      %v643 = vsel %vm614, %v602, 0
      %v646 = vsel %vm614, %v603, 0
      %v649 = vsel %vm614, %v604, 0
      %v652 = vsel %vm614, %v605, 0
      %v655 = vsel %vm614, %v606, 0
      %v658 = vsel %vm614, %v607, 0
      %v661 = vsel %vm614, %v608, 0
      %663 = vmatpush.msra.mxu0 0.0
      %664 = vmatpush.msra.mxu0 0.0
      %665 = vmatpush.msra.mxu0 0.0
      %666 = vmatpush.msra.mxu0 0.0
      %667 = vmatpush.msra.mxu0 0.0
      %668 = vmatpush.msra.mxu0 0.0
      %669 = vmatpush.msra.mxu0 0.0
      %670 = vmatpush.msra.mxu0 0.0
      %671 = vmatpush.msra.mxu0 0.0
      %672 = vmatpush.msra.mxu0 0.0
      %673 = vmatpush.msra.mxu0 0.0
      %674 = vmatpush.msra.mxu0 0.0
      %675 = vmatpush.msra.mxu0 0.0
      %676 = vmatpush.msra.mxu0 0.0
      %677 = vmatpush.msra.mxu0 0.0
      %678 = vmatpush.msra.mxu0 %v609
      %679 = vmatmul.f32.gmra.mxu0 %v616
      %v680 = vpop.f32.mrf.mxu0
      %v681 = vadd.f32 %v612, %v680
      %682 = vmatmul.f32.gmra.mxu0 %v619
      %v683 = vpop.f32.mrf.mxu0
      %v684 = vadd.f32 %v612, %v683
      %685 = vmatmul.f32.gmra.mxu0 %v622
      %v686 = vpop.f32.mrf.mxu0
      %v687 = vadd.f32 %v612, %v686
      %688 = vmatmul.f32.gmra.mxu0 %v625
      %v689 = vpop.f32.mrf.mxu0
      %v690 = vadd.f32 %v612, %v689
      %691 = vmatmul.f32.gmra.mxu0 %v628
      %v692 = vpop.f32.mrf.mxu0
      %v693 = vadd.f32 %v612, %v692
      %694 = vmatmul.f32.gmra.mxu0 %v631
      %v695 = vpop.f32.mrf.mxu0
      %v696 = vadd.f32 %v612, %v695
      %697 = vmatmul.f32.gmra.mxu0 %v634
      %v698 = vpop.f32.mrf.mxu0
      %v699 = vadd.f32 %v612, %v698
      %700 = vmatmul.f32.gmra.mxu0 %v637
      %v701 = vpop.f32.mrf.mxu0
      %v702 = vadd.f32 %v612, %v701
      %703 = vmatmul.f32.gmra.mxu0 %v640
      %v704 = vpop.f32.mrf.mxu0
      %v705 = vadd.f32 %v612, %v704
      %706 = vmatmul.f32.gmra.mxu0 %v643
      %v707 = vpop.f32.mrf.mxu0
      %v708 = vadd.f32 %v612, %v707
      %709 = vmatmul.f32.gmra.mxu0 %v646
      %v710 = vpop.f32.mrf.mxu0
      %v711 = vadd.f32 %v612, %v710
      %712 = vmatmul.f32.gmra.mxu0 %v649
      %v713 = vpop.f32.mrf.mxu0
      %v714 = vadd.f32 %v612, %v713
      %715 = vmatmul.f32.gmra.mxu0 %v652
      %v716 = vpop.f32.mrf.mxu0
      %v717 = vadd.f32 %v612, %v716
      %718 = vmatmul.f32.gmra.mxu0 %v655
      %v719 = vpop.f32.mrf.mxu0
      %v720 = vadd.f32 %v612, %v719
      %721 = vmatmul.f32.gmra.mxu0 %v658
      %v722 = vpop.f32.mrf.mxu0
      %v723 = vadd.f32 %v612, %v722
      %724 = vmatmul.f32.gmra.mxu0 %v661
      %v725 = vpop.f32.mrf.mxu0
      %v726 = vadd.f32 %v612, %v725
      %727 = vdwg.mxu0
      %v728 = vmax.f32 %v681, 0.0
      %v729 = vmax.f32 %v684, 0.0
      %v730 = vmax.f32 %v687, 0.0
      %v731 = vmax.f32 %v690, 0.0
      %v732 = vmax.f32 %v693, 0.0
      %v733 = vmax.f32 %v696, 0.0
      %v734 = vmax.f32 %v699, 0.0
      %v735 = vmax.f32 %v702, 0.0
      %v736 = vmax.f32 %v705, 0.0
      %v737 = vmax.f32 %v708, 0.0
      %v738 = vmax.f32 %v711, 0.0
      %v739 = vmax.f32 %v714, 0.0
      %v740 = vmax.f32 %v717, 0.0
      %v741 = vmax.f32 %v720, 0.0
      %v742 = vmax.f32 %v723, 0.0
      %v743 = vmax.f32 %v726, 0.0
      %v744 = vld [vmem:[%s6] sm:$0xff]
      %v745 = vld [vmem:[%s6 + $0x8] sm:$0xff]
      %v746 = vld [vmem:[%s6 + $0x10] sm:$0xff]
      %v747 = vld [vmem:[%s6 + $0x18] sm:$0xff]
      %v748 = vld [vmem:[%s7] sm:$0x1]
      %v750 = vperm.slane %v748, 0
      %vm752 = vcmask 261120
      %v754 = vsel %vm752, %v728, 0
      %v757 = vsel %vm752, %v729, 0
      %v760 = vsel %vm752, %v730, 0
      %v763 = vsel %vm752, %v731, 0
      %v766 = vsel %vm752, %v732, 0
      %v769 = vsel %vm752, %v733, 0
      %v772 = vsel %vm752, %v734, 0
      %v775 = vsel %vm752, %v735, 0
      %v778 = vsel %vm752, %v736, 0
      %v781 = vsel %vm752, %v737, 0
      %v784 = vsel %vm752, %v738, 0
      %v787 = vsel %vm752, %v739, 0
      %v790 = vsel %vm752, %v740, 0
      %v793 = vsel %vm752, %v741, 0
      %v796 = vsel %vm752, %v742, 0
      %v799 = vsel %vm752, %v743, 0
      %801 = vmatpush.msra.mxu0 0.0
      %802 = vmatpush.msra.mxu0 0.0
      %803 = vmatpush.msra.mxu0 0.0
      %804 = vmatpush.msra.mxu0 0.0
      %805 = vmatpush.msra.mxu0 0.0
      %806 = vmatpush.msra.mxu0 0.0
      %807 = vmatpush.msra.mxu0 0.0
      %808 = vmatpush.msra.mxu0 0.0
      %809 = vmatpush.msra.mxu0 0.0
      %810 = vmatpush.msra.mxu0 0.0
      %811 = vmatpush.msra.mxu0 0.0
      %812 = vmatpush.msra.mxu0 0.0
      %813 = vmatpush.msra.mxu0 %v747
      %814 = vmatpush.msra.mxu0 %v746
      %815 = vmatpush.msra.mxu0 %v745
      %816 = vmatpush.msra.mxu0 %v744
      %817 = vmatmul.f32.gmra.mxu0 %v754
      %v818 = vpop.f32.mrf.mxu0
      %v819 = vadd.f32 %v750, %v818
      %820 = vmatmul.f32.gmra.mxu0 %v757
      %v821 = vpop.f32.mrf.mxu0
      %v822 = vadd.f32 %v750, %v821
      %823 = vmatmul.f32.gmra.mxu0 %v760
      %v824 = vpop.f32.mrf.mxu0
      %v825 = vadd.f32 %v750, %v824
      %826 = vmatmul.f32.gmra.mxu0 %v763
      %v827 = vpop.f32.mrf.mxu0
      %v828 = vadd.f32 %v750, %v827
      %829 = vmatmul.f32.gmra.mxu0 %v766
      %v830 = vpop.f32.mrf.mxu0
      %v831 = vadd.f32 %v750, %v830
      %832 = vmatmul.f32.gmra.mxu0 %v769
      %v833 = vpop.f32.mrf.mxu0
      %v834 = vadd.f32 %v750, %v833
      %835 = vmatmul.f32.gmra.mxu0 %v772
      %v836 = vpop.f32.mrf.mxu0
      %v837 = vadd.f32 %v750, %v836
      %838 = vmatmul.f32.gmra.mxu0 %v775
      %v839 = vpop.f32.mrf.mxu0
      %v840 = vadd.f32 %v750, %v839
      %841 = vmatmul.f32.gmra.mxu0 %v778
      %v842 = vpop.f32.mrf.mxu0
      %v843 = vadd.f32 %v750, %v842
      %844 = vmatmul.f32.gmra.mxu0 %v781
      %v845 = vpop.f32.mrf.mxu0
      %v846 = vadd.f32 %v750, %v845
      %847 = vmatmul.f32.gmra.mxu0 %v784
      %v848 = vpop.f32.mrf.mxu0
      %v849 = vadd.f32 %v750, %v848
      %850 = vmatmul.f32.gmra.mxu0 %v787
      %v851 = vpop.f32.mrf.mxu0
      %v852 = vadd.f32 %v750, %v851
      %853 = vmatmul.f32.gmra.mxu0 %v790
      %v854 = vpop.f32.mrf.mxu0
      %v855 = vadd.f32 %v750, %v854
      %856 = vmatmul.f32.gmra.mxu0 %v793
      %v857 = vpop.f32.mrf.mxu0
      %v858 = vadd.f32 %v750, %v857
      %859 = vmatmul.f32.gmra.mxu0 %v796
      %v860 = vpop.f32.mrf.mxu0
      %v861 = vadd.f32 %v750, %v860
      %862 = vmatmul.f32.gmra.mxu0 %v799
      %v863 = vpop.f32.mrf.mxu0
      %v864 = vadd.f32 %v750, %v863
      %865 = vdwg.mxu0
      %v866 = vmax.f32 %v819, 0.0
      %v867 = vmax.f32 %v822, 0.0
      %v868 = vmax.f32 %v825, 0.0
      %v869 = vmax.f32 %v828, 0.0
      %v870 = vmax.f32 %v831, 0.0
      %v871 = vmax.f32 %v834, 0.0
      %v872 = vmax.f32 %v837, 0.0
      %v873 = vmax.f32 %v840, 0.0
      %v874 = vmax.f32 %v843, 0.0
      %v875 = vmax.f32 %v846, 0.0
      %v876 = vmax.f32 %v849, 0.0
      %v877 = vmax.f32 %v852, 0.0
      %v878 = vmax.f32 %v855, 0.0
      %v879 = vmax.f32 %v858, 0.0
      %v880 = vmax.f32 %v861, 0.0
      %v881 = vmax.f32 %v864, 0.0
      %v882 = vld [vmem:[%s567] sm:$0xff]
      %v883 = vld [vmem:[%s567 + $0x8] sm:$0xff]
      %v884 = vld [vmem:[%s567 + $0x10] sm:$0xff]
      %v885 = vld [vmem:[%s567 + $0x18] sm:$0xff]
      %v886 = vld [vmem:[%s567 + $0x20] sm:$0xff]
      %v887 = vld [vmem:[%s567 + $0x28] sm:$0xff]
      %v888 = vld [vmem:[%s567 + $0x30] sm:$0xff]
      %v889 = vld [vmem:[%s567 + $0x38] sm:$0xff]
      %v890 = vld [vmem:[%s567 + $0x40] sm:$0xff]
      %v891 = vld [vmem:[%s567 + $0x48] sm:$0xff]
      %v892 = vld [vmem:[%s567 + $0x50] sm:$0xff]
      %v893 = vld [vmem:[%s567 + $0x58] sm:$0xff]
      %v894 = vld [vmem:[%s567 + $0x60] sm:$0xff]
      %v895 = vld [vmem:[%s567 + $0x68] sm:$0xff]
      %v896 = vld [vmem:[%s567 + $0x70] sm:$0xff]
      %v897 = vld [vmem:[%s567 + $0x78] sm:$0xff]
      %v898 = vlaneseq
      %v899 = vand.u32 %v898, 127
      %900 = vset.pattern.permute.xlu0 0
      %901 = vperm.xlu0 %900, %v882
      %v902 = vpop.permute.xlu0 %901
      %903 = vset.pattern.permute.xlu0 0
      %904 = vperm.xlu0 %903, %v883
      %v905 = vpop.permute.xlu0 %904
      %906 = vset.pattern.permute.xlu0 0
      %907 = vperm.xlu0 %906, %v884
      %v908 = vpop.permute.xlu0 %907
      %909 = vset.pattern.permute.xlu0 0
      %910 = vperm.xlu0 %909, %v885
      %v911 = vpop.permute.xlu0 %910
      %912 = vset.pattern.permute.xlu0 0
      %913 = vperm.xlu0 %912, %v886
      %v914 = vpop.permute.xlu0 %913
      %915 = vset.pattern.permute.xlu0 0
      %916 = vperm.xlu0 %915, %v887
      %v917 = vpop.permute.xlu0 %916
      %918 = vset.pattern.permute.xlu0 0
      %919 = vperm.xlu0 %918, %v888
      %v920 = vpop.permute.xlu0 %919
      %921 = vset.pattern.permute.xlu0 0
      %922 = vperm.xlu0 %921, %v889
      %v923 = vpop.permute.xlu0 %922
      %924 = vset.pattern.permute.xlu0 0
      %925 = vperm.xlu0 %924, %v890
      %v926 = vpop.permute.xlu0 %925
      %927 = vset.pattern.permute.xlu0 0
      %928 = vperm.xlu0 %927, %v891
      %v929 = vpop.permute.xlu0 %928
      %930 = vset.pattern.permute.xlu0 0
      %931 = vperm.xlu0 %930, %v892
      %v932 = vpop.permute.xlu0 %931
      %933 = vset.pattern.permute.xlu0 0
      %934 = vperm.xlu0 %933, %v893
      %v935 = vpop.permute.xlu0 %934
      %936 = vset.pattern.permute.xlu0 0
      %937 = vperm.xlu0 %936, %v894
      %v938 = vpop.permute.xlu0 %937
      %939 = vset.pattern.permute.xlu0 0
      %940 = vperm.xlu0 %939, %v895
      %v941 = vpop.permute.xlu0 %940
      %942 = vset.pattern.permute.xlu0 0
      %943 = vperm.xlu0 %942, %v896
      %v944 = vpop.permute.xlu0 %943
      %945 = vset.pattern.permute.xlu0 0
      %946 = vperm.xlu0 %945, %v897
      %v947 = vpop.permute.xlu0 %946
      %vm948 = vcmp.eq.s32.totalorder %v902, %v899
      %vm949 = vcmp.eq.s32.totalorder %v905, %v899
      %vm950 = vcmp.eq.s32.totalorder %v908, %v899
      %vm951 = vcmp.eq.s32.totalorder %v911, %v899
      %vm952 = vcmp.eq.s32.totalorder %v914, %v899
      %vm953 = vcmp.eq.s32.totalorder %v917, %v899
      %vm954 = vcmp.eq.s32.totalorder %v920, %v899
      %vm955 = vcmp.eq.s32.totalorder %v923, %v899
      %vm956 = vcmp.eq.s32.totalorder %v926, %v899
      %vm957 = vcmp.eq.s32.totalorder %v929, %v899
      %vm958 = vcmp.eq.s32.totalorder %v932, %v899
      %vm959 = vcmp.eq.s32.totalorder %v935, %v899
      %vm960 = vcmp.eq.s32.totalorder %v938, %v899
      %vm961 = vcmp.eq.s32.totalorder %v941, %v899
      %vm962 = vcmp.eq.s32.totalorder %v944, %v899
      %vm963 = vcmp.eq.s32.totalorder %v947, %v899
      %v964 = vsel %vm948, 1, 0
      %v965 = vsel %vm949, 1, 0
      %v966 = vsel %vm950, 1, 0
      %v967 = vsel %vm951, 1, 0
      %v968 = vsel %vm952, 1, 0
      %v969 = vsel %vm953, 1, 0
      %v970 = vsel %vm954, 1, 0
      %v971 = vsel %vm955, 1, 0
      %v972 = vsel %vm956, 1, 0
      %v973 = vsel %vm957, 1, 0
      %v974 = vsel %vm958, 1, 0
      %v975 = vsel %vm959, 1, 0
      %v976 = vsel %vm960, 1, 0
      %v977 = vsel %vm961, 1, 0
      %v978 = vsel %vm962, 1, 0
      %v979 = vsel %vm963, 1, 0
      %v980 = vcvt.s32.f32 %v964
      %v981 = vcvt.s32.f32 %v965
      %v982 = vcvt.s32.f32 %v966
      %v983 = vcvt.s32.f32 %v967
      %v984 = vcvt.s32.f32 %v968
      %v985 = vcvt.s32.f32 %v969
      %v986 = vcvt.s32.f32 %v970
      %v987 = vcvt.s32.f32 %v971
      %v988 = vcvt.s32.f32 %v972
      %v989 = vcvt.s32.f32 %v973
      %v990 = vcvt.s32.f32 %v974
      %v991 = vcvt.s32.f32 %v975
      %v992 = vcvt.s32.f32 %v976
      %v993 = vcvt.s32.f32 %v977
      %v994 = vcvt.s32.f32 %v978
      %v995 = vcvt.s32.f32 %v979
      %v996 = vadd.f32 %v980, 0.0
      %v997 = vadd.f32 %v981, 0.0
      %v998 = vadd.f32 %v982, 0.0
      %v999 = vadd.f32 %v983, 0.0
      %v1000 = vadd.f32 %v984, 0.0
      %v1001 = vadd.f32 %v985, 0.0
      %v1002 = vadd.f32 %v986, 0.0
      %v1003 = vadd.f32 %v987, 0.0
      %v1004 = vadd.f32 %v988, 0.0
      %v1005 = vadd.f32 %v989, 0.0
      %v1006 = vadd.f32 %v990, 0.0
      %v1007 = vadd.f32 %v991, 0.0
      %v1008 = vadd.f32 %v992, 0.0
      %v1009 = vadd.f32 %v993, 0.0
      %v1010 = vadd.f32 %v994, 0.0
      %v1011 = vadd.f32 %v995, 0.0
      %1012 = vset.pattern.permute.xlu0 1
      %1013 = vperm.xlu0 %1012, %v882
      %v1014 = vpop.permute.xlu0 %1013
      %1015 = vset.pattern.permute.xlu0 1
      %1016 = vperm.xlu0 %1015, %v883
      %v1017 = vpop.permute.xlu0 %1016
      %1018 = vset.pattern.permute.xlu0 1
      %1019 = vperm.xlu0 %1018, %v884
      %v1020 = vpop.permute.xlu0 %1019
      %1021 = vset.pattern.permute.xlu0 1
      %1022 = vperm.xlu0 %1021, %v885
      %v1023 = vpop.permute.xlu0 %1022
      %1024 = vset.pattern.permute.xlu0 1
      %1025 = vperm.xlu0 %1024, %v886
      %v1026 = vpop.permute.xlu0 %1025
      %1027 = vset.pattern.permute.xlu0 1
      %1028 = vperm.xlu0 %1027, %v887
      %v1029 = vpop.permute.xlu0 %1028
      %1030 = vset.pattern.permute.xlu0 1
      %1031 = vperm.xlu0 %1030, %v888
      %v1032 = vpop.permute.xlu0 %1031
      %1033 = vset.pattern.permute.xlu0 1
      %1034 = vperm.xlu0 %1033, %v889
      %v1035 = vpop.permute.xlu0 %1034
      %1036 = vset.pattern.permute.xlu0 1
      %1037 = vperm.xlu0 %1036, %v890
      %v1038 = vpop.permute.xlu0 %1037
      %1039 = vset.pattern.permute.xlu0 1
      %1040 = vperm.xlu0 %1039, %v891
      %v1041 = vpop.permute.xlu0 %1040
      %1042 = vset.pattern.permute.xlu0 1
      %1043 = vperm.xlu0 %1042, %v892
      %v1044 = vpop.permute.xlu0 %1043
      %1045 = vset.pattern.permute.xlu0 1
      %1046 = vperm.xlu0 %1045, %v893
      %v1047 = vpop.permute.xlu0 %1046
      %1048 = vset.pattern.permute.xlu0 1
      %1049 = vperm.xlu0 %1048, %v894
      %v1050 = vpop.permute.xlu0 %1049
      %1051 = vset.pattern.permute.xlu0 1
      %1052 = vperm.xlu0 %1051, %v895
      %v1053 = vpop.permute.xlu0 %1052
      %1054 = vset.pattern.permute.xlu0 1
      %1055 = vperm.xlu0 %1054, %v896
      %v1056 = vpop.permute.xlu0 %1055
      %1057 = vset.pattern.permute.xlu0 1
      %1058 = vperm.xlu0 %1057, %v897
      %v1059 = vpop.permute.xlu0 %1058
      %vm1060 = vcmp.eq.s32.totalorder %v1014, %v899
      %vm1061 = vcmp.eq.s32.totalorder %v1017, %v899
      %vm1062 = vcmp.eq.s32.totalorder %v1020, %v899
      %vm1063 = vcmp.eq.s32.totalorder %v1023, %v899
      %vm1064 = vcmp.eq.s32.totalorder %v1026, %v899
      %vm1065 = vcmp.eq.s32.totalorder %v1029, %v899
      %vm1066 = vcmp.eq.s32.totalorder %v1032, %v899
      %vm1067 = vcmp.eq.s32.totalorder %v1035, %v899
      %vm1068 = vcmp.eq.s32.totalorder %v1038, %v899
      %vm1069 = vcmp.eq.s32.totalorder %v1041, %v899
      %vm1070 = vcmp.eq.s32.totalorder %v1044, %v899
      %vm1071 = vcmp.eq.s32.totalorder %v1047, %v899
      %vm1072 = vcmp.eq.s32.totalorder %v1050, %v899
      %vm1073 = vcmp.eq.s32.totalorder %v1053, %v899
      %vm1074 = vcmp.eq.s32.totalorder %v1056, %v899
      %vm1075 = vcmp.eq.s32.totalorder %v1059, %v899
      %v1076 = vsel %vm1060, 1, 0
      %v1077 = vsel %vm1061, 1, 0
      %v1078 = vsel %vm1062, 1, 0
      %v1079 = vsel %vm1063, 1, 0
      %v1080 = vsel %vm1064, 1, 0
      %v1081 = vsel %vm1065, 1, 0
      %v1082 = vsel %vm1066, 1, 0
      %v1083 = vsel %vm1067, 1, 0
      %v1084 = vsel %vm1068, 1, 0
      %v1085 = vsel %vm1069, 1, 0
      %v1086 = vsel %vm1070, 1, 0
      %v1087 = vsel %vm1071, 1, 0
      %v1088 = vsel %vm1072, 1, 0
      %v1089 = vsel %vm1073, 1, 0
      %v1090 = vsel %vm1074, 1, 0
      %v1091 = vsel %vm1075, 1, 0
      %v1092 = vcvt.s32.f32 %v1076
      %v1093 = vcvt.s32.f32 %v1077
      %v1094 = vcvt.s32.f32 %v1078
      %v1095 = vcvt.s32.f32 %v1079
      %v1096 = vcvt.s32.f32 %v1080
      %v1097 = vcvt.s32.f32 %v1081
      %v1098 = vcvt.s32.f32 %v1082
      %v1099 = vcvt.s32.f32 %v1083
      %v1100 = vcvt.s32.f32 %v1084
      %v1101 = vcvt.s32.f32 %v1085
      %v1102 = vcvt.s32.f32 %v1086
      %v1103 = vcvt.s32.f32 %v1087
      %v1104 = vcvt.s32.f32 %v1088
      %v1105 = vcvt.s32.f32 %v1089
      %v1106 = vcvt.s32.f32 %v1090
      %v1107 = vcvt.s32.f32 %v1091
      %v1108 = vadd.f32 %v996, %v1092
      %v1109 = vadd.f32 %v997, %v1093
      %v1110 = vadd.f32 %v998, %v1094
      %v1111 = vadd.f32 %v999, %v1095
      %v1112 = vadd.f32 %v1000, %v1096
      %v1113 = vadd.f32 %v1001, %v1097
      %v1114 = vadd.f32 %v1002, %v1098
      %v1115 = vadd.f32 %v1003, %v1099
      %v1116 = vadd.f32 %v1004, %v1100
      %v1117 = vadd.f32 %v1005, %v1101
      %v1118 = vadd.f32 %v1006, %v1102
      %v1119 = vadd.f32 %v1007, %v1103
      %v1120 = vadd.f32 %v1008, %v1104
      %v1121 = vadd.f32 %v1009, %v1105
      %v1122 = vadd.f32 %v1010, %v1106
      %v1123 = vadd.f32 %v1011, %v1107
      %1124 = vset.pattern.permute.xlu0 2
      %1125 = vperm.xlu0 %1124, %v882
      %v1126 = vpop.permute.xlu0 %1125
      %1127 = vset.pattern.permute.xlu0 2
      %1128 = vperm.xlu0 %1127, %v883
      %v1129 = vpop.permute.xlu0 %1128
      %1130 = vset.pattern.permute.xlu0 2
      %1131 = vperm.xlu0 %1130, %v884
      %v1132 = vpop.permute.xlu0 %1131
      %1133 = vset.pattern.permute.xlu0 2
      %1134 = vperm.xlu0 %1133, %v885
      %v1135 = vpop.permute.xlu0 %1134
      %1136 = vset.pattern.permute.xlu0 2
      %1137 = vperm.xlu0 %1136, %v886
      %v1138 = vpop.permute.xlu0 %1137
      %1139 = vset.pattern.permute.xlu0 2
      %1140 = vperm.xlu0 %1139, %v887
      %v1141 = vpop.permute.xlu0 %1140
      %1142 = vset.pattern.permute.xlu0 2
      %1143 = vperm.xlu0 %1142, %v888
      %v1144 = vpop.permute.xlu0 %1143
      %1145 = vset.pattern.permute.xlu0 2
      %1146 = vperm.xlu0 %1145, %v889
      %v1147 = vpop.permute.xlu0 %1146
      %1148 = vset.pattern.permute.xlu0 2
      %1149 = vperm.xlu0 %1148, %v890
      %v1150 = vpop.permute.xlu0 %1149
      %1151 = vset.pattern.permute.xlu0 2
      %1152 = vperm.xlu0 %1151, %v891
      %v1153 = vpop.permute.xlu0 %1152
      %1154 = vset.pattern.permute.xlu0 2
      %1155 = vperm.xlu0 %1154, %v892
      %v1156 = vpop.permute.xlu0 %1155
      %1157 = vset.pattern.permute.xlu0 2
      %1158 = vperm.xlu0 %1157, %v893
      %v1159 = vpop.permute.xlu0 %1158
      %1160 = vset.pattern.permute.xlu0 2
      %1161 = vperm.xlu0 %1160, %v894
      %v1162 = vpop.permute.xlu0 %1161
      %1163 = vset.pattern.permute.xlu0 2
      %1164 = vperm.xlu0 %1163, %v895
      %v1165 = vpop.permute.xlu0 %1164
      %1166 = vset.pattern.permute.xlu0 2
      %1167 = vperm.xlu0 %1166, %v896
      %v1168 = vpop.permute.xlu0 %1167
      %1169 = vset.pattern.permute.xlu0 2
      %1170 = vperm.xlu0 %1169, %v897
      %v1171 = vpop.permute.xlu0 %1170
      %vm1172 = vcmp.eq.s32.totalorder %v1126, %v899
      %vm1173 = vcmp.eq.s32.totalorder %v1129, %v899
      %vm1174 = vcmp.eq.s32.totalorder %v1132, %v899
      %vm1175 = vcmp.eq.s32.totalorder %v1135, %v899
      %vm1176 = vcmp.eq.s32.totalorder %v1138, %v899
      %vm1177 = vcmp.eq.s32.totalorder %v1141, %v899
      %vm1178 = vcmp.eq.s32.totalorder %v1144, %v899
      %vm1179 = vcmp.eq.s32.totalorder %v1147, %v899
      %vm1180 = vcmp.eq.s32.totalorder %v1150, %v899
      %vm1181 = vcmp.eq.s32.totalorder %v1153, %v899
      %vm1182 = vcmp.eq.s32.totalorder %v1156, %v899
      %vm1183 = vcmp.eq.s32.totalorder %v1159, %v899
      %vm1184 = vcmp.eq.s32.totalorder %v1162, %v899
      %vm1185 = vcmp.eq.s32.totalorder %v1165, %v899
      %vm1186 = vcmp.eq.s32.totalorder %v1168, %v899
      %vm1187 = vcmp.eq.s32.totalorder %v1171, %v899
      %v1188 = vsel %vm1172, 1, 0
      %v1189 = vsel %vm1173, 1, 0
      %v1190 = vsel %vm1174, 1, 0
      %v1191 = vsel %vm1175, 1, 0
      %v1192 = vsel %vm1176, 1, 0
      %v1193 = vsel %vm1177, 1, 0
      %v1194 = vsel %vm1178, 1, 0
      %v1195 = vsel %vm1179, 1, 0
      %v1196 = vsel %vm1180, 1, 0
      %v1197 = vsel %vm1181, 1, 0
      %v1198 = vsel %vm1182, 1, 0
      %v1199 = vsel %vm1183, 1, 0
      %v1200 = vsel %vm1184, 1, 0
      %v1201 = vsel %vm1185, 1, 0
      %v1202 = vsel %vm1186, 1, 0
      %v1203 = vsel %vm1187, 1, 0
      %v1204 = vcvt.s32.f32 %v1188
      %v1205 = vcvt.s32.f32 %v1189
      %v1206 = vcvt.s32.f32 %v1190
      %v1207 = vcvt.s32.f32 %v1191
      %v1208 = vcvt.s32.f32 %v1192
      %v1209 = vcvt.s32.f32 %v1193
      %v1210 = vcvt.s32.f32 %v1194
      %v1211 = vcvt.s32.f32 %v1195
      %v1212 = vcvt.s32.f32 %v1196
      %v1213 = vcvt.s32.f32 %v1197
      %v1214 = vcvt.s32.f32 %v1198
      %v1215 = vcvt.s32.f32 %v1199
      %v1216 = vcvt.s32.f32 %v1200
      %v1217 = vcvt.s32.f32 %v1201
      %v1218 = vcvt.s32.f32 %v1202
      %v1219 = vcvt.s32.f32 %v1203
      %v1220 = vadd.f32 %v1108, %v1204
      %v1221 = vadd.f32 %v1109, %v1205
      %v1222 = vadd.f32 %v1110, %v1206
      %v1223 = vadd.f32 %v1111, %v1207
      %v1224 = vadd.f32 %v1112, %v1208
      %v1225 = vadd.f32 %v1113, %v1209
      %v1226 = vadd.f32 %v1114, %v1210
      %v1227 = vadd.f32 %v1115, %v1211
      %v1228 = vadd.f32 %v1116, %v1212
      %v1229 = vadd.f32 %v1117, %v1213
      %v1230 = vadd.f32 %v1118, %v1214
      %v1231 = vadd.f32 %v1119, %v1215
      %v1232 = vadd.f32 %v1120, %v1216
      %v1233 = vadd.f32 %v1121, %v1217
      %v1234 = vadd.f32 %v1122, %v1218
      %v1235 = vadd.f32 %v1123, %v1219
      %v1236 = vld [vmem:[%s8] sm:$0xff]
      %v1237 = vld [vmem:[%s8 + $0x8] sm:$0xff]
      %v1238 = vld [vmem:[%s8 + $0x10] sm:$0xff]
      %v1239 = vld [vmem:[%s8 + $0x18] sm:$0xff]
      %v1241 = vsel %vm752, %v1220, 0
      %v1244 = vsel %vm752, %v1221, 0
      %v1247 = vsel %vm752, %v1222, 0
      %v1250 = vsel %vm752, %v1223, 0
      %v1253 = vsel %vm752, %v1224, 0
      %v1256 = vsel %vm752, %v1225, 0
      %v1259 = vsel %vm752, %v1226, 0
      %v1262 = vsel %vm752, %v1227, 0
      %v1265 = vsel %vm752, %v1228, 0
      %v1268 = vsel %vm752, %v1229, 0
      %v1271 = vsel %vm752, %v1230, 0
      %v1274 = vsel %vm752, %v1231, 0
      %v1277 = vsel %vm752, %v1232, 0
      %v1280 = vsel %vm752, %v1233, 0
      %v1283 = vsel %vm752, %v1234, 0
      %v1286 = vsel %vm752, %v1235, 0
      %1288 = vmatpush.msra.mxu0 0.0
      %1289 = vmatpush.msra.mxu0 0.0
      %1290 = vmatpush.msra.mxu0 0.0
      %1291 = vmatpush.msra.mxu0 0.0
      %1292 = vmatpush.msra.mxu0 0.0
      %1293 = vmatpush.msra.mxu0 0.0
      %1294 = vmatpush.msra.mxu0 0.0
      %1295 = vmatpush.msra.mxu0 0.0
      %1296 = vmatpush.msra.mxu0 0.0
      %1297 = vmatpush.msra.mxu0 0.0
      %1298 = vmatpush.msra.mxu0 0.0
      %1299 = vmatpush.msra.mxu0 0.0
      %1300 = vmatpush.msra.mxu0 %v1239
      %1301 = vmatpush.msra.mxu0 %v1238
      %1302 = vmatpush.msra.mxu0 %v1237
      %1303 = vmatpush.msra.mxu0 %v1236
      %1304 = vmatmul.f32.gmra.mxu0 %v1241
      %v1305 = vpop.f32.mrf.mxu0
      %v1306 = vadd.f32 0.0, %v1305
      %1307 = vmatmul.f32.gmra.mxu0 %v1244
      %v1308 = vpop.f32.mrf.mxu0
      %v1309 = vadd.f32 0.0, %v1308
      %1310 = vmatmul.f32.gmra.mxu0 %v1247
      %v1311 = vpop.f32.mrf.mxu0
      %v1312 = vadd.f32 0.0, %v1311
      %1313 = vmatmul.f32.gmra.mxu0 %v1250
      %v1314 = vpop.f32.mrf.mxu0
      %v1315 = vadd.f32 0.0, %v1314
      %1316 = vmatmul.f32.gmra.mxu0 %v1253
      %v1317 = vpop.f32.mrf.mxu0
      %v1318 = vadd.f32 0.0, %v1317
      %1319 = vmatmul.f32.gmra.mxu0 %v1256
      %v1320 = vpop.f32.mrf.mxu0
      %v1321 = vadd.f32 0.0, %v1320
      %1322 = vmatmul.f32.gmra.mxu0 %v1259
      %v1323 = vpop.f32.mrf.mxu0
      %v1324 = vadd.f32 0.0, %v1323
      %1325 = vmatmul.f32.gmra.mxu0 %v1262
      %v1326 = vpop.f32.mrf.mxu0
      %v1327 = vadd.f32 0.0, %v1326
      %1328 = vmatmul.f32.gmra.mxu0 %v1265
      %v1329 = vpop.f32.mrf.mxu0
      %v1330 = vadd.f32 0.0, %v1329
      %1331 = vmatmul.f32.gmra.mxu0 %v1268
      %v1332 = vpop.f32.mrf.mxu0
      %v1333 = vadd.f32 0.0, %v1332
      %1334 = vmatmul.f32.gmra.mxu0 %v1271
      %v1335 = vpop.f32.mrf.mxu0
      %v1336 = vadd.f32 0.0, %v1335
      %1337 = vmatmul.f32.gmra.mxu0 %v1274
      %v1338 = vpop.f32.mrf.mxu0
      %v1339 = vadd.f32 0.0, %v1338
      %1340 = vmatmul.f32.gmra.mxu0 %v1277
      %v1341 = vpop.f32.mrf.mxu0
      %v1342 = vadd.f32 0.0, %v1341
      %1343 = vmatmul.f32.gmra.mxu0 %v1280
      %v1344 = vpop.f32.mrf.mxu0
      %v1345 = vadd.f32 0.0, %v1344
      %1346 = vmatmul.f32.gmra.mxu0 %v1283
      %v1347 = vpop.f32.mrf.mxu0
      %v1348 = vadd.f32 0.0, %v1347
      %1349 = vmatmul.f32.gmra.mxu0 %v1286
      %v1350 = vpop.f32.mrf.mxu0
      %v1351 = vadd.f32 0.0, %v1350
      %1352 = vdwg.mxu0
      %v1353 = vld [vmem:[%s573] sm:$0xff]
      %v1354 = vld [vmem:[%s573 + $0x8] sm:$0xff]
      %v1355 = vld [vmem:[%s573 + $0x10] sm:$0xff]
      %v1356 = vld [vmem:[%s573 + $0x18] sm:$0xff]
      %v1357 = vld [vmem:[%s573 + $0x20] sm:$0xff]
      %v1358 = vld [vmem:[%s573 + $0x28] sm:$0xff]
      %v1359 = vld [vmem:[%s573 + $0x30] sm:$0xff]
      %v1360 = vld [vmem:[%s573 + $0x38] sm:$0xff]
      %v1361 = vld [vmem:[%s573 + $0x40] sm:$0xff]
      %v1362 = vld [vmem:[%s573 + $0x48] sm:$0xff]
      %v1363 = vld [vmem:[%s573 + $0x50] sm:$0xff]
      %v1364 = vld [vmem:[%s573 + $0x58] sm:$0xff]
      %v1365 = vld [vmem:[%s573 + $0x60] sm:$0xff]
      %v1366 = vld [vmem:[%s573 + $0x68] sm:$0xff]
      %v1367 = vld [vmem:[%s573 + $0x70] sm:$0xff]
      %v1368 = vld [vmem:[%s573 + $0x78] sm:$0xff]
      %1369 = vset.pattern.permute.xlu0 0
      %1370 = vperm.xlu0 %1369, %v1353
      %v1371 = vpop.permute.xlu0 %1370
      %1372 = vset.pattern.permute.xlu0 0
      %1373 = vperm.xlu0 %1372, %v1354
      %v1374 = vpop.permute.xlu0 %1373
      %1375 = vset.pattern.permute.xlu0 0
      %1376 = vperm.xlu0 %1375, %v1355
      %v1377 = vpop.permute.xlu0 %1376
      %1378 = vset.pattern.permute.xlu0 0
      %1379 = vperm.xlu0 %1378, %v1356
      %v1380 = vpop.permute.xlu0 %1379
      %1381 = vset.pattern.permute.xlu0 0
      %1382 = vperm.xlu0 %1381, %v1357
      %v1383 = vpop.permute.xlu0 %1382
      %1384 = vset.pattern.permute.xlu0 0
      %1385 = vperm.xlu0 %1384, %v1358
      %v1386 = vpop.permute.xlu0 %1385
      %1387 = vset.pattern.permute.xlu0 0
      %1388 = vperm.xlu0 %1387, %v1359
      %v1389 = vpop.permute.xlu0 %1388
      %1390 = vset.pattern.permute.xlu0 0
      %1391 = vperm.xlu0 %1390, %v1360
      %v1392 = vpop.permute.xlu0 %1391
      %1393 = vset.pattern.permute.xlu0 0
      %1394 = vperm.xlu0 %1393, %v1361
      %v1395 = vpop.permute.xlu0 %1394
      %1396 = vset.pattern.permute.xlu0 0
      %1397 = vperm.xlu0 %1396, %v1362
      %v1398 = vpop.permute.xlu0 %1397
      %1399 = vset.pattern.permute.xlu0 0
      %1400 = vperm.xlu0 %1399, %v1363
      %v1401 = vpop.permute.xlu0 %1400
      %1402 = vset.pattern.permute.xlu0 0
      %1403 = vperm.xlu0 %1402, %v1364
      %v1404 = vpop.permute.xlu0 %1403
      %1405 = vset.pattern.permute.xlu0 0
      %1406 = vperm.xlu0 %1405, %v1365
      %v1407 = vpop.permute.xlu0 %1406
      %1408 = vset.pattern.permute.xlu0 0
      %1409 = vperm.xlu0 %1408, %v1366
      %v1410 = vpop.permute.xlu0 %1409
      %1411 = vset.pattern.permute.xlu0 0
      %1412 = vperm.xlu0 %1411, %v1367
      %v1413 = vpop.permute.xlu0 %1412
      %1414 = vset.pattern.permute.xlu0 0
      %1415 = vperm.xlu0 %1414, %v1368
      %v1416 = vpop.permute.xlu0 %1415
      %vm1417 = vcmp.eq.s32.totalorder %v1371, %v899
      %vm1418 = vcmp.eq.s32.totalorder %v1374, %v899
      %vm1419 = vcmp.eq.s32.totalorder %v1377, %v899
      %vm1420 = vcmp.eq.s32.totalorder %v1380, %v899
      %vm1421 = vcmp.eq.s32.totalorder %v1383, %v899
      %vm1422 = vcmp.eq.s32.totalorder %v1386, %v899
      %vm1423 = vcmp.eq.s32.totalorder %v1389, %v899
      %vm1424 = vcmp.eq.s32.totalorder %v1392, %v899
      %vm1425 = vcmp.eq.s32.totalorder %v1395, %v899
      %vm1426 = vcmp.eq.s32.totalorder %v1398, %v899
      %vm1427 = vcmp.eq.s32.totalorder %v1401, %v899
      %vm1428 = vcmp.eq.s32.totalorder %v1404, %v899
      %vm1429 = vcmp.eq.s32.totalorder %v1407, %v899
      %vm1430 = vcmp.eq.s32.totalorder %v1410, %v899
      %vm1431 = vcmp.eq.s32.totalorder %v1413, %v899
      %vm1432 = vcmp.eq.s32.totalorder %v1416, %v899
      %v1433 = vsel %vm1417, 1, 0
      %v1434 = vsel %vm1418, 1, 0
      %v1435 = vsel %vm1419, 1, 0
      %v1436 = vsel %vm1420, 1, 0
      %v1437 = vsel %vm1421, 1, 0
      %v1438 = vsel %vm1422, 1, 0
      %v1439 = vsel %vm1423, 1, 0
      %v1440 = vsel %vm1424, 1, 0
      %v1441 = vsel %vm1425, 1, 0
      %v1442 = vsel %vm1426, 1, 0
      %v1443 = vsel %vm1427, 1, 0
      %v1444 = vsel %vm1428, 1, 0
      %v1445 = vsel %vm1429, 1, 0
      %v1446 = vsel %vm1430, 1, 0
      %v1447 = vsel %vm1431, 1, 0
      %v1448 = vsel %vm1432, 1, 0
      %v1449 = vcvt.s32.f32 %v1433
      %v1450 = vcvt.s32.f32 %v1434
      %v1451 = vcvt.s32.f32 %v1435
      %v1452 = vcvt.s32.f32 %v1436
      %v1453 = vcvt.s32.f32 %v1437
      %v1454 = vcvt.s32.f32 %v1438
      %v1455 = vcvt.s32.f32 %v1439
      %v1456 = vcvt.s32.f32 %v1440
      %v1457 = vcvt.s32.f32 %v1441
      %v1458 = vcvt.s32.f32 %v1442
      %v1459 = vcvt.s32.f32 %v1443
      %v1460 = vcvt.s32.f32 %v1444
      %v1461 = vcvt.s32.f32 %v1445
      %v1462 = vcvt.s32.f32 %v1446
      %v1463 = vcvt.s32.f32 %v1447
      %v1464 = vcvt.s32.f32 %v1448
      %v1465 = vadd.f32 %v1449, 0.0
      %v1466 = vadd.f32 %v1450, 0.0
      %v1467 = vadd.f32 %v1451, 0.0
      %v1468 = vadd.f32 %v1452, 0.0
      %v1469 = vadd.f32 %v1453, 0.0
      %v1470 = vadd.f32 %v1454, 0.0
      %v1471 = vadd.f32 %v1455, 0.0
      %v1472 = vadd.f32 %v1456, 0.0
      %v1473 = vadd.f32 %v1457, 0.0
      %v1474 = vadd.f32 %v1458, 0.0
      %v1475 = vadd.f32 %v1459, 0.0
      %v1476 = vadd.f32 %v1460, 0.0
      %v1477 = vadd.f32 %v1461, 0.0
      %v1478 = vadd.f32 %v1462, 0.0
      %v1479 = vadd.f32 %v1463, 0.0
      %v1480 = vadd.f32 %v1464, 0.0
      %1481 = vset.pattern.permute.xlu0 1
      %1482 = vperm.xlu0 %1481, %v1353
      %v1483 = vpop.permute.xlu0 %1482
      %1484 = vset.pattern.permute.xlu0 1
      %1485 = vperm.xlu0 %1484, %v1354
      %v1486 = vpop.permute.xlu0 %1485
      %1487 = vset.pattern.permute.xlu0 1
      %1488 = vperm.xlu0 %1487, %v1355
      %v1489 = vpop.permute.xlu0 %1488
      %1490 = vset.pattern.permute.xlu0 1
      %1491 = vperm.xlu0 %1490, %v1356
      %v1492 = vpop.permute.xlu0 %1491
      %1493 = vset.pattern.permute.xlu0 1
      %1494 = vperm.xlu0 %1493, %v1357
      %v1495 = vpop.permute.xlu0 %1494
      %1496 = vset.pattern.permute.xlu0 1
      %1497 = vperm.xlu0 %1496, %v1358
      %v1498 = vpop.permute.xlu0 %1497
      %1499 = vset.pattern.permute.xlu0 1
      %1500 = vperm.xlu0 %1499, %v1359
      %v1501 = vpop.permute.xlu0 %1500
      %1502 = vset.pattern.permute.xlu0 1
      %1503 = vperm.xlu0 %1502, %v1360
      %v1504 = vpop.permute.xlu0 %1503
      %1505 = vset.pattern.permute.xlu0 1
      %1506 = vperm.xlu0 %1505, %v1361
      %v1507 = vpop.permute.xlu0 %1506
      %1508 = vset.pattern.permute.xlu0 1
      %1509 = vperm.xlu0 %1508, %v1362
      %v1510 = vpop.permute.xlu0 %1509
      %1511 = vset.pattern.permute.xlu0 1
      %1512 = vperm.xlu0 %1511, %v1363
      %v1513 = vpop.permute.xlu0 %1512
      %1514 = vset.pattern.permute.xlu0 1
      %1515 = vperm.xlu0 %1514, %v1364
      %v1516 = vpop.permute.xlu0 %1515
      %1517 = vset.pattern.permute.xlu0 1
      %1518 = vperm.xlu0 %1517, %v1365
      %v1519 = vpop.permute.xlu0 %1518
      %1520 = vset.pattern.permute.xlu0 1
      %1521 = vperm.xlu0 %1520, %v1366
      %v1522 = vpop.permute.xlu0 %1521
      %1523 = vset.pattern.permute.xlu0 1
      %1524 = vperm.xlu0 %1523, %v1367
      %v1525 = vpop.permute.xlu0 %1524
      %1526 = vset.pattern.permute.xlu0 1
      %1527 = vperm.xlu0 %1526, %v1368
      %v1528 = vpop.permute.xlu0 %1527
      %vm1529 = vcmp.eq.s32.totalorder %v1483, %v899
      %vm1530 = vcmp.eq.s32.totalorder %v1486, %v899
      %vm1531 = vcmp.eq.s32.totalorder %v1489, %v899
      %vm1532 = vcmp.eq.s32.totalorder %v1492, %v899
      %vm1533 = vcmp.eq.s32.totalorder %v1495, %v899
      %vm1534 = vcmp.eq.s32.totalorder %v1498, %v899
      %vm1535 = vcmp.eq.s32.totalorder %v1501, %v899
      %vm1536 = vcmp.eq.s32.totalorder %v1504, %v899
      %vm1537 = vcmp.eq.s32.totalorder %v1507, %v899
      %vm1538 = vcmp.eq.s32.totalorder %v1510, %v899
      %vm1539 = vcmp.eq.s32.totalorder %v1513, %v899
      %vm1540 = vcmp.eq.s32.totalorder %v1516, %v899
      %vm1541 = vcmp.eq.s32.totalorder %v1519, %v899
      %vm1542 = vcmp.eq.s32.totalorder %v1522, %v899
      %vm1543 = vcmp.eq.s32.totalorder %v1525, %v899
      %vm1544 = vcmp.eq.s32.totalorder %v1528, %v899
      %v1545 = vsel %vm1529, 1, 0
      %v1546 = vsel %vm1530, 1, 0
      %v1547 = vsel %vm1531, 1, 0
      %v1548 = vsel %vm1532, 1, 0
      %v1549 = vsel %vm1533, 1, 0
      %v1550 = vsel %vm1534, 1, 0
      %v1551 = vsel %vm1535, 1, 0
      %v1552 = vsel %vm1536, 1, 0
      %v1553 = vsel %vm1537, 1, 0
      %v1554 = vsel %vm1538, 1, 0
      %v1555 = vsel %vm1539, 1, 0
      %v1556 = vsel %vm1540, 1, 0
      %v1557 = vsel %vm1541, 1, 0
      %v1558 = vsel %vm1542, 1, 0
      %v1559 = vsel %vm1543, 1, 0
      %v1560 = vsel %vm1544, 1, 0
      %v1561 = vcvt.s32.f32 %v1545
      %v1562 = vcvt.s32.f32 %v1546
      %v1563 = vcvt.s32.f32 %v1547
      %v1564 = vcvt.s32.f32 %v1548
      %v1565 = vcvt.s32.f32 %v1549
      %v1566 = vcvt.s32.f32 %v1550
      %v1567 = vcvt.s32.f32 %v1551
      %v1568 = vcvt.s32.f32 %v1552
      %v1569 = vcvt.s32.f32 %v1553
      %v1570 = vcvt.s32.f32 %v1554
      %v1571 = vcvt.s32.f32 %v1555
      %v1572 = vcvt.s32.f32 %v1556
      %v1573 = vcvt.s32.f32 %v1557
      %v1574 = vcvt.s32.f32 %v1558
      %v1575 = vcvt.s32.f32 %v1559
      %v1576 = vcvt.s32.f32 %v1560
      %v1577 = vadd.f32 %v1465, %v1561
      %v1578 = vadd.f32 %v1466, %v1562
      %v1579 = vadd.f32 %v1467, %v1563
      %v1580 = vadd.f32 %v1468, %v1564
      %v1581 = vadd.f32 %v1469, %v1565
      %v1582 = vadd.f32 %v1470, %v1566
      %v1583 = vadd.f32 %v1471, %v1567
      %v1584 = vadd.f32 %v1472, %v1568
      %v1585 = vadd.f32 %v1473, %v1569
      %v1586 = vadd.f32 %v1474, %v1570
      %v1587 = vadd.f32 %v1475, %v1571
      %v1588 = vadd.f32 %v1476, %v1572
      %v1589 = vadd.f32 %v1477, %v1573
      %v1590 = vadd.f32 %v1478, %v1574
      %v1591 = vadd.f32 %v1479, %v1575
      %v1592 = vadd.f32 %v1480, %v1576
      %1593 = vset.pattern.permute.xlu0 2
      %1594 = vperm.xlu0 %1593, %v1353
      %v1595 = vpop.permute.xlu0 %1594
      %1596 = vset.pattern.permute.xlu0 2
      %1597 = vperm.xlu0 %1596, %v1354
      %v1598 = vpop.permute.xlu0 %1597
      %1599 = vset.pattern.permute.xlu0 2
      %1600 = vperm.xlu0 %1599, %v1355
      %v1601 = vpop.permute.xlu0 %1600
      %1602 = vset.pattern.permute.xlu0 2
      %1603 = vperm.xlu0 %1602, %v1356
      %v1604 = vpop.permute.xlu0 %1603
      %1605 = vset.pattern.permute.xlu0 2
      %1606 = vperm.xlu0 %1605, %v1357
      %v1607 = vpop.permute.xlu0 %1606
      %1608 = vset.pattern.permute.xlu0 2
      %1609 = vperm.xlu0 %1608, %v1358
      %v1610 = vpop.permute.xlu0 %1609
      %1611 = vset.pattern.permute.xlu0 2
      %1612 = vperm.xlu0 %1611, %v1359
      %v1613 = vpop.permute.xlu0 %1612
      %1614 = vset.pattern.permute.xlu0 2
      %1615 = vperm.xlu0 %1614, %v1360
      %v1616 = vpop.permute.xlu0 %1615
      %1617 = vset.pattern.permute.xlu0 2
      %1618 = vperm.xlu0 %1617, %v1361
      %v1619 = vpop.permute.xlu0 %1618
      %1620 = vset.pattern.permute.xlu0 2
      %1621 = vperm.xlu0 %1620, %v1362
      %v1622 = vpop.permute.xlu0 %1621
      %1623 = vset.pattern.permute.xlu0 2
      %1624 = vperm.xlu0 %1623, %v1363
      %v1625 = vpop.permute.xlu0 %1624
      %1626 = vset.pattern.permute.xlu0 2
      %1627 = vperm.xlu0 %1626, %v1364
      %v1628 = vpop.permute.xlu0 %1627
      %1629 = vset.pattern.permute.xlu0 2
      %1630 = vperm.xlu0 %1629, %v1365
      %v1631 = vpop.permute.xlu0 %1630
      %1632 = vset.pattern.permute.xlu0 2
      %1633 = vperm.xlu0 %1632, %v1366
      %v1634 = vpop.permute.xlu0 %1633
      %1635 = vset.pattern.permute.xlu0 2
      %1636 = vperm.xlu0 %1635, %v1367
      %v1637 = vpop.permute.xlu0 %1636
      %1638 = vset.pattern.permute.xlu0 2
      %1639 = vperm.xlu0 %1638, %v1368
      %v1640 = vpop.permute.xlu0 %1639
      %vm1641 = vcmp.eq.s32.totalorder %v1595, %v899
      %vm1642 = vcmp.eq.s32.totalorder %v1598, %v899
      %vm1643 = vcmp.eq.s32.totalorder %v1601, %v899
      %vm1644 = vcmp.eq.s32.totalorder %v1604, %v899
      %vm1645 = vcmp.eq.s32.totalorder %v1607, %v899
      %vm1646 = vcmp.eq.s32.totalorder %v1610, %v899
      %vm1647 = vcmp.eq.s32.totalorder %v1613, %v899
      %vm1648 = vcmp.eq.s32.totalorder %v1616, %v899
      %vm1649 = vcmp.eq.s32.totalorder %v1619, %v899
      %vm1650 = vcmp.eq.s32.totalorder %v1622, %v899
      %vm1651 = vcmp.eq.s32.totalorder %v1625, %v899
      %vm1652 = vcmp.eq.s32.totalorder %v1628, %v899
      %vm1653 = vcmp.eq.s32.totalorder %v1631, %v899
      %vm1654 = vcmp.eq.s32.totalorder %v1634, %v899
      %vm1655 = vcmp.eq.s32.totalorder %v1637, %v899
      %vm1656 = vcmp.eq.s32.totalorder %v1640, %v899
      %v1657 = vsel %vm1641, 1, 0
      %v1658 = vsel %vm1642, 1, 0
      %v1659 = vsel %vm1643, 1, 0
      %v1660 = vsel %vm1644, 1, 0
      %v1661 = vsel %vm1645, 1, 0
      %v1662 = vsel %vm1646, 1, 0
      %v1663 = vsel %vm1647, 1, 0
      %v1664 = vsel %vm1648, 1, 0
      %v1665 = vsel %vm1649, 1, 0
      %v1666 = vsel %vm1650, 1, 0
      %v1667 = vsel %vm1651, 1, 0
      %v1668 = vsel %vm1652, 1, 0
      %v1669 = vsel %vm1653, 1, 0
      %v1670 = vsel %vm1654, 1, 0
      %v1671 = vsel %vm1655, 1, 0
      %v1672 = vsel %vm1656, 1, 0
      %v1673 = vcvt.s32.f32 %v1657
      %v1674 = vcvt.s32.f32 %v1658
      %v1675 = vcvt.s32.f32 %v1659
      %v1676 = vcvt.s32.f32 %v1660
      %v1677 = vcvt.s32.f32 %v1661
      %v1678 = vcvt.s32.f32 %v1662
      %v1679 = vcvt.s32.f32 %v1663
      %v1680 = vcvt.s32.f32 %v1664
      %v1681 = vcvt.s32.f32 %v1665
      %v1682 = vcvt.s32.f32 %v1666
      %v1683 = vcvt.s32.f32 %v1667
      %v1684 = vcvt.s32.f32 %v1668
      %v1685 = vcvt.s32.f32 %v1669
      %v1686 = vcvt.s32.f32 %v1670
      %v1687 = vcvt.s32.f32 %v1671
      %v1688 = vcvt.s32.f32 %v1672
      %v1689 = vadd.f32 %v1577, %v1673
      %v1690 = vadd.f32 %v1578, %v1674
      %v1691 = vadd.f32 %v1579, %v1675
      %v1692 = vadd.f32 %v1580, %v1676
      %v1693 = vadd.f32 %v1581, %v1677
      %v1694 = vadd.f32 %v1582, %v1678
      %v1695 = vadd.f32 %v1583, %v1679
      %v1696 = vadd.f32 %v1584, %v1680
      %v1697 = vadd.f32 %v1585, %v1681
      %v1698 = vadd.f32 %v1586, %v1682
      %v1699 = vadd.f32 %v1587, %v1683
      %v1700 = vadd.f32 %v1588, %v1684
      %v1701 = vadd.f32 %v1589, %v1685
      %v1702 = vadd.f32 %v1590, %v1686
      %v1703 = vadd.f32 %v1591, %v1687
      %v1704 = vadd.f32 %v1592, %v1688
      %v1705 = vld [vmem:[%s9] sm:$0xff]
      %v1706 = vld [vmem:[%s9 + $0x8] sm:$0xff]
      %v1707 = vld [vmem:[%s9 + $0x10] sm:$0xff]
      %v1708 = vld [vmem:[%s9 + $0x18] sm:$0xff]
      %v1709 = vld [vmem:[%s9 + $0x20] sm:$0xff]
      %v1710 = vld [vmem:[%s9 + $0x28] sm:$0xff]
      %vm1711 = vcmask 392192
      %v1713 = vsel %vm1711, %v1689, 0
      %v1716 = vsel %vm1711, %v1690, 0
      %v1719 = vsel %vm1711, %v1691, 0
      %v1722 = vsel %vm1711, %v1692, 0
      %v1725 = vsel %vm1711, %v1693, 0
      %v1728 = vsel %vm1711, %v1694, 0
      %v1731 = vsel %vm1711, %v1695, 0
      %v1734 = vsel %vm1711, %v1696, 0
      %v1737 = vsel %vm1711, %v1697, 0
      %v1740 = vsel %vm1711, %v1698, 0
      %v1743 = vsel %vm1711, %v1699, 0
      %v1746 = vsel %vm1711, %v1700, 0
      %v1749 = vsel %vm1711, %v1701, 0
      %v1752 = vsel %vm1711, %v1702, 0
      %v1755 = vsel %vm1711, %v1703, 0
      %v1758 = vsel %vm1711, %v1704, 0
      %1760 = vmatpush.msra.mxu0 0.0
      %1761 = vmatpush.msra.mxu0 0.0
      %1762 = vmatpush.msra.mxu0 0.0
      %1763 = vmatpush.msra.mxu0 0.0
      %1764 = vmatpush.msra.mxu0 0.0
      %1765 = vmatpush.msra.mxu0 0.0
      %1766 = vmatpush.msra.mxu0 0.0
      %1767 = vmatpush.msra.mxu0 0.0
      %1768 = vmatpush.msra.mxu0 0.0
      %1769 = vmatpush.msra.mxu0 0.0
      %1770 = vmatpush.msra.mxu0 %v1710
      %1771 = vmatpush.msra.mxu0 %v1709
      %1772 = vmatpush.msra.mxu0 %v1708
      %1773 = vmatpush.msra.mxu0 %v1707
      %1774 = vmatpush.msra.mxu0 %v1706
      %1775 = vmatpush.msra.mxu0 %v1705
      %1776 = vmatmul.f32.gmra.mxu0 %v1713
      %v1777 = vpop.f32.mrf.mxu0
      %v1778 = vadd.f32 0.0, %v1777
      %1779 = vmatmul.f32.gmra.mxu0 %v1716
      %v1780 = vpop.f32.mrf.mxu0
      %v1781 = vadd.f32 0.0, %v1780
      %1782 = vmatmul.f32.gmra.mxu0 %v1719
      %v1783 = vpop.f32.mrf.mxu0
      %v1784 = vadd.f32 0.0, %v1783
      %1785 = vmatmul.f32.gmra.mxu0 %v1722
      %v1786 = vpop.f32.mrf.mxu0
      %v1787 = vadd.f32 0.0, %v1786
      %1788 = vmatmul.f32.gmra.mxu0 %v1725
      %v1789 = vpop.f32.mrf.mxu0
      %v1790 = vadd.f32 0.0, %v1789
      %1791 = vmatmul.f32.gmra.mxu0 %v1728
      %v1792 = vpop.f32.mrf.mxu0
      %v1793 = vadd.f32 0.0, %v1792
      %1794 = vmatmul.f32.gmra.mxu0 %v1731
      %v1795 = vpop.f32.mrf.mxu0
      %v1796 = vadd.f32 0.0, %v1795
      %1797 = vmatmul.f32.gmra.mxu0 %v1734
      %v1798 = vpop.f32.mrf.mxu0
      %v1799 = vadd.f32 0.0, %v1798
      %1800 = vmatmul.f32.gmra.mxu0 %v1737
      %v1801 = vpop.f32.mrf.mxu0
      %v1802 = vadd.f32 0.0, %v1801
      %1803 = vmatmul.f32.gmra.mxu0 %v1740
      %v1804 = vpop.f32.mrf.mxu0
      %v1805 = vadd.f32 0.0, %v1804
      %1806 = vmatmul.f32.gmra.mxu0 %v1743
      %v1807 = vpop.f32.mrf.mxu0
      %v1808 = vadd.f32 0.0, %v1807
      %1809 = vmatmul.f32.gmra.mxu0 %v1746
      %v1810 = vpop.f32.mrf.mxu0
      %v1811 = vadd.f32 0.0, %v1810
      %1812 = vmatmul.f32.gmra.mxu0 %v1749
      %v1813 = vpop.f32.mrf.mxu0
      %v1814 = vadd.f32 0.0, %v1813
      %1815 = vmatmul.f32.gmra.mxu0 %v1752
      %v1816 = vpop.f32.mrf.mxu0
      %v1817 = vadd.f32 0.0, %v1816
      %1818 = vmatmul.f32.gmra.mxu0 %v1755
      %v1819 = vpop.f32.mrf.mxu0
      %v1820 = vadd.f32 0.0, %v1819
      %1821 = vmatmul.f32.gmra.mxu0 %v1758
      %v1822 = vpop.f32.mrf.mxu0
      %v1823 = vadd.f32 0.0, %v1822
      %1824 = vdwg.mxu0
      %v1825 = vld [vmem:[%s579] sm:$0xff]
      %v1826 = vld [vmem:[%s579 + $0x8] sm:$0xff]
      %v1827 = vld [vmem:[%s579 + $0x10] sm:$0xff]
      %v1828 = vld [vmem:[%s579 + $0x18] sm:$0xff]
      %v1829 = vld [vmem:[%s579 + $0x20] sm:$0xff]
      %v1830 = vld [vmem:[%s579 + $0x28] sm:$0xff]
      %v1831 = vld [vmem:[%s579 + $0x30] sm:$0xff]
      %v1832 = vld [vmem:[%s579 + $0x38] sm:$0xff]
      %v1833 = vld [vmem:[%s579 + $0x40] sm:$0xff]
      %v1834 = vld [vmem:[%s579 + $0x48] sm:$0xff]
      %v1835 = vld [vmem:[%s579 + $0x50] sm:$0xff]
      %v1836 = vld [vmem:[%s579 + $0x58] sm:$0xff]
      %v1837 = vld [vmem:[%s579 + $0x60] sm:$0xff]
      %v1838 = vld [vmem:[%s579 + $0x68] sm:$0xff]
      %v1839 = vld [vmem:[%s579 + $0x70] sm:$0xff]
      %v1840 = vld [vmem:[%s579 + $0x78] sm:$0xff]
      %1841 = vset.pattern.permute.xlu0 0
      %1842 = vperm.xlu0 %1841, %v1825
      %v1843 = vpop.permute.xlu0 %1842
      %1844 = vset.pattern.permute.xlu0 0
      %1845 = vperm.xlu0 %1844, %v1826
      %v1846 = vpop.permute.xlu0 %1845
      %1847 = vset.pattern.permute.xlu0 0
      %1848 = vperm.xlu0 %1847, %v1827
      %v1849 = vpop.permute.xlu0 %1848
      %1850 = vset.pattern.permute.xlu0 0
      %1851 = vperm.xlu0 %1850, %v1828
      %v1852 = vpop.permute.xlu0 %1851
      %1853 = vset.pattern.permute.xlu0 0
      %1854 = vperm.xlu0 %1853, %v1829
      %v1855 = vpop.permute.xlu0 %1854
      %1856 = vset.pattern.permute.xlu0 0
      %1857 = vperm.xlu0 %1856, %v1830
      %v1858 = vpop.permute.xlu0 %1857
      %1859 = vset.pattern.permute.xlu0 0
      %1860 = vperm.xlu0 %1859, %v1831
      %v1861 = vpop.permute.xlu0 %1860
      %1862 = vset.pattern.permute.xlu0 0
      %1863 = vperm.xlu0 %1862, %v1832
      %v1864 = vpop.permute.xlu0 %1863
      %1865 = vset.pattern.permute.xlu0 0
      %1866 = vperm.xlu0 %1865, %v1833
      %v1867 = vpop.permute.xlu0 %1866
      %1868 = vset.pattern.permute.xlu0 0
      %1869 = vperm.xlu0 %1868, %v1834
      %v1870 = vpop.permute.xlu0 %1869
      %1871 = vset.pattern.permute.xlu0 0
      %1872 = vperm.xlu0 %1871, %v1835
      %v1873 = vpop.permute.xlu0 %1872
      %1874 = vset.pattern.permute.xlu0 0
      %1875 = vperm.xlu0 %1874, %v1836
      %v1876 = vpop.permute.xlu0 %1875
      %1877 = vset.pattern.permute.xlu0 0
      %1878 = vperm.xlu0 %1877, %v1837
      %v1879 = vpop.permute.xlu0 %1878
      %1880 = vset.pattern.permute.xlu0 0
      %1881 = vperm.xlu0 %1880, %v1838
      %v1882 = vpop.permute.xlu0 %1881
      %1883 = vset.pattern.permute.xlu0 0
      %1884 = vperm.xlu0 %1883, %v1839
      %v1885 = vpop.permute.xlu0 %1884
      %1886 = vset.pattern.permute.xlu0 0
      %1887 = vperm.xlu0 %1886, %v1840
      %v1888 = vpop.permute.xlu0 %1887
      %vm1889 = vcmp.eq.s32.totalorder %v1843, %v899
      %vm1890 = vcmp.eq.s32.totalorder %v1846, %v899
      %vm1891 = vcmp.eq.s32.totalorder %v1849, %v899
      %vm1892 = vcmp.eq.s32.totalorder %v1852, %v899
      %vm1893 = vcmp.eq.s32.totalorder %v1855, %v899
      %vm1894 = vcmp.eq.s32.totalorder %v1858, %v899
      %vm1895 = vcmp.eq.s32.totalorder %v1861, %v899
      %vm1896 = vcmp.eq.s32.totalorder %v1864, %v899
      %vm1897 = vcmp.eq.s32.totalorder %v1867, %v899
      %vm1898 = vcmp.eq.s32.totalorder %v1870, %v899
      %vm1899 = vcmp.eq.s32.totalorder %v1873, %v899
      %vm1900 = vcmp.eq.s32.totalorder %v1876, %v899
      %vm1901 = vcmp.eq.s32.totalorder %v1879, %v899
      %vm1902 = vcmp.eq.s32.totalorder %v1882, %v899
      %vm1903 = vcmp.eq.s32.totalorder %v1885, %v899
      %vm1904 = vcmp.eq.s32.totalorder %v1888, %v899
      %v1905 = vsel %vm1889, 1, 0
      %v1906 = vsel %vm1890, 1, 0
      %v1907 = vsel %vm1891, 1, 0
      %v1908 = vsel %vm1892, 1, 0
      %v1909 = vsel %vm1893, 1, 0
      %v1910 = vsel %vm1894, 1, 0
      %v1911 = vsel %vm1895, 1, 0
      %v1912 = vsel %vm1896, 1, 0
      %v1913 = vsel %vm1897, 1, 0
      %v1914 = vsel %vm1898, 1, 0
      %v1915 = vsel %vm1899, 1, 0
      %v1916 = vsel %vm1900, 1, 0
      %v1917 = vsel %vm1901, 1, 0
      %v1918 = vsel %vm1902, 1, 0
      %v1919 = vsel %vm1903, 1, 0
      %v1920 = vsel %vm1904, 1, 0
      %v1921 = vcvt.s32.f32 %v1905
      %v1922 = vcvt.s32.f32 %v1906
      %v1923 = vcvt.s32.f32 %v1907
      %v1924 = vcvt.s32.f32 %v1908
      %v1925 = vcvt.s32.f32 %v1909
      %v1926 = vcvt.s32.f32 %v1910
      %v1927 = vcvt.s32.f32 %v1911
      %v1928 = vcvt.s32.f32 %v1912
      %v1929 = vcvt.s32.f32 %v1913
      %v1930 = vcvt.s32.f32 %v1914
      %v1931 = vcvt.s32.f32 %v1915
      %v1932 = vcvt.s32.f32 %v1916
      %v1933 = vcvt.s32.f32 %v1917
      %v1934 = vcvt.s32.f32 %v1918
      %v1935 = vcvt.s32.f32 %v1919
      %v1936 = vcvt.s32.f32 %v1920
      %v1937 = vadd.f32 %v1921, 0.0
      %v1938 = vadd.f32 %v1922, 0.0
      %v1939 = vadd.f32 %v1923, 0.0
      %v1940 = vadd.f32 %v1924, 0.0
      %v1941 = vadd.f32 %v1925, 0.0
      %v1942 = vadd.f32 %v1926, 0.0
      %v1943 = vadd.f32 %v1927, 0.0
      %v1944 = vadd.f32 %v1928, 0.0
      %v1945 = vadd.f32 %v1929, 0.0
      %v1946 = vadd.f32 %v1930, 0.0
      %v1947 = vadd.f32 %v1931, 0.0
      %v1948 = vadd.f32 %v1932, 0.0
      %v1949 = vadd.f32 %v1933, 0.0
      %v1950 = vadd.f32 %v1934, 0.0
      %v1951 = vadd.f32 %v1935, 0.0
      %v1952 = vadd.f32 %v1936, 0.0
      %1953 = vset.pattern.permute.xlu0 1
      %1954 = vperm.xlu0 %1953, %v1825
      %v1955 = vpop.permute.xlu0 %1954
      %1956 = vset.pattern.permute.xlu0 1
      %1957 = vperm.xlu0 %1956, %v1826
      %v1958 = vpop.permute.xlu0 %1957
      %1959 = vset.pattern.permute.xlu0 1
      %1960 = vperm.xlu0 %1959, %v1827
      %v1961 = vpop.permute.xlu0 %1960
      %1962 = vset.pattern.permute.xlu0 1
      %1963 = vperm.xlu0 %1962, %v1828
      %v1964 = vpop.permute.xlu0 %1963
      %1965 = vset.pattern.permute.xlu0 1
      %1966 = vperm.xlu0 %1965, %v1829
      %v1967 = vpop.permute.xlu0 %1966
      %1968 = vset.pattern.permute.xlu0 1
      %1969 = vperm.xlu0 %1968, %v1830
      %v1970 = vpop.permute.xlu0 %1969
      %1971 = vset.pattern.permute.xlu0 1
      %1972 = vperm.xlu0 %1971, %v1831
      %v1973 = vpop.permute.xlu0 %1972
      %1974 = vset.pattern.permute.xlu0 1
      %1975 = vperm.xlu0 %1974, %v1832
      %v1976 = vpop.permute.xlu0 %1975
      %1977 = vset.pattern.permute.xlu0 1
      %1978 = vperm.xlu0 %1977, %v1833
      %v1979 = vpop.permute.xlu0 %1978
      %1980 = vset.pattern.permute.xlu0 1
      %1981 = vperm.xlu0 %1980, %v1834
      %v1982 = vpop.permute.xlu0 %1981
      %1983 = vset.pattern.permute.xlu0 1
      %1984 = vperm.xlu0 %1983, %v1835
      %v1985 = vpop.permute.xlu0 %1984
      %1986 = vset.pattern.permute.xlu0 1
      %1987 = vperm.xlu0 %1986, %v1836
      %v1988 = vpop.permute.xlu0 %1987
      %1989 = vset.pattern.permute.xlu0 1
      %1990 = vperm.xlu0 %1989, %v1837
      %v1991 = vpop.permute.xlu0 %1990
      %1992 = vset.pattern.permute.xlu0 1
      %1993 = vperm.xlu0 %1992, %v1838
      %v1994 = vpop.permute.xlu0 %1993
      %1995 = vset.pattern.permute.xlu0 1
      %1996 = vperm.xlu0 %1995, %v1839
      %v1997 = vpop.permute.xlu0 %1996
      %1998 = vset.pattern.permute.xlu0 1
      %1999 = vperm.xlu0 %1998, %v1840
      %v2000 = vpop.permute.xlu0 %1999
      %vm2001 = vcmp.eq.s32.totalorder %v1955, %v899
      %vm2002 = vcmp.eq.s32.totalorder %v1958, %v899
      %vm2003 = vcmp.eq.s32.totalorder %v1961, %v899
      %vm2004 = vcmp.eq.s32.totalorder %v1964, %v899
      %vm2005 = vcmp.eq.s32.totalorder %v1967, %v899
      %vm2006 = vcmp.eq.s32.totalorder %v1970, %v899
      %vm2007 = vcmp.eq.s32.totalorder %v1973, %v899
      %vm2008 = vcmp.eq.s32.totalorder %v1976, %v899
      %vm2009 = vcmp.eq.s32.totalorder %v1979, %v899
      %vm2010 = vcmp.eq.s32.totalorder %v1982, %v899
      %vm2011 = vcmp.eq.s32.totalorder %v1985, %v899
      %vm2012 = vcmp.eq.s32.totalorder %v1988, %v899
      %vm2013 = vcmp.eq.s32.totalorder %v1991, %v899
      %vm2014 = vcmp.eq.s32.totalorder %v1994, %v899
      %vm2015 = vcmp.eq.s32.totalorder %v1997, %v899
      %vm2016 = vcmp.eq.s32.totalorder %v2000, %v899
      %v2017 = vsel %vm2001, 1, 0
      %v2018 = vsel %vm2002, 1, 0
      %v2019 = vsel %vm2003, 1, 0
      %v2020 = vsel %vm2004, 1, 0
      %v2021 = vsel %vm2005, 1, 0
      %v2022 = vsel %vm2006, 1, 0
      %v2023 = vsel %vm2007, 1, 0
      %v2024 = vsel %vm2008, 1, 0
      %v2025 = vsel %vm2009, 1, 0
      %v2026 = vsel %vm2010, 1, 0
      %v2027 = vsel %vm2011, 1, 0
      %v2028 = vsel %vm2012, 1, 0
      %v2029 = vsel %vm2013, 1, 0
      %v2030 = vsel %vm2014, 1, 0
      %v2031 = vsel %vm2015, 1, 0
      %v2032 = vsel %vm2016, 1, 0
      %v2033 = vcvt.s32.f32 %v2017
      %v2034 = vcvt.s32.f32 %v2018
      %v2035 = vcvt.s32.f32 %v2019
      %v2036 = vcvt.s32.f32 %v2020
      %v2037 = vcvt.s32.f32 %v2021
      %v2038 = vcvt.s32.f32 %v2022
      %v2039 = vcvt.s32.f32 %v2023
      %v2040 = vcvt.s32.f32 %v2024
      %v2041 = vcvt.s32.f32 %v2025
      %v2042 = vcvt.s32.f32 %v2026
      %v2043 = vcvt.s32.f32 %v2027
      %v2044 = vcvt.s32.f32 %v2028
      %v2045 = vcvt.s32.f32 %v2029
      %v2046 = vcvt.s32.f32 %v2030
      %v2047 = vcvt.s32.f32 %v2031
      %v2048 = vcvt.s32.f32 %v2032
      %v2049 = vadd.f32 %v1937, %v2033
      %v2050 = vadd.f32 %v1938, %v2034
      %v2051 = vadd.f32 %v1939, %v2035
      %v2052 = vadd.f32 %v1940, %v2036
      %v2053 = vadd.f32 %v1941, %v2037
      %v2054 = vadd.f32 %v1942, %v2038
      %v2055 = vadd.f32 %v1943, %v2039
      %v2056 = vadd.f32 %v1944, %v2040
      %v2057 = vadd.f32 %v1945, %v2041
      %v2058 = vadd.f32 %v1946, %v2042
      %v2059 = vadd.f32 %v1947, %v2043
      %v2060 = vadd.f32 %v1948, %v2044
      %v2061 = vadd.f32 %v1949, %v2045
      %v2062 = vadd.f32 %v1950, %v2046
      %v2063 = vadd.f32 %v1951, %v2047
      %v2064 = vadd.f32 %v1952, %v2048
      %2065 = vset.pattern.permute.xlu0 2
      %2066 = vperm.xlu0 %2065, %v1825
      %v2067 = vpop.permute.xlu0 %2066
      %2068 = vset.pattern.permute.xlu0 2
      %2069 = vperm.xlu0 %2068, %v1826
      %v2070 = vpop.permute.xlu0 %2069
      %2071 = vset.pattern.permute.xlu0 2
      %2072 = vperm.xlu0 %2071, %v1827
      %v2073 = vpop.permute.xlu0 %2072
      %2074 = vset.pattern.permute.xlu0 2
      %2075 = vperm.xlu0 %2074, %v1828
      %v2076 = vpop.permute.xlu0 %2075
      %2077 = vset.pattern.permute.xlu0 2
      %2078 = vperm.xlu0 %2077, %v1829
      %v2079 = vpop.permute.xlu0 %2078
      %2080 = vset.pattern.permute.xlu0 2
      %2081 = vperm.xlu0 %2080, %v1830
      %v2082 = vpop.permute.xlu0 %2081
      %2083 = vset.pattern.permute.xlu0 2
      %2084 = vperm.xlu0 %2083, %v1831
      %v2085 = vpop.permute.xlu0 %2084
      %2086 = vset.pattern.permute.xlu0 2
      %2087 = vperm.xlu0 %2086, %v1832
      %v2088 = vpop.permute.xlu0 %2087
      %2089 = vset.pattern.permute.xlu0 2
      %2090 = vperm.xlu0 %2089, %v1833
      %v2091 = vpop.permute.xlu0 %2090
      %2092 = vset.pattern.permute.xlu0 2
      %2093 = vperm.xlu0 %2092, %v1834
      %v2094 = vpop.permute.xlu0 %2093
      %2095 = vset.pattern.permute.xlu0 2
      %2096 = vperm.xlu0 %2095, %v1835
      %v2097 = vpop.permute.xlu0 %2096
      %2098 = vset.pattern.permute.xlu0 2
      %2099 = vperm.xlu0 %2098, %v1836
      %v2100 = vpop.permute.xlu0 %2099
      %2101 = vset.pattern.permute.xlu0 2
      %2102 = vperm.xlu0 %2101, %v1837
      %v2103 = vpop.permute.xlu0 %2102
      %2104 = vset.pattern.permute.xlu0 2
      %2105 = vperm.xlu0 %2104, %v1838
      %v2106 = vpop.permute.xlu0 %2105
      %2107 = vset.pattern.permute.xlu0 2
      %2108 = vperm.xlu0 %2107, %v1839
      %v2109 = vpop.permute.xlu0 %2108
      %2110 = vset.pattern.permute.xlu0 2
      %2111 = vperm.xlu0 %2110, %v1840
      %v2112 = vpop.permute.xlu0 %2111
      %vm2113 = vcmp.eq.s32.totalorder %v2067, %v899
      %vm2114 = vcmp.eq.s32.totalorder %v2070, %v899
      %vm2115 = vcmp.eq.s32.totalorder %v2073, %v899
      %vm2116 = vcmp.eq.s32.totalorder %v2076, %v899
      %vm2117 = vcmp.eq.s32.totalorder %v2079, %v899
      %vm2118 = vcmp.eq.s32.totalorder %v2082, %v899
      %vm2119 = vcmp.eq.s32.totalorder %v2085, %v899
      %vm2120 = vcmp.eq.s32.totalorder %v2088, %v899
      %vm2121 = vcmp.eq.s32.totalorder %v2091, %v899
      %vm2122 = vcmp.eq.s32.totalorder %v2094, %v899
      %vm2123 = vcmp.eq.s32.totalorder %v2097, %v899
      %vm2124 = vcmp.eq.s32.totalorder %v2100, %v899
      %vm2125 = vcmp.eq.s32.totalorder %v2103, %v899
      %vm2126 = vcmp.eq.s32.totalorder %v2106, %v899
      %vm2127 = vcmp.eq.s32.totalorder %v2109, %v899
      %vm2128 = vcmp.eq.s32.totalorder %v2112, %v899
      %v2129 = vsel %vm2113, 1, 0
      %v2130 = vsel %vm2114, 1, 0
      %v2131 = vsel %vm2115, 1, 0
      %v2132 = vsel %vm2116, 1, 0
      %v2133 = vsel %vm2117, 1, 0
      %v2134 = vsel %vm2118, 1, 0
      %v2135 = vsel %vm2119, 1, 0
      %v2136 = vsel %vm2120, 1, 0
      %v2137 = vsel %vm2121, 1, 0
      %v2138 = vsel %vm2122, 1, 0
      %v2139 = vsel %vm2123, 1, 0
      %v2140 = vsel %vm2124, 1, 0
      %v2141 = vsel %vm2125, 1, 0
      %v2142 = vsel %vm2126, 1, 0
      %v2143 = vsel %vm2127, 1, 0
      %v2144 = vsel %vm2128, 1, 0
      %v2145 = vcvt.s32.f32 %v2129
      %v2146 = vcvt.s32.f32 %v2130
      %v2147 = vcvt.s32.f32 %v2131
      %v2148 = vcvt.s32.f32 %v2132
      %v2149 = vcvt.s32.f32 %v2133
      %v2150 = vcvt.s32.f32 %v2134
      %v2151 = vcvt.s32.f32 %v2135
      %v2152 = vcvt.s32.f32 %v2136
      %v2153 = vcvt.s32.f32 %v2137
      %v2154 = vcvt.s32.f32 %v2138
      %v2155 = vcvt.s32.f32 %v2139
      %v2156 = vcvt.s32.f32 %v2140
      %v2157 = vcvt.s32.f32 %v2141
      %v2158 = vcvt.s32.f32 %v2142
      %v2159 = vcvt.s32.f32 %v2143
      %v2160 = vcvt.s32.f32 %v2144
      %v2161 = vadd.f32 %v2049, %v2145
      %v2162 = vadd.f32 %v2050, %v2146
      %v2163 = vadd.f32 %v2051, %v2147
      %v2164 = vadd.f32 %v2052, %v2148
      %v2165 = vadd.f32 %v2053, %v2149
      %v2166 = vadd.f32 %v2054, %v2150
      %v2167 = vadd.f32 %v2055, %v2151
      %v2168 = vadd.f32 %v2056, %v2152
      %v2169 = vadd.f32 %v2057, %v2153
      %v2170 = vadd.f32 %v2058, %v2154
      %v2171 = vadd.f32 %v2059, %v2155
      %v2172 = vadd.f32 %v2060, %v2156
      %v2173 = vadd.f32 %v2061, %v2157
      %v2174 = vadd.f32 %v2062, %v2158
      %v2175 = vadd.f32 %v2063, %v2159
      %v2176 = vadd.f32 %v2064, %v2160
      %v2177 = vld [vmem:[%s10] sm:$0xff]
      %v2178 = vld [vmem:[%s10 + $0x8] sm:$0xff]
      %v2179 = vld [vmem:[%s10 + $0x10] sm:$0xff]
      %vm2180 = vcmask 195584
      %v2182 = vsel %vm2180, %v2161, 0
      %v2185 = vsel %vm2180, %v2162, 0
      %v2188 = vsel %vm2180, %v2163, 0
      %v2191 = vsel %vm2180, %v2164, 0
      %v2194 = vsel %vm2180, %v2165, 0
      %v2197 = vsel %vm2180, %v2166, 0
      %v2200 = vsel %vm2180, %v2167, 0
      %v2203 = vsel %vm2180, %v2168, 0
      %v2206 = vsel %vm2180, %v2169, 0
      %v2209 = vsel %vm2180, %v2170, 0
      %v2212 = vsel %vm2180, %v2171, 0
      %v2215 = vsel %vm2180, %v2172, 0
      %v2218 = vsel %vm2180, %v2173, 0
      %v2221 = vsel %vm2180, %v2174, 0
      %v2224 = vsel %vm2180, %v2175, 0
      %v2227 = vsel %vm2180, %v2176, 0
      %2229 = vmatpush.msra.mxu0 0.0
      %2230 = vmatpush.msra.mxu0 0.0
      %2231 = vmatpush.msra.mxu0 0.0
      %2232 = vmatpush.msra.mxu0 0.0
      %2233 = vmatpush.msra.mxu0 0.0
      %2234 = vmatpush.msra.mxu0 0.0
      %2235 = vmatpush.msra.mxu0 0.0
      %2236 = vmatpush.msra.mxu0 0.0
      %2237 = vmatpush.msra.mxu0 0.0
      %2238 = vmatpush.msra.mxu0 0.0
      %2239 = vmatpush.msra.mxu0 0.0
      %2240 = vmatpush.msra.mxu0 0.0
      %2241 = vmatpush.msra.mxu0 0.0
      %2242 = vmatpush.msra.mxu0 %v2179
      %2243 = vmatpush.msra.mxu0 %v2178
      %2244 = vmatpush.msra.mxu0 %v2177
      %2245 = vmatmul.f32.gmra.mxu0 %v2182
      %v2246 = vpop.f32.mrf.mxu0
      %v2247 = vadd.f32 0.0, %v2246
      %2248 = vmatmul.f32.gmra.mxu0 %v2185
      %v2249 = vpop.f32.mrf.mxu0
      %v2250 = vadd.f32 0.0, %v2249
      %2251 = vmatmul.f32.gmra.mxu0 %v2188
      %v2252 = vpop.f32.mrf.mxu0
      %v2253 = vadd.f32 0.0, %v2252
      %2254 = vmatmul.f32.gmra.mxu0 %v2191
      %v2255 = vpop.f32.mrf.mxu0
      %v2256 = vadd.f32 0.0, %v2255
      %2257 = vmatmul.f32.gmra.mxu0 %v2194
      %v2258 = vpop.f32.mrf.mxu0
      %v2259 = vadd.f32 0.0, %v2258
      %2260 = vmatmul.f32.gmra.mxu0 %v2197
      %v2261 = vpop.f32.mrf.mxu0
      %v2262 = vadd.f32 0.0, %v2261
      %2263 = vmatmul.f32.gmra.mxu0 %v2200
      %v2264 = vpop.f32.mrf.mxu0
      %v2265 = vadd.f32 0.0, %v2264
      %2266 = vmatmul.f32.gmra.mxu0 %v2203
      %v2267 = vpop.f32.mrf.mxu0
      %v2268 = vadd.f32 0.0, %v2267
      %2269 = vmatmul.f32.gmra.mxu0 %v2206
      %v2270 = vpop.f32.mrf.mxu0
      %v2271 = vadd.f32 0.0, %v2270
      %2272 = vmatmul.f32.gmra.mxu0 %v2209
      %v2273 = vpop.f32.mrf.mxu0
      %v2274 = vadd.f32 0.0, %v2273
      %2275 = vmatmul.f32.gmra.mxu0 %v2212
      %v2276 = vpop.f32.mrf.mxu0
      %v2277 = vadd.f32 0.0, %v2276
      %2278 = vmatmul.f32.gmra.mxu0 %v2215
      %v2279 = vpop.f32.mrf.mxu0
      %v2280 = vadd.f32 0.0, %v2279
      %2281 = vmatmul.f32.gmra.mxu0 %v2218
      %v2282 = vpop.f32.mrf.mxu0
      %v2283 = vadd.f32 0.0, %v2282
      %2284 = vmatmul.f32.gmra.mxu0 %v2221
      %v2285 = vpop.f32.mrf.mxu0
      %v2286 = vadd.f32 0.0, %v2285
      %2287 = vmatmul.f32.gmra.mxu0 %v2224
      %v2288 = vpop.f32.mrf.mxu0
      %v2289 = vadd.f32 0.0, %v2288
      %2290 = vmatmul.f32.gmra.mxu0 %v2227
      %v2291 = vpop.f32.mrf.mxu0
      %v2292 = vadd.f32 0.0, %v2291
      %2293 = vdwg.mxu0
      %v2294 = vld [vmem:[%s11] sm:$0xff]
      %v2295 = vld [vmem:[%s11 + $0x8] sm:$0xff]
      %v2296 = vld [vmem:[%s13] sm:$0x1]
      %v2298 = vperm.slane %v2296, 0
      %vm2300 = vcmask 130048
      %v2302 = vsel %vm2300, %v866, 0
      %v2305 = vsel %vm2300, %v867, 0
      %v2308 = vsel %vm2300, %v868, 0
      %v2311 = vsel %vm2300, %v869, 0
      %v2314 = vsel %vm2300, %v870, 0
      %v2317 = vsel %vm2300, %v871, 0
      %v2320 = vsel %vm2300, %v872, 0
      %v2323 = vsel %vm2300, %v873, 0
      %v2326 = vsel %vm2300, %v874, 0
      %v2329 = vsel %vm2300, %v875, 0
      %v2332 = vsel %vm2300, %v876, 0
      %v2335 = vsel %vm2300, %v877, 0
      %v2338 = vsel %vm2300, %v878, 0
      %v2341 = vsel %vm2300, %v879, 0
      %v2344 = vsel %vm2300, %v880, 0
      %v2347 = vsel %vm2300, %v881, 0
      %2349 = vmatpush.msra.mxu0 0.0
      %2350 = vmatpush.msra.mxu0 0.0
      %2351 = vmatpush.msra.mxu0 0.0
      %2352 = vmatpush.msra.mxu0 0.0
      %2353 = vmatpush.msra.mxu0 0.0
      %2354 = vmatpush.msra.mxu0 0.0
      %2355 = vmatpush.msra.mxu0 0.0
      %2356 = vmatpush.msra.mxu0 0.0
      %2357 = vmatpush.msra.mxu0 0.0
      %2358 = vmatpush.msra.mxu0 0.0
      %2359 = vmatpush.msra.mxu0 0.0
      %2360 = vmatpush.msra.mxu0 0.0
      %2361 = vmatpush.msra.mxu0 0.0
      %2362 = vmatpush.msra.mxu0 0.0
      %2363 = vmatpush.msra.mxu0 %v2295
      %2364 = vmatpush.msra.mxu0 %v2294
      %2365 = vmatmul.f32.gmra.mxu0 %v2302
      %v2366 = vpop.f32.mrf.mxu0
      %v2367 = vadd.f32 %v2298, %v2366
      %2368 = vmatmul.f32.gmra.mxu0 %v2305
      %v2369 = vpop.f32.mrf.mxu0
      %v2370 = vadd.f32 %v2298, %v2369
      %2371 = vmatmul.f32.gmra.mxu0 %v2308
      %v2372 = vpop.f32.mrf.mxu0
      %v2373 = vadd.f32 %v2298, %v2372
      %2374 = vmatmul.f32.gmra.mxu0 %v2311
      %v2375 = vpop.f32.mrf.mxu0
      %v2376 = vadd.f32 %v2298, %v2375
      %2377 = vmatmul.f32.gmra.mxu0 %v2314
      %v2378 = vpop.f32.mrf.mxu0
      %v2379 = vadd.f32 %v2298, %v2378
      %2380 = vmatmul.f32.gmra.mxu0 %v2317
      %v2381 = vpop.f32.mrf.mxu0
      %v2382 = vadd.f32 %v2298, %v2381
      %2383 = vmatmul.f32.gmra.mxu0 %v2320
      %v2384 = vpop.f32.mrf.mxu0
      %v2385 = vadd.f32 %v2298, %v2384
      %2386 = vmatmul.f32.gmra.mxu0 %v2323
      %v2387 = vpop.f32.mrf.mxu0
      %v2388 = vadd.f32 %v2298, %v2387
      %2389 = vmatmul.f32.gmra.mxu0 %v2326
      %v2390 = vpop.f32.mrf.mxu0
      %v2391 = vadd.f32 %v2298, %v2390
      %2392 = vmatmul.f32.gmra.mxu0 %v2329
      %v2393 = vpop.f32.mrf.mxu0
      %v2394 = vadd.f32 %v2298, %v2393
      %2395 = vmatmul.f32.gmra.mxu0 %v2332
      %v2396 = vpop.f32.mrf.mxu0
      %v2397 = vadd.f32 %v2298, %v2396
      %2398 = vmatmul.f32.gmra.mxu0 %v2335
      %v2399 = vpop.f32.mrf.mxu0
      %v2400 = vadd.f32 %v2298, %v2399
      %2401 = vmatmul.f32.gmra.mxu0 %v2338
      %v2402 = vpop.f32.mrf.mxu0
      %v2403 = vadd.f32 %v2298, %v2402
      %2404 = vmatmul.f32.gmra.mxu0 %v2341
      %v2405 = vpop.f32.mrf.mxu0
      %v2406 = vadd.f32 %v2298, %v2405
      %2407 = vmatmul.f32.gmra.mxu0 %v2344
      %v2408 = vpop.f32.mrf.mxu0
      %v2409 = vadd.f32 %v2298, %v2408
      %2410 = vmatmul.f32.gmra.mxu0 %v2347
      %v2411 = vpop.f32.mrf.mxu0
      %v2412 = vadd.f32 %v2298, %v2411
      %2413 = vdwg.mxu0
      %2430 = vrot.lane.b32.xlu0 %v1778, 16
      %v2431 = vpop.permute.xlu0 %2430
      %2432 = vrot.lane.b32.xlu0 %v1781, 16
      %v2433 = vpop.permute.xlu0 %2432
      %2434 = vrot.lane.b32.xlu0 %v1784, 16
      %v2435 = vpop.permute.xlu0 %2434
      %2436 = vrot.lane.b32.xlu0 %v1787, 16
      %v2437 = vpop.permute.xlu0 %2436
      %2438 = vrot.lane.b32.xlu0 %v1790, 16
      %v2439 = vpop.permute.xlu0 %2438
      %2440 = vrot.lane.b32.xlu0 %v1793, 16
      %v2441 = vpop.permute.xlu0 %2440
      %2442 = vrot.lane.b32.xlu0 %v1796, 16
      %v2443 = vpop.permute.xlu0 %2442
      %2444 = vrot.lane.b32.xlu0 %v1799, 16
      %v2445 = vpop.permute.xlu0 %2444
      %2446 = vrot.lane.b32.xlu0 %v1802, 16
      %v2447 = vpop.permute.xlu0 %2446
      %2448 = vrot.lane.b32.xlu0 %v1805, 16
      %v2449 = vpop.permute.xlu0 %2448
      %2450 = vrot.lane.b32.xlu0 %v1808, 16
      %v2451 = vpop.permute.xlu0 %2450
      %2452 = vrot.lane.b32.xlu0 %v1811, 16
      %v2453 = vpop.permute.xlu0 %2452
      %2454 = vrot.lane.b32.xlu0 %v1814, 16
      %v2455 = vpop.permute.xlu0 %2454
      %2456 = vrot.lane.b32.xlu0 %v1817, 16
      %v2457 = vpop.permute.xlu0 %2456
      %2458 = vrot.lane.b32.xlu0 %v1820, 16
      %v2459 = vpop.permute.xlu0 %2458
      %2460 = vrot.lane.b32.xlu0 %v1823, 16
      %v2461 = vpop.permute.xlu0 %2460
      %2478 = vrot.lane.b32.xlu0 %v1778, 32
      %v2479 = vpop.permute.xlu0 %2478
      %2480 = vrot.lane.b32.xlu0 %v1781, 32
      %v2481 = vpop.permute.xlu0 %2480
      %2482 = vrot.lane.b32.xlu0 %v1784, 32
      %v2483 = vpop.permute.xlu0 %2482
      %2484 = vrot.lane.b32.xlu0 %v1787, 32
      %v2485 = vpop.permute.xlu0 %2484
      %2486 = vrot.lane.b32.xlu0 %v1790, 32
      %v2487 = vpop.permute.xlu0 %2486
      %2488 = vrot.lane.b32.xlu0 %v1793, 32
      %v2489 = vpop.permute.xlu0 %2488
      %2490 = vrot.lane.b32.xlu0 %v1796, 32
      %v2491 = vpop.permute.xlu0 %2490
      %2492 = vrot.lane.b32.xlu0 %v1799, 32
      %v2493 = vpop.permute.xlu0 %2492
      %2494 = vrot.lane.b32.xlu0 %v1802, 32
      %v2495 = vpop.permute.xlu0 %2494
      %2496 = vrot.lane.b32.xlu0 %v1805, 32
      %v2497 = vpop.permute.xlu0 %2496
      %2498 = vrot.lane.b32.xlu0 %v1808, 32
      %v2499 = vpop.permute.xlu0 %2498
      %2500 = vrot.lane.b32.xlu0 %v1811, 32
      %v2501 = vpop.permute.xlu0 %2500
      %2502 = vrot.lane.b32.xlu0 %v1814, 32
      %v2503 = vpop.permute.xlu0 %2502
      %2504 = vrot.lane.b32.xlu0 %v1817, 32
      %v2505 = vpop.permute.xlu0 %2504
      %2506 = vrot.lane.b32.xlu0 %v1820, 32
      %v2507 = vpop.permute.xlu0 %2506
      %2508 = vrot.lane.b32.xlu0 %v1823, 32
      %v2509 = vpop.permute.xlu0 %2508
      %2542 = vrot.lane.b32.xlu0 %v2247, 48
      %v2543 = vpop.permute.xlu0 %2542
      %2544 = vrot.lane.b32.xlu0 %v2250, 48
      %v2545 = vpop.permute.xlu0 %2544
      %2546 = vrot.lane.b32.xlu0 %v2253, 48
      %v2547 = vpop.permute.xlu0 %2546
      %2548 = vrot.lane.b32.xlu0 %v2256, 48
      %v2549 = vpop.permute.xlu0 %2548
      %2550 = vrot.lane.b32.xlu0 %v2259, 48
      %v2551 = vpop.permute.xlu0 %2550
      %2552 = vrot.lane.b32.xlu0 %v2262, 48
      %v2553 = vpop.permute.xlu0 %2552
      %2554 = vrot.lane.b32.xlu0 %v2265, 48
      %v2555 = vpop.permute.xlu0 %2554
      %2556 = vrot.lane.b32.xlu0 %v2268, 48
      %v2557 = vpop.permute.xlu0 %2556
      %2558 = vrot.lane.b32.xlu0 %v2271, 48
      %v2559 = vpop.permute.xlu0 %2558
      %2560 = vrot.lane.b32.xlu0 %v2274, 48
      %v2561 = vpop.permute.xlu0 %2560
      %2562 = vrot.lane.b32.xlu0 %v2277, 48
      %v2563 = vpop.permute.xlu0 %2562
      %2564 = vrot.lane.b32.xlu0 %v2280, 48
      %v2565 = vpop.permute.xlu0 %2564
      %2566 = vrot.lane.b32.xlu0 %v2283, 48
      %v2567 = vpop.permute.xlu0 %2566
      %2568 = vrot.lane.b32.xlu0 %v2286, 48
      %v2569 = vpop.permute.xlu0 %2568
      %2570 = vrot.lane.b32.xlu0 %v2289, 48
      %v2571 = vpop.permute.xlu0 %2570
      %2572 = vrot.lane.b32.xlu0 %v2292, 48
      %v2573 = vpop.permute.xlu0 %2572
      %2590 = vrot.lane.b32.xlu0 %v2247, 64
      %v2591 = vpop.permute.xlu0 %2590
      %2592 = vrot.lane.b32.xlu0 %v2250, 64
      %v2593 = vpop.permute.xlu0 %2592
      %2594 = vrot.lane.b32.xlu0 %v2253, 64
      %v2595 = vpop.permute.xlu0 %2594
      %2596 = vrot.lane.b32.xlu0 %v2256, 64
      %v2597 = vpop.permute.xlu0 %2596
      %2598 = vrot.lane.b32.xlu0 %v2259, 64
      %v2599 = vpop.permute.xlu0 %2598
      %2600 = vrot.lane.b32.xlu0 %v2262, 64
      %v2601 = vpop.permute.xlu0 %2600
      %2602 = vrot.lane.b32.xlu0 %v2265, 64
      %v2603 = vpop.permute.xlu0 %2602
      %2604 = vrot.lane.b32.xlu0 %v2268, 64
      %v2605 = vpop.permute.xlu0 %2604
      %2606 = vrot.lane.b32.xlu0 %v2271, 64
      %v2607 = vpop.permute.xlu0 %2606
      %2608 = vrot.lane.b32.xlu0 %v2274, 64
      %v2609 = vpop.permute.xlu0 %2608
      %2610 = vrot.lane.b32.xlu0 %v2277, 64
      %v2611 = vpop.permute.xlu0 %2610
      %2612 = vrot.lane.b32.xlu0 %v2280, 64
      %v2613 = vpop.permute.xlu0 %2612
      %2614 = vrot.lane.b32.xlu0 %v2283, 64
      %v2615 = vpop.permute.xlu0 %2614
      %2616 = vrot.lane.b32.xlu0 %v2286, 64
      %v2617 = vpop.permute.xlu0 %2616
      %2618 = vrot.lane.b32.xlu0 %v2289, 64
      %v2619 = vpop.permute.xlu0 %2618
      %2620 = vrot.lane.b32.xlu0 %v2292, 64
      %v2621 = vpop.permute.xlu0 %2620
      %2638 = vrot.lane.b32.xlu0 %v2247, 80
      %v2639 = vpop.permute.xlu0 %2638
      %2640 = vrot.lane.b32.xlu0 %v2250, 80
      %v2641 = vpop.permute.xlu0 %2640
      %2642 = vrot.lane.b32.xlu0 %v2253, 80
      %v2643 = vpop.permute.xlu0 %2642
      %2644 = vrot.lane.b32.xlu0 %v2256, 80
      %v2645 = vpop.permute.xlu0 %2644
      %2646 = vrot.lane.b32.xlu0 %v2259, 80
      %v2647 = vpop.permute.xlu0 %2646
      %2648 = vrot.lane.b32.xlu0 %v2262, 80
      %v2649 = vpop.permute.xlu0 %2648
      %2650 = vrot.lane.b32.xlu0 %v2265, 80
      %v2651 = vpop.permute.xlu0 %2650
      %2652 = vrot.lane.b32.xlu0 %v2268, 80
      %v2653 = vpop.permute.xlu0 %2652
      %2654 = vrot.lane.b32.xlu0 %v2271, 80
      %v2655 = vpop.permute.xlu0 %2654
      %2656 = vrot.lane.b32.xlu0 %v2274, 80
      %v2657 = vpop.permute.xlu0 %2656
      %2658 = vrot.lane.b32.xlu0 %v2277, 80
      %v2659 = vpop.permute.xlu0 %2658
      %2660 = vrot.lane.b32.xlu0 %v2280, 80
      %v2661 = vpop.permute.xlu0 %2660
      %2662 = vrot.lane.b32.xlu0 %v2283, 80
      %v2663 = vpop.permute.xlu0 %2662
      %2664 = vrot.lane.b32.xlu0 %v2286, 80
      %v2665 = vpop.permute.xlu0 %2664
      %2666 = vrot.lane.b32.xlu0 %v2289, 80
      %v2667 = vpop.permute.xlu0 %2666
      %2668 = vrot.lane.b32.xlu0 %v2292, 80
      %v2669 = vpop.permute.xlu0 %2668
      %v2686 = vsel %vm2300, %v1306, %v2431
      %v2687 = vsel %vm2300, %v1309, %v2433
      %v2688 = vsel %vm2300, %v1312, %v2435
      %v2689 = vsel %vm2300, %v1315, %v2437
      %v2690 = vsel %vm2300, %v1318, %v2439
      %v2691 = vsel %vm2300, %v1321, %v2441
      %v2692 = vsel %vm2300, %v1324, %v2443
      %v2693 = vsel %vm2300, %v1327, %v2445
      %v2694 = vsel %vm2300, %v1330, %v2447
      %v2695 = vsel %vm2300, %v1333, %v2449
      %v2696 = vsel %vm2300, %v1336, %v2451
      %v2697 = vsel %vm2300, %v1339, %v2453
      %v2698 = vsel %vm2300, %v1342, %v2455
      %v2699 = vsel %vm2300, %v1345, %v2457
      %v2700 = vsel %vm2300, %v1348, %v2459
      %v2701 = vsel %vm2300, %v1351, %v2461
      %v2702 = vsel %vm752, %v2686, %v2479
      %v2703 = vsel %vm752, %v2687, %v2481
      %v2704 = vsel %vm752, %v2688, %v2483
      %v2705 = vsel %vm752, %v2689, %v2485
      %v2706 = vsel %vm752, %v2690, %v2487
      %v2707 = vsel %vm752, %v2691, %v2489
      %v2708 = vsel %vm752, %v2692, %v2491
      %v2709 = vsel %vm752, %v2693, %v2493
      %v2710 = vsel %vm752, %v2694, %v2495
      %v2711 = vsel %vm752, %v2695, %v2497
      %v2712 = vsel %vm752, %v2696, %v2499
      %v2713 = vsel %vm752, %v2697, %v2501
      %v2714 = vsel %vm752, %v2698, %v2503
      %v2715 = vsel %vm752, %v2699, %v2505
      %v2716 = vsel %vm752, %v2700, %v2507
      %v2717 = vsel %vm752, %v2701, %v2509
      %v2718 = vsel %vm1711, %v2702, %v2543
      %v2719 = vsel %vm1711, %v2703, %v2545
      %v2720 = vsel %vm1711, %v2704, %v2547
      %v2721 = vsel %vm1711, %v2705, %v2549
      %v2722 = vsel %vm1711, %v2706, %v2551
      %v2723 = vsel %vm1711, %v2707, %v2553
      %v2724 = vsel %vm1711, %v2708, %v2555
      %v2725 = vsel %vm1711, %v2709, %v2557
      %v2726 = vsel %vm1711, %v2710, %v2559
      %v2727 = vsel %vm1711, %v2711, %v2561
      %v2728 = vsel %vm1711, %v2712, %v2563
      %v2729 = vsel %vm1711, %v2713, %v2565
      %v2730 = vsel %vm1711, %v2714, %v2567
      %v2731 = vsel %vm1711, %v2715, %v2569
      %v2732 = vsel %vm1711, %v2716, %v2571
      %v2733 = vsel %vm1711, %v2717, %v2573
      %vm2734 = vcmask 523264
      %v2735 = vsel %vm2734, %v2718, %v2591
      %v2736 = vsel %vm2734, %v2719, %v2593
      %v2737 = vsel %vm2734, %v2720, %v2595
      %v2738 = vsel %vm2734, %v2721, %v2597
      %v2739 = vsel %vm2734, %v2722, %v2599
      %v2740 = vsel %vm2734, %v2723, %v2601
      %v2741 = vsel %vm2734, %v2724, %v2603
      %v2742 = vsel %vm2734, %v2725, %v2605
      %v2743 = vsel %vm2734, %v2726, %v2607
      %v2744 = vsel %vm2734, %v2727, %v2609
      %v2745 = vsel %vm2734, %v2728, %v2611
      %v2746 = vsel %vm2734, %v2729, %v2613
      %v2747 = vsel %vm2734, %v2730, %v2615
      %v2748 = vsel %vm2734, %v2731, %v2617
      %v2749 = vsel %vm2734, %v2732, %v2619
      %v2750 = vsel %vm2734, %v2733, %v2621
      %vm2751 = vcmask 654336
      %v2752 = vsel %vm2751, %v2735, %v2639
      %v2753 = vsel %vm2751, %v2736, %v2641
      %v2754 = vsel %vm2751, %v2737, %v2643
      %v2755 = vsel %vm2751, %v2738, %v2645
      %v2756 = vsel %vm2751, %v2739, %v2647
      %v2757 = vsel %vm2751, %v2740, %v2649
      %v2758 = vsel %vm2751, %v2741, %v2651
      %v2759 = vsel %vm2751, %v2742, %v2653
      %v2760 = vsel %vm2751, %v2743, %v2655
      %v2761 = vsel %vm2751, %v2744, %v2657
      %v2762 = vsel %vm2751, %v2745, %v2659
      %v2763 = vsel %vm2751, %v2746, %v2661
      %v2764 = vsel %vm2751, %v2747, %v2663
      %v2765 = vsel %vm2751, %v2748, %v2665
      %v2766 = vsel %vm2751, %v2749, %v2667
      %v2767 = vsel %vm2751, %v2750, %v2669
      %2768 = vrot.lane.b32.xlu0 %v866, 16
      %v2769 = vpop.permute.xlu0 %2768
      %2770 = vrot.lane.b32.xlu0 %v867, 16
      %v2771 = vpop.permute.xlu0 %2770
      %2772 = vrot.lane.b32.xlu0 %v868, 16
      %v2773 = vpop.permute.xlu0 %2772
      %2774 = vrot.lane.b32.xlu0 %v869, 16
      %v2775 = vpop.permute.xlu0 %2774
      %2776 = vrot.lane.b32.xlu0 %v870, 16
      %v2777 = vpop.permute.xlu0 %2776
      %2778 = vrot.lane.b32.xlu0 %v871, 16
      %v2779 = vpop.permute.xlu0 %2778
      %2780 = vrot.lane.b32.xlu0 %v872, 16
      %v2781 = vpop.permute.xlu0 %2780
      %2782 = vrot.lane.b32.xlu0 %v873, 16
      %v2783 = vpop.permute.xlu0 %2782
      %2784 = vrot.lane.b32.xlu0 %v874, 16
      %v2785 = vpop.permute.xlu0 %2784
      %2786 = vrot.lane.b32.xlu0 %v875, 16
      %v2787 = vpop.permute.xlu0 %2786
      %2788 = vrot.lane.b32.xlu0 %v876, 16
      %v2789 = vpop.permute.xlu0 %2788
      %2790 = vrot.lane.b32.xlu0 %v877, 16
      %v2791 = vpop.permute.xlu0 %2790
      %2792 = vrot.lane.b32.xlu0 %v878, 16
      %v2793 = vpop.permute.xlu0 %2792
      %2794 = vrot.lane.b32.xlu0 %v879, 16
      %v2795 = vpop.permute.xlu0 %2794
      %2796 = vrot.lane.b32.xlu0 %v880, 16
      %v2797 = vpop.permute.xlu0 %2796
      %2798 = vrot.lane.b32.xlu0 %v881, 16
      %v2799 = vpop.permute.xlu0 %2798
      %2832 = vrot.lane.b32.xlu0 %v1306, 32
      %v2833 = vpop.permute.xlu0 %2832
      %2834 = vrot.lane.b32.xlu0 %v1309, 32
      %v2835 = vpop.permute.xlu0 %2834
      %2836 = vrot.lane.b32.xlu0 %v1312, 32
      %v2837 = vpop.permute.xlu0 %2836
      %2838 = vrot.lane.b32.xlu0 %v1315, 32
      %v2839 = vpop.permute.xlu0 %2838
      %2840 = vrot.lane.b32.xlu0 %v1318, 32
      %v2841 = vpop.permute.xlu0 %2840
      %2842 = vrot.lane.b32.xlu0 %v1321, 32
      %v2843 = vpop.permute.xlu0 %2842
      %2844 = vrot.lane.b32.xlu0 %v1324, 32
      %v2845 = vpop.permute.xlu0 %2844
      %2846 = vrot.lane.b32.xlu0 %v1327, 32
      %v2847 = vpop.permute.xlu0 %2846
      %2848 = vrot.lane.b32.xlu0 %v1330, 32
      %v2849 = vpop.permute.xlu0 %2848
      %2850 = vrot.lane.b32.xlu0 %v1333, 32
      %v2851 = vpop.permute.xlu0 %2850
      %2852 = vrot.lane.b32.xlu0 %v1336, 32
      %v2853 = vpop.permute.xlu0 %2852
      %2854 = vrot.lane.b32.xlu0 %v1339, 32
      %v2855 = vpop.permute.xlu0 %2854
      %2856 = vrot.lane.b32.xlu0 %v1342, 32
      %v2857 = vpop.permute.xlu0 %2856
      %2858 = vrot.lane.b32.xlu0 %v1345, 32
      %v2859 = vpop.permute.xlu0 %2858
      %2860 = vrot.lane.b32.xlu0 %v1348, 32
      %v2861 = vpop.permute.xlu0 %2860
      %2862 = vrot.lane.b32.xlu0 %v1351, 32
      %v2863 = vpop.permute.xlu0 %2862
      %2880 = vrot.lane.b32.xlu0 %v866, 48
      %v2881 = vpop.permute.xlu0 %2880
      %2882 = vrot.lane.b32.xlu0 %v867, 48
      %v2883 = vpop.permute.xlu0 %2882
      %2884 = vrot.lane.b32.xlu0 %v868, 48
      %v2885 = vpop.permute.xlu0 %2884
      %2886 = vrot.lane.b32.xlu0 %v869, 48
      %v2887 = vpop.permute.xlu0 %2886
      %2888 = vrot.lane.b32.xlu0 %v870, 48
      %v2889 = vpop.permute.xlu0 %2888
      %2890 = vrot.lane.b32.xlu0 %v871, 48
      %v2891 = vpop.permute.xlu0 %2890
      %2892 = vrot.lane.b32.xlu0 %v872, 48
      %v2893 = vpop.permute.xlu0 %2892
      %2894 = vrot.lane.b32.xlu0 %v873, 48
      %v2895 = vpop.permute.xlu0 %2894
      %2896 = vrot.lane.b32.xlu0 %v874, 48
      %v2897 = vpop.permute.xlu0 %2896
      %2898 = vrot.lane.b32.xlu0 %v875, 48
      %v2899 = vpop.permute.xlu0 %2898
      %2900 = vrot.lane.b32.xlu0 %v876, 48
      %v2901 = vpop.permute.xlu0 %2900
      %2902 = vrot.lane.b32.xlu0 %v877, 48
      %v2903 = vpop.permute.xlu0 %2902
      %2904 = vrot.lane.b32.xlu0 %v878, 48
      %v2905 = vpop.permute.xlu0 %2904
      %2906 = vrot.lane.b32.xlu0 %v879, 48
      %v2907 = vpop.permute.xlu0 %2906
      %2908 = vrot.lane.b32.xlu0 %v880, 48
      %v2909 = vpop.permute.xlu0 %2908
      %2910 = vrot.lane.b32.xlu0 %v881, 48
      %v2911 = vpop.permute.xlu0 %2910
      %2928 = vrot.lane.b32.xlu0 %v1306, 64
      %v2929 = vpop.permute.xlu0 %2928
      %2930 = vrot.lane.b32.xlu0 %v1309, 64
      %v2931 = vpop.permute.xlu0 %2930
      %2932 = vrot.lane.b32.xlu0 %v1312, 64
      %v2933 = vpop.permute.xlu0 %2932
      %2934 = vrot.lane.b32.xlu0 %v1315, 64
      %v2935 = vpop.permute.xlu0 %2934
      %2936 = vrot.lane.b32.xlu0 %v1318, 64
      %v2937 = vpop.permute.xlu0 %2936
      %2938 = vrot.lane.b32.xlu0 %v1321, 64
      %v2939 = vpop.permute.xlu0 %2938
      %2940 = vrot.lane.b32.xlu0 %v1324, 64
      %v2941 = vpop.permute.xlu0 %2940
      %2942 = vrot.lane.b32.xlu0 %v1327, 64
      %v2943 = vpop.permute.xlu0 %2942
      %2944 = vrot.lane.b32.xlu0 %v1330, 64
      %v2945 = vpop.permute.xlu0 %2944
      %2946 = vrot.lane.b32.xlu0 %v1333, 64
      %v2947 = vpop.permute.xlu0 %2946
      %2948 = vrot.lane.b32.xlu0 %v1336, 64
      %v2949 = vpop.permute.xlu0 %2948
      %2950 = vrot.lane.b32.xlu0 %v1339, 64
      %v2951 = vpop.permute.xlu0 %2950
      %2952 = vrot.lane.b32.xlu0 %v1342, 64
      %v2953 = vpop.permute.xlu0 %2952
      %2954 = vrot.lane.b32.xlu0 %v1345, 64
      %v2955 = vpop.permute.xlu0 %2954
      %2956 = vrot.lane.b32.xlu0 %v1348, 64
      %v2957 = vpop.permute.xlu0 %2956
      %2958 = vrot.lane.b32.xlu0 %v1351, 64
      %v2959 = vpop.permute.xlu0 %2958
      %2976 = vrot.lane.b32.xlu0 %v1778, 80
      %v2977 = vpop.permute.xlu0 %2976
      %2978 = vrot.lane.b32.xlu0 %v1781, 80
      %v2979 = vpop.permute.xlu0 %2978
      %2980 = vrot.lane.b32.xlu0 %v1784, 80
      %v2981 = vpop.permute.xlu0 %2980
      %2982 = vrot.lane.b32.xlu0 %v1787, 80
      %v2983 = vpop.permute.xlu0 %2982
      %2984 = vrot.lane.b32.xlu0 %v1790, 80
      %v2985 = vpop.permute.xlu0 %2984
      %2986 = vrot.lane.b32.xlu0 %v1793, 80
      %v2987 = vpop.permute.xlu0 %2986
      %2988 = vrot.lane.b32.xlu0 %v1796, 80
      %v2989 = vpop.permute.xlu0 %2988
      %2990 = vrot.lane.b32.xlu0 %v1799, 80
      %v2991 = vpop.permute.xlu0 %2990
      %2992 = vrot.lane.b32.xlu0 %v1802, 80
      %v2993 = vpop.permute.xlu0 %2992
      %2994 = vrot.lane.b32.xlu0 %v1805, 80
      %v2995 = vpop.permute.xlu0 %2994
      %2996 = vrot.lane.b32.xlu0 %v1808, 80
      %v2997 = vpop.permute.xlu0 %2996
      %2998 = vrot.lane.b32.xlu0 %v1811, 80
      %v2999 = vpop.permute.xlu0 %2998
      %3000 = vrot.lane.b32.xlu0 %v1814, 80
      %v3001 = vpop.permute.xlu0 %3000
      %3002 = vrot.lane.b32.xlu0 %v1817, 80
      %v3003 = vpop.permute.xlu0 %3002
      %3004 = vrot.lane.b32.xlu0 %v1820, 80
      %v3005 = vpop.permute.xlu0 %3004
      %3006 = vrot.lane.b32.xlu0 %v1823, 80
      %v3007 = vpop.permute.xlu0 %3006
      %v3024 = vsel %vm2300, %v866, %v2769
      %v3025 = vsel %vm2300, %v867, %v2771
      %v3026 = vsel %vm2300, %v868, %v2773
      %v3027 = vsel %vm2300, %v869, %v2775
      %v3028 = vsel %vm2300, %v870, %v2777
      %v3029 = vsel %vm2300, %v871, %v2779
      %v3030 = vsel %vm2300, %v872, %v2781
      %v3031 = vsel %vm2300, %v873, %v2783
      %v3032 = vsel %vm2300, %v874, %v2785
      %v3033 = vsel %vm2300, %v875, %v2787
      %v3034 = vsel %vm2300, %v876, %v2789
      %v3035 = vsel %vm2300, %v877, %v2791
      %v3036 = vsel %vm2300, %v878, %v2793
      %v3037 = vsel %vm2300, %v879, %v2795
      %v3038 = vsel %vm2300, %v880, %v2797
      %v3039 = vsel %vm2300, %v881, %v2799
      %v3040 = vsel %vm752, %v3024, %v2833
      %v3041 = vsel %vm752, %v3025, %v2835
      %v3042 = vsel %vm752, %v3026, %v2837
      %v3043 = vsel %vm752, %v3027, %v2839
      %v3044 = vsel %vm752, %v3028, %v2841
      %v3045 = vsel %vm752, %v3029, %v2843
      %v3046 = vsel %vm752, %v3030, %v2845
      %v3047 = vsel %vm752, %v3031, %v2847
      %v3048 = vsel %vm752, %v3032, %v2849
      %v3049 = vsel %vm752, %v3033, %v2851
      %v3050 = vsel %vm752, %v3034, %v2853
      %v3051 = vsel %vm752, %v3035, %v2855
      %v3052 = vsel %vm752, %v3036, %v2857
      %v3053 = vsel %vm752, %v3037, %v2859
      %v3054 = vsel %vm752, %v3038, %v2861
      %v3055 = vsel %vm752, %v3039, %v2863
      %v3056 = vsel %vm1711, %v3040, %v2881
      %v3057 = vsel %vm1711, %v3041, %v2883
      %v3058 = vsel %vm1711, %v3042, %v2885
      %v3059 = vsel %vm1711, %v3043, %v2887
      %v3060 = vsel %vm1711, %v3044, %v2889
      %v3061 = vsel %vm1711, %v3045, %v2891
      %v3062 = vsel %vm1711, %v3046, %v2893
      %v3063 = vsel %vm1711, %v3047, %v2895
      %v3064 = vsel %vm1711, %v3048, %v2897
      %v3065 = vsel %vm1711, %v3049, %v2899
      %v3066 = vsel %vm1711, %v3050, %v2901
      %v3067 = vsel %vm1711, %v3051, %v2903
      %v3068 = vsel %vm1711, %v3052, %v2905
      %v3069 = vsel %vm1711, %v3053, %v2907
      %v3070 = vsel %vm1711, %v3054, %v2909
      %v3071 = vsel %vm1711, %v3055, %v2911
      %v3072 = vsel %vm2734, %v3056, %v2929
      %v3073 = vsel %vm2734, %v3057, %v2931
      %v3074 = vsel %vm2734, %v3058, %v2933
      %v3075 = vsel %vm2734, %v3059, %v2935
      %v3076 = vsel %vm2734, %v3060, %v2937
      %v3077 = vsel %vm2734, %v3061, %v2939
      %v3078 = vsel %vm2734, %v3062, %v2941
      %v3079 = vsel %vm2734, %v3063, %v2943
      %v3080 = vsel %vm2734, %v3064, %v2945
      %v3081 = vsel %vm2734, %v3065, %v2947
      %v3082 = vsel %vm2734, %v3066, %v2949
      %v3083 = vsel %vm2734, %v3067, %v2951
      %v3084 = vsel %vm2734, %v3068, %v2953
      %v3085 = vsel %vm2734, %v3069, %v2955
      %v3086 = vsel %vm2734, %v3070, %v2957
      %v3087 = vsel %vm2734, %v3071, %v2959
      %v3088 = vsel %vm2751, %v3072, %v2977
      %v3089 = vsel %vm2751, %v3073, %v2979
      %v3090 = vsel %vm2751, %v3074, %v2981
      %v3091 = vsel %vm2751, %v3075, %v2983
      %v3092 = vsel %vm2751, %v3076, %v2985
      %v3093 = vsel %vm2751, %v3077, %v2987
      %v3094 = vsel %vm2751, %v3078, %v2989
      %v3095 = vsel %vm2751, %v3079, %v2991
      %v3096 = vsel %vm2751, %v3080, %v2993
      %v3097 = vsel %vm2751, %v3081, %v2995
      %v3098 = vsel %vm2751, %v3082, %v2997
      %v3099 = vsel %vm2751, %v3083, %v2999
      %v3100 = vsel %vm2751, %v3084, %v3001
      %v3101 = vsel %vm2751, %v3085, %v3003
      %v3102 = vsel %vm2751, %v3086, %v3005
      %v3103 = vsel %vm2751, %v3087, %v3007
      %v3104 = vmul.f32 %v2752, %v3088
      %v3105 = vmul.f32 %v2753, %v3089
      %v3106 = vmul.f32 %v2754, %v3090
      %v3107 = vmul.f32 %v2755, %v3091
      %v3108 = vmul.f32 %v2756, %v3092
      %v3109 = vmul.f32 %v2757, %v3093
      %v3110 = vmul.f32 %v2758, %v3094
      %v3111 = vmul.f32 %v2759, %v3095
      %v3112 = vmul.f32 %v2760, %v3096
      %v3113 = vmul.f32 %v2761, %v3097
      %v3114 = vmul.f32 %v2762, %v3098
      %v3115 = vmul.f32 %v2763, %v3099
      %v3116 = vmul.f32 %v2764, %v3100
      %v3117 = vmul.f32 %v2765, %v3101
      %v3118 = vmul.f32 %v2766, %v3102
      %v3119 = vmul.f32 %v2767, %v3103
      %v3120 = vld [vmem:[%s12] sm:$0xff]
      %v3121 = vld [vmem:[%s12 + $0x8] sm:$0xff]
      %v3122 = vld [vmem:[%s12 + $0x10] sm:$0xff]
      %v3123 = vld [vmem:[%s12 + $0x18] sm:$0xff]
      %v3124 = vld [vmem:[%s12 + $0x20] sm:$0xff]
      %v3125 = vld [vmem:[%s12 + $0x28] sm:$0xff]
      %v3126 = vld [vmem:[%s12 + $0x30] sm:$0xff]
      %v3127 = vld [vmem:[%s12 + $0x38] sm:$0xff]
      %v3128 = vld [vmem:[%s12 + $0x40] sm:$0xff]
      %v3129 = vld [vmem:[%s12 + $0x48] sm:$0xff]
      %v3130 = vld [vmem:[%s12 + $0x50] sm:$0xff]
      %v3131 = vld [vmem:[%s12 + $0x58] sm:$0xff]
      %vm3132 = vcmask 785408
      %v3134 = vsel %vm3132, %v3104, 0
      %v3137 = vsel %vm3132, %v3105, 0
      %v3140 = vsel %vm3132, %v3106, 0
      %v3143 = vsel %vm3132, %v3107, 0
      %v3146 = vsel %vm3132, %v3108, 0
      %v3149 = vsel %vm3132, %v3109, 0
      %v3152 = vsel %vm3132, %v3110, 0
      %v3155 = vsel %vm3132, %v3111, 0
      %v3158 = vsel %vm3132, %v3112, 0
      %v3161 = vsel %vm3132, %v3113, 0
      %v3164 = vsel %vm3132, %v3114, 0
      %v3167 = vsel %vm3132, %v3115, 0
      %v3170 = vsel %vm3132, %v3116, 0
      %v3173 = vsel %vm3132, %v3117, 0
      %v3176 = vsel %vm3132, %v3118, 0
      %v3179 = vsel %vm3132, %v3119, 0
      %3181 = vmatpush.msra.mxu0 0.0
      %3182 = vmatpush.msra.mxu0 0.0
      %3183 = vmatpush.msra.mxu0 0.0
      %3184 = vmatpush.msra.mxu0 0.0
      %3185 = vmatpush.msra.mxu0 %v3131
      %3186 = vmatpush.msra.mxu0 %v3130
      %3187 = vmatpush.msra.mxu0 %v3129
      %3188 = vmatpush.msra.mxu0 %v3128
      %3189 = vmatpush.msra.mxu0 %v3127
      %3190 = vmatpush.msra.mxu0 %v3126
      %3191 = vmatpush.msra.mxu0 %v3125
      %3192 = vmatpush.msra.mxu0 %v3124
      %3193 = vmatpush.msra.mxu0 %v3123
      %3194 = vmatpush.msra.mxu0 %v3122
      %3195 = vmatpush.msra.mxu0 %v3121
      %3196 = vmatpush.msra.mxu0 %v3120
      %3197 = vmatmul.f32.gmra.mxu0 %v3134
      %v3198 = vpop.f32.mrf.mxu0
      %v3199 = vadd.f32 0.0, %v3198
      %3200 = vmatmul.f32.gmra.mxu0 %v3137
      %v3201 = vpop.f32.mrf.mxu0
      %v3202 = vadd.f32 0.0, %v3201
      %3203 = vmatmul.f32.gmra.mxu0 %v3140
      %v3204 = vpop.f32.mrf.mxu0
      %v3205 = vadd.f32 0.0, %v3204
      %3206 = vmatmul.f32.gmra.mxu0 %v3143
      %v3207 = vpop.f32.mrf.mxu0
      %v3208 = vadd.f32 0.0, %v3207
      %3209 = vmatmul.f32.gmra.mxu0 %v3146
      %v3210 = vpop.f32.mrf.mxu0
      %v3211 = vadd.f32 0.0, %v3210
      %3212 = vmatmul.f32.gmra.mxu0 %v3149
      %v3213 = vpop.f32.mrf.mxu0
      %v3214 = vadd.f32 0.0, %v3213
      %3215 = vmatmul.f32.gmra.mxu0 %v3152
      %v3216 = vpop.f32.mrf.mxu0
      %v3217 = vadd.f32 0.0, %v3216
      %3218 = vmatmul.f32.gmra.mxu0 %v3155
      %v3219 = vpop.f32.mrf.mxu0
      %v3220 = vadd.f32 0.0, %v3219
      %3221 = vmatmul.f32.gmra.mxu0 %v3158
      %v3222 = vpop.f32.mrf.mxu0
      %v3223 = vadd.f32 0.0, %v3222
      %3224 = vmatmul.f32.gmra.mxu0 %v3161
      %v3225 = vpop.f32.mrf.mxu0
      %v3226 = vadd.f32 0.0, %v3225
      %3227 = vmatmul.f32.gmra.mxu0 %v3164
      %v3228 = vpop.f32.mrf.mxu0
      %v3229 = vadd.f32 0.0, %v3228
      %3230 = vmatmul.f32.gmra.mxu0 %v3167
      %v3231 = vpop.f32.mrf.mxu0
      %v3232 = vadd.f32 0.0, %v3231
      %3233 = vmatmul.f32.gmra.mxu0 %v3170
      %v3234 = vpop.f32.mrf.mxu0
      %v3235 = vadd.f32 0.0, %v3234
      %3236 = vmatmul.f32.gmra.mxu0 %v3173
      %v3237 = vpop.f32.mrf.mxu0
      %v3238 = vadd.f32 0.0, %v3237
      %3239 = vmatmul.f32.gmra.mxu0 %v3176
      %v3240 = vpop.f32.mrf.mxu0
      %v3241 = vadd.f32 0.0, %v3240
      %3242 = vmatmul.f32.gmra.mxu0 %v3179
      %v3243 = vpop.f32.mrf.mxu0
      %v3244 = vadd.f32 0.0, %v3243
      %3245 = vdwg.mxu0
      %v3246 = vadd.f32 %v2367, %v3199
      %v3247 = vadd.f32 %v2370, %v3202
      %v3248 = vadd.f32 %v2373, %v3205
      %v3249 = vadd.f32 %v2376, %v3208
      %v3250 = vadd.f32 %v2379, %v3211
      %v3251 = vadd.f32 %v2382, %v3214
      %v3252 = vadd.f32 %v2385, %v3217
      %v3253 = vadd.f32 %v2388, %v3220
      %v3254 = vadd.f32 %v2391, %v3223
      %v3255 = vadd.f32 %v2394, %v3226
      %v3256 = vadd.f32 %v2397, %v3229
      %v3257 = vadd.f32 %v2400, %v3232
      %v3258 = vadd.f32 %v2403, %v3235
      %v3259 = vadd.f32 %v2406, %v3238
      %v3260 = vadd.f32 %v2409, %v3241
      %v3261 = vadd.f32 %v2412, %v3244
      %v3262 = vmax.f32 %v3246, 0.0
      %v3263 = vmax.f32 %v3247, 0.0
      %v3264 = vmax.f32 %v3248, 0.0
      %v3265 = vmax.f32 %v3249, 0.0
      %v3266 = vmax.f32 %v3250, 0.0
      %v3267 = vmax.f32 %v3251, 0.0
      %v3268 = vmax.f32 %v3252, 0.0
      %v3269 = vmax.f32 %v3253, 0.0
      %v3270 = vmax.f32 %v3254, 0.0
      %v3271 = vmax.f32 %v3255, 0.0
      %v3272 = vmax.f32 %v3256, 0.0
      %v3273 = vmax.f32 %v3257, 0.0
      %v3274 = vmax.f32 %v3258, 0.0
      %v3275 = vmax.f32 %v3259, 0.0
      %v3276 = vmax.f32 %v3260, 0.0
      %v3277 = vmax.f32 %v3261, 0.0
      %v3278 = vld [vmem:[%s14] sm:$0xff]
      %v3279 = vld [vmem:[%s14 + $0x8] sm:$0xff]
      %v3280 = vld [vmem:[%s14 + $0x10] sm:$0xff]
      %v3281 = vld [vmem:[%s14 + $0x18] sm:$0xff]
      %v3282 = vld [vmem:[#allocation2] sm:$0x1]
      %v3284 = vperm.slane %v3282, 0
      %v3287 = vsel %vm752, %v3262, 0
      %v3290 = vsel %vm752, %v3263, 0
      %v3293 = vsel %vm752, %v3264, 0
      %v3296 = vsel %vm752, %v3265, 0
      %v3299 = vsel %vm752, %v3266, 0
      %v3302 = vsel %vm752, %v3267, 0
      %v3305 = vsel %vm752, %v3268, 0
      %v3308 = vsel %vm752, %v3269, 0
      %v3311 = vsel %vm752, %v3270, 0
      %v3314 = vsel %vm752, %v3271, 0
      %v3317 = vsel %vm752, %v3272, 0
      %v3320 = vsel %vm752, %v3273, 0
      %v3323 = vsel %vm752, %v3274, 0
      %v3326 = vsel %vm752, %v3275, 0
      %v3329 = vsel %vm752, %v3276, 0
      %v3332 = vsel %vm752, %v3277, 0
      %3334 = vmatpush.msra.mxu0 0.0
      %3335 = vmatpush.msra.mxu0 0.0
      %3336 = vmatpush.msra.mxu0 0.0
      %3337 = vmatpush.msra.mxu0 0.0
      %3338 = vmatpush.msra.mxu0 0.0
      %3339 = vmatpush.msra.mxu0 0.0
      %3340 = vmatpush.msra.mxu0 0.0
      %3341 = vmatpush.msra.mxu0 0.0
      %3342 = vmatpush.msra.mxu0 0.0
      %3343 = vmatpush.msra.mxu0 0.0
      %3344 = vmatpush.msra.mxu0 0.0
      %3345 = vmatpush.msra.mxu0 0.0
      %3346 = vmatpush.msra.mxu0 %v3281
      %3347 = vmatpush.msra.mxu0 %v3280
      %3348 = vmatpush.msra.mxu0 %v3279
      %3349 = vmatpush.msra.mxu0 %v3278
      %3350 = vmatmul.f32.gmra.mxu0 %v3287
      %v3351 = vpop.f32.mrf.mxu0
      %v3352 = vadd.f32 %v3284, %v3351
      %3353 = vmatmul.f32.gmra.mxu0 %v3290
      %v3354 = vpop.f32.mrf.mxu0
      %v3355 = vadd.f32 %v3284, %v3354
      %3356 = vmatmul.f32.gmra.mxu0 %v3293
      %v3357 = vpop.f32.mrf.mxu0
      %v3358 = vadd.f32 %v3284, %v3357
      %3359 = vmatmul.f32.gmra.mxu0 %v3296
      %v3360 = vpop.f32.mrf.mxu0
      %v3361 = vadd.f32 %v3284, %v3360
      %3362 = vmatmul.f32.gmra.mxu0 %v3299
      %v3363 = vpop.f32.mrf.mxu0
      %v3364 = vadd.f32 %v3284, %v3363
      %3365 = vmatmul.f32.gmra.mxu0 %v3302
      %v3366 = vpop.f32.mrf.mxu0
      %v3367 = vadd.f32 %v3284, %v3366
      %3368 = vmatmul.f32.gmra.mxu0 %v3305
      %v3369 = vpop.f32.mrf.mxu0
      %v3370 = vadd.f32 %v3284, %v3369
      %3371 = vmatmul.f32.gmra.mxu0 %v3308
      %v3372 = vpop.f32.mrf.mxu0
      %v3373 = vadd.f32 %v3284, %v3372
      %3374 = vmatmul.f32.gmra.mxu0 %v3311
      %v3375 = vpop.f32.mrf.mxu0
      %v3376 = vadd.f32 %v3284, %v3375
      %3377 = vmatmul.f32.gmra.mxu0 %v3314
      %v3378 = vpop.f32.mrf.mxu0
      %v3379 = vadd.f32 %v3284, %v3378
      %3380 = vmatmul.f32.gmra.mxu0 %v3317
      %v3381 = vpop.f32.mrf.mxu0
      %v3382 = vadd.f32 %v3284, %v3381
      %3383 = vmatmul.f32.gmra.mxu0 %v3320
      %v3384 = vpop.f32.mrf.mxu0
      %v3385 = vadd.f32 %v3284, %v3384
      %3386 = vmatmul.f32.gmra.mxu0 %v3323
      %v3387 = vpop.f32.mrf.mxu0
      %v3388 = vadd.f32 %v3284, %v3387
      %3389 = vmatmul.f32.gmra.mxu0 %v3326
      %v3390 = vpop.f32.mrf.mxu0
      %v3391 = vadd.f32 %v3284, %v3390
      %3392 = vmatmul.f32.gmra.mxu0 %v3329
      %v3393 = vpop.f32.mrf.mxu0
      %v3394 = vadd.f32 %v3284, %v3393
      %3395 = vmatmul.f32.gmra.mxu0 %v3332
      %v3396 = vpop.f32.mrf.mxu0
      %v3397 = vadd.f32 %v3284, %v3396
      %3398 = vdwg.mxu0
      %v3399 = vxor.u32 %v3352, 2147483648
      %v3400 = vxor.u32 %v3355, 2147483648
      %v3401 = vxor.u32 %v3358, 2147483648
      %v3402 = vxor.u32 %v3361, 2147483648
      %v3403 = vxor.u32 %v3364, 2147483648
      %v3404 = vxor.u32 %v3367, 2147483648
      %v3405 = vxor.u32 %v3370, 2147483648
      %v3406 = vxor.u32 %v3373, 2147483648
      %v3407 = vxor.u32 %v3376, 2147483648
      %v3408 = vxor.u32 %v3379, 2147483648
      %v3409 = vxor.u32 %v3382, 2147483648
      %v3410 = vxor.u32 %v3385, 2147483648
      %v3411 = vxor.u32 %v3388, 2147483648
      %v3412 = vxor.u32 %v3391, 2147483648
      %v3413 = vxor.u32 %v3394, 2147483648
      %v3414 = vxor.u32 %v3397, 2147483648
      %v3415 = vmul.f32 %v3399, 1.442695
      %v3416 = vpow.pop %v3415
      %v3417 = vmul.f32 %v3400, 1.442695
      %v3418 = vpow.pop %v3417
      %v3419 = vmul.f32 %v3401, 1.442695
      %v3420 = vpow.pop %v3419
      %v3421 = vmul.f32 %v3402, 1.442695
      %v3422 = vpow.pop %v3421
      %v3423 = vmul.f32 %v3403, 1.442695
      %v3424 = vpow.pop %v3423
      %v3425 = vmul.f32 %v3404, 1.442695
      %v3426 = vpow.pop %v3425
      %v3427 = vmul.f32 %v3405, 1.442695
      %v3428 = vpow.pop %v3427
      %v3429 = vmul.f32 %v3406, 1.442695
      %v3430 = vpow.pop %v3429
      %v3431 = vmul.f32 %v3407, 1.442695
      %v3432 = vpow.pop %v3431
      %v3433 = vmul.f32 %v3408, 1.442695
      %v3434 = vpow.pop %v3433
      %v3435 = vmul.f32 %v3409, 1.442695
      %v3436 = vpow.pop %v3435
      %v3437 = vmul.f32 %v3410, 1.442695
      %v3438 = vpow.pop %v3437
      %v3439 = vmul.f32 %v3411, 1.442695
      %v3440 = vpow.pop %v3439
      %v3441 = vmul.f32 %v3412, 1.442695
      %v3442 = vpow.pop %v3441
      %v3443 = vmul.f32 %v3413, 1.442695
      %v3444 = vpow.pop %v3443
      %v3445 = vmul.f32 %v3414, 1.442695
      %v3446 = vpow.pop %v3445
      %v3447 = vadd.f32 %v3416, 1.0
      %v3448 = vadd.f32 %v3418, 1.0
      %v3449 = vadd.f32 %v3420, 1.0
      %v3450 = vadd.f32 %v3422, 1.0
      %v3451 = vadd.f32 %v3424, 1.0
      %v3452 = vadd.f32 %v3426, 1.0
      %v3453 = vadd.f32 %v3428, 1.0
      %v3454 = vadd.f32 %v3430, 1.0
      %v3455 = vadd.f32 %v3432, 1.0
      %v3456 = vadd.f32 %v3434, 1.0
      %v3457 = vadd.f32 %v3436, 1.0
      %v3458 = vadd.f32 %v3438, 1.0
      %v3459 = vadd.f32 %v3440, 1.0
      %v3460 = vadd.f32 %v3442, 1.0
      %v3461 = vadd.f32 %v3444, 1.0
      %v3462 = vadd.f32 %v3446, 1.0
      %v3463 = vrcp.pop %v3447
      %v3464 = vmul.f32 %v3447, %v3463
      %v3465 = vsub.f32 1.0, %v3464
      %v3466 = vmul.f32 %v3463, %v3465
      %v3467 = vadd.f32 %v3463, %v3466
      %vm3468 = vweird.f32 %v3447
      %vm3469 = vweird.f32 %v3463
      %vm3470 = vmor %vm3468, %vm3469
      %v3471 = vsel %vm3470, %v3463, %v3467
      %v3472 = vand.u32 2147483647, %v3447
      %vm3473 = vcmp.eq.f32.partialorder %v3472, 8.507059e+37
      %v3474 = vand.u32 %v3447, 2147483648
      %v3475 = vor.u32 1.1754944e-38, %v3474
      %v3476 = vsel %vm3473, %v3475, %v3471
      %v3477 = vmul.f32 1.0, %v3476
      %v3478 = vrcp.pop %v3448
      %v3479 = vmul.f32 %v3448, %v3478
      %v3480 = vsub.f32 1.0, %v3479
      %v3481 = vmul.f32 %v3478, %v3480
      %v3482 = vadd.f32 %v3478, %v3481
      %vm3483 = vweird.f32 %v3448
      %vm3484 = vweird.f32 %v3478
      %vm3485 = vmor %vm3483, %vm3484
      %v3486 = vsel %vm3485, %v3478, %v3482
      %v3487 = vand.u32 2147483647, %v3448
      %vm3488 = vcmp.eq.f32.partialorder %v3487, 8.507059e+37
      %v3489 = vand.u32 %v3448, 2147483648
      %v3490 = vor.u32 1.1754944e-38, %v3489
      %v3491 = vsel %vm3488, %v3490, %v3486
      %v3492 = vmul.f32 1.0, %v3491
      %v3493 = vrcp.pop %v3449
      %v3494 = vmul.f32 %v3449, %v3493
      %v3495 = vsub.f32 1.0, %v3494
      %v3496 = vmul.f32 %v3493, %v3495
      %v3497 = vadd.f32 %v3493, %v3496
      %vm3498 = vweird.f32 %v3449
      %vm3499 = vweird.f32 %v3493
      %vm3500 = vmor %vm3498, %vm3499
      %v3501 = vsel %vm3500, %v3493, %v3497
      %v3502 = vand.u32 2147483647, %v3449
      %vm3503 = vcmp.eq.f32.partialorder %v3502, 8.507059e+37
      %v3504 = vand.u32 %v3449, 2147483648
      %v3505 = vor.u32 1.1754944e-38, %v3504
      %v3506 = vsel %vm3503, %v3505, %v3501
      %v3507 = vmul.f32 1.0, %v3506
      %v3508 = vrcp.pop %v3450
      %v3509 = vmul.f32 %v3450, %v3508
      %v3510 = vsub.f32 1.0, %v3509
      %v3511 = vmul.f32 %v3508, %v3510
      %v3512 = vadd.f32 %v3508, %v3511
      %vm3513 = vweird.f32 %v3450
      %vm3514 = vweird.f32 %v3508
      %vm3515 = vmor %vm3513, %vm3514
      %v3516 = vsel %vm3515, %v3508, %v3512
      %v3517 = vand.u32 2147483647, %v3450
      %vm3518 = vcmp.eq.f32.partialorder %v3517, 8.507059e+37
      %v3519 = vand.u32 %v3450, 2147483648
      %v3520 = vor.u32 1.1754944e-38, %v3519
      %v3521 = vsel %vm3518, %v3520, %v3516
      %v3522 = vmul.f32 1.0, %v3521
      %v3523 = vrcp.pop %v3451
      %v3524 = vmul.f32 %v3451, %v3523
      %v3525 = vsub.f32 1.0, %v3524
      %v3526 = vmul.f32 %v3523, %v3525
      %v3527 = vadd.f32 %v3523, %v3526
      %vm3528 = vweird.f32 %v3451
      %vm3529 = vweird.f32 %v3523
      %vm3530 = vmor %vm3528, %vm3529
      %v3531 = vsel %vm3530, %v3523, %v3527
      %v3532 = vand.u32 2147483647, %v3451
      %vm3533 = vcmp.eq.f32.partialorder %v3532, 8.507059e+37
      %v3534 = vand.u32 %v3451, 2147483648
      %v3535 = vor.u32 1.1754944e-38, %v3534
      %v3536 = vsel %vm3533, %v3535, %v3531
      %v3537 = vmul.f32 1.0, %v3536
      %v3538 = vrcp.pop %v3452
      %v3539 = vmul.f32 %v3452, %v3538
      %v3540 = vsub.f32 1.0, %v3539
      %v3541 = vmul.f32 %v3538, %v3540
      %v3542 = vadd.f32 %v3538, %v3541
      %vm3543 = vweird.f32 %v3452
      %vm3544 = vweird.f32 %v3538
      %vm3545 = vmor %vm3543, %vm3544
      %v3546 = vsel %vm3545, %v3538, %v3542
      %v3547 = vand.u32 2147483647, %v3452
      %vm3548 = vcmp.eq.f32.partialorder %v3547, 8.507059e+37
      %v3549 = vand.u32 %v3452, 2147483648
      %v3550 = vor.u32 1.1754944e-38, %v3549
      %v3551 = vsel %vm3548, %v3550, %v3546
      %v3552 = vmul.f32 1.0, %v3551
      %v3553 = vrcp.pop %v3453
      %v3554 = vmul.f32 %v3453, %v3553
      %v3555 = vsub.f32 1.0, %v3554
      %v3556 = vmul.f32 %v3553, %v3555
      %v3557 = vadd.f32 %v3553, %v3556
      %vm3558 = vweird.f32 %v3453
      %vm3559 = vweird.f32 %v3553
      %vm3560 = vmor %vm3558, %vm3559
      %v3561 = vsel %vm3560, %v3553, %v3557
      %v3562 = vand.u32 2147483647, %v3453
      %vm3563 = vcmp.eq.f32.partialorder %v3562, 8.507059e+37
      %v3564 = vand.u32 %v3453, 2147483648
      %v3565 = vor.u32 1.1754944e-38, %v3564
      %v3566 = vsel %vm3563, %v3565, %v3561
      %v3567 = vmul.f32 1.0, %v3566
      %v3568 = vrcp.pop %v3454
      %v3569 = vmul.f32 %v3454, %v3568
      %v3570 = vsub.f32 1.0, %v3569
      %v3571 = vmul.f32 %v3568, %v3570
      %v3572 = vadd.f32 %v3568, %v3571
      %vm3573 = vweird.f32 %v3454
      %vm3574 = vweird.f32 %v3568
      %vm3575 = vmor %vm3573, %vm3574
      %v3576 = vsel %vm3575, %v3568, %v3572
      %v3577 = vand.u32 2147483647, %v3454
      %vm3578 = vcmp.eq.f32.partialorder %v3577, 8.507059e+37
      %v3579 = vand.u32 %v3454, 2147483648
      %v3580 = vor.u32 1.1754944e-38, %v3579
      %v3581 = vsel %vm3578, %v3580, %v3576
      %v3582 = vmul.f32 1.0, %v3581
      %v3583 = vrcp.pop %v3455
      %v3584 = vmul.f32 %v3455, %v3583
      %v3585 = vsub.f32 1.0, %v3584
      %v3586 = vmul.f32 %v3583, %v3585
      %v3587 = vadd.f32 %v3583, %v3586
      %vm3588 = vweird.f32 %v3455
      %vm3589 = vweird.f32 %v3583
      %vm3590 = vmor %vm3588, %vm3589
      %v3591 = vsel %vm3590, %v3583, %v3587
      %v3592 = vand.u32 2147483647, %v3455
      %vm3593 = vcmp.eq.f32.partialorder %v3592, 8.507059e+37
      %v3594 = vand.u32 %v3455, 2147483648
      %v3595 = vor.u32 1.1754944e-38, %v3594
      %v3596 = vsel %vm3593, %v3595, %v3591
      %v3597 = vmul.f32 1.0, %v3596
      %v3598 = vrcp.pop %v3456
      %v3599 = vmul.f32 %v3456, %v3598
      %v3600 = vsub.f32 1.0, %v3599
      %v3601 = vmul.f32 %v3598, %v3600
      %v3602 = vadd.f32 %v3598, %v3601
      %vm3603 = vweird.f32 %v3456
      %vm3604 = vweird.f32 %v3598
      %vm3605 = vmor %vm3603, %vm3604
      %v3606 = vsel %vm3605, %v3598, %v3602
      %v3607 = vand.u32 2147483647, %v3456
      %vm3608 = vcmp.eq.f32.partialorder %v3607, 8.507059e+37
      %v3609 = vand.u32 %v3456, 2147483648
      %v3610 = vor.u32 1.1754944e-38, %v3609
      %v3611 = vsel %vm3608, %v3610, %v3606
      %v3612 = vmul.f32 1.0, %v3611
      %v3613 = vrcp.pop %v3457
      %v3614 = vmul.f32 %v3457, %v3613
      %v3615 = vsub.f32 1.0, %v3614
      %v3616 = vmul.f32 %v3613, %v3615
      %v3617 = vadd.f32 %v3613, %v3616
      %vm3618 = vweird.f32 %v3457
      %vm3619 = vweird.f32 %v3613
      %vm3620 = vmor %vm3618, %vm3619
      %v3621 = vsel %vm3620, %v3613, %v3617
      %v3622 = vand.u32 2147483647, %v3457
      %vm3623 = vcmp.eq.f32.partialorder %v3622, 8.507059e+37
      %v3624 = vand.u32 %v3457, 2147483648
      %v3625 = vor.u32 1.1754944e-38, %v3624
      %v3626 = vsel %vm3623, %v3625, %v3621
      %v3627 = vmul.f32 1.0, %v3626
      %v3628 = vrcp.pop %v3458
      %v3629 = vmul.f32 %v3458, %v3628
      %v3630 = vsub.f32 1.0, %v3629
      %v3631 = vmul.f32 %v3628, %v3630
      %v3632 = vadd.f32 %v3628, %v3631
      %vm3633 = vweird.f32 %v3458
      %vm3634 = vweird.f32 %v3628
      %vm3635 = vmor %vm3633, %vm3634
      %v3636 = vsel %vm3635, %v3628, %v3632
      %v3637 = vand.u32 2147483647, %v3458
      %vm3638 = vcmp.eq.f32.partialorder %v3637, 8.507059e+37
      %v3639 = vand.u32 %v3458, 2147483648
      %v3640 = vor.u32 1.1754944e-38, %v3639
      %v3641 = vsel %vm3638, %v3640, %v3636
      %v3642 = vmul.f32 1.0, %v3641
      %v3643 = vrcp.pop %v3459
      %v3644 = vmul.f32 %v3459, %v3643
      %v3645 = vsub.f32 1.0, %v3644
      %v3646 = vmul.f32 %v3643, %v3645
      %v3647 = vadd.f32 %v3643, %v3646
      %vm3648 = vweird.f32 %v3459
      %vm3649 = vweird.f32 %v3643
      %vm3650 = vmor %vm3648, %vm3649
      %v3651 = vsel %vm3650, %v3643, %v3647
      %v3652 = vand.u32 2147483647, %v3459
      %vm3653 = vcmp.eq.f32.partialorder %v3652, 8.507059e+37
      %v3654 = vand.u32 %v3459, 2147483648
      %v3655 = vor.u32 1.1754944e-38, %v3654
      %v3656 = vsel %vm3653, %v3655, %v3651
      %v3657 = vmul.f32 1.0, %v3656
      %v3658 = vrcp.pop %v3460
      %v3659 = vmul.f32 %v3460, %v3658
      %v3660 = vsub.f32 1.0, %v3659
      %v3661 = vmul.f32 %v3658, %v3660
      %v3662 = vadd.f32 %v3658, %v3661
      %vm3663 = vweird.f32 %v3460
      %vm3664 = vweird.f32 %v3658
      %vm3665 = vmor %vm3663, %vm3664
      %v3666 = vsel %vm3665, %v3658, %v3662
      %v3667 = vand.u32 2147483647, %v3460
      %vm3668 = vcmp.eq.f32.partialorder %v3667, 8.507059e+37
      %v3669 = vand.u32 %v3460, 2147483648
      %v3670 = vor.u32 1.1754944e-38, %v3669
      %v3671 = vsel %vm3668, %v3670, %v3666
      %v3672 = vmul.f32 1.0, %v3671
      %v3673 = vrcp.pop %v3461
      %v3674 = vmul.f32 %v3461, %v3673
      %v3675 = vsub.f32 1.0, %v3674
      %v3676 = vmul.f32 %v3673, %v3675
      %v3677 = vadd.f32 %v3673, %v3676
      %vm3678 = vweird.f32 %v3461
      %vm3679 = vweird.f32 %v3673
      %vm3680 = vmor %vm3678, %vm3679
      %v3681 = vsel %vm3680, %v3673, %v3677
      %v3682 = vand.u32 2147483647, %v3461
      %vm3683 = vcmp.eq.f32.partialorder %v3682, 8.507059e+37
      %v3684 = vand.u32 %v3461, 2147483648
      %v3685 = vor.u32 1.1754944e-38, %v3684
      %v3686 = vsel %vm3683, %v3685, %v3681
      %v3687 = vmul.f32 1.0, %v3686
      %v3688 = vrcp.pop %v3462
      %v3689 = vmul.f32 %v3462, %v3688
      %v3690 = vsub.f32 1.0, %v3689
      %v3691 = vmul.f32 %v3688, %v3690
      %v3692 = vadd.f32 %v3688, %v3691
      %vm3693 = vweird.f32 %v3462
      %vm3694 = vweird.f32 %v3688
      %vm3695 = vmor %vm3693, %vm3694
      %v3696 = vsel %vm3695, %v3688, %v3692
      %v3697 = vand.u32 2147483647, %v3462
      %vm3698 = vcmp.eq.f32.partialorder %v3697, 8.507059e+37
      %v3699 = vand.u32 %v3462, 2147483648
      %v3700 = vor.u32 1.1754944e-38, %v3699
      %v3701 = vsel %vm3698, %v3700, %v3696
      %v3702 = vmul.f32 1.0, %v3701
      %vm3703 = vcmask 7168
      %3704 = vst.msk [vmem:[%s591] sm:$0xff] %vm3703, %v3477
      %3705 = vst.msk [vmem:[%s591 + $0x8] sm:$0xff] %vm3703, %v3492
      %3706 = vst.msk [vmem:[%s591 + $0x10] sm:$0xff] %vm3703, %v3507
      %3707 = vst.msk [vmem:[%s591 + $0x18] sm:$0xff] %vm3703, %v3522
      %3708 = vst.msk [vmem:[%s591 + $0x20] sm:$0xff] %vm3703, %v3537
      %3709 = vst.msk [vmem:[%s591 + $0x28] sm:$0xff] %vm3703, %v3552
      %3710 = vst.msk [vmem:[%s591 + $0x30] sm:$0xff] %vm3703, %v3567
      %3711 = vst.msk [vmem:[%s591 + $0x38] sm:$0xff] %vm3703, %v3582
      %3712 = vst.msk [vmem:[%s591 + $0x40] sm:$0xff] %vm3703, %v3597
      %3713 = vst.msk [vmem:[%s591 + $0x48] sm:$0xff] %vm3703, %v3612
      %3714 = vst.msk [vmem:[%s591 + $0x50] sm:$0xff] %vm3703, %v3627
      %3715 = vst.msk [vmem:[%s591 + $0x58] sm:$0xff] %vm3703, %v3642
      %3716 = vst.msk [vmem:[%s591 + $0x60] sm:$0xff] %vm3703, %v3657
      %3717 = vst.msk [vmem:[%s591 + $0x68] sm:$0xff] %vm3703, %v3672
      %3718 = vst.msk [vmem:[%s591 + $0x70] sm:$0xff] %vm3703, %v3687
      %3719 = vst.msk [vmem:[%s591 + $0x78] sm:$0xff] %vm3703, %v3702
      %s3720 = smul.u32 16, %s29
      %p3721 = scmp.lt.s32.totalorder %s3720, 31
      %s3722 = scalar_select %p3721, %s3720, 31
      %s3723 = smul.addr %s3722, 8
      %s3724 = scalar_lea.vmem %s16, %s3723
      // Predicated region
      $region85: #{tpu_custom_call.1} parent=83 // pred_check
        %p3725 = pneg %p403
      $region86: #{tpu_custom_call.1} parent=83 // pred_check_branch
        %3727 = sbr.rel (%p3725) target = $region88
      $region87: #{tpu_custom_call.1} parent=83 // pred_region
        %s3728 = smul.u32 16, %s29
      $region88: #{tpu_custom_call.1} parent=83 // pred_fallthru
        _
    $region84: #{tpu_custom_call.1} parent=5 // pred_fallthru
      _
    %p3729 = scmp.le.s32.totalorder 2, %s24
    // Predicated region
    $region89: #{tpu_custom_call.1} parent=5 // pred_check
      %p3730 = pneg %p3729
    $region90: #{tpu_custom_call.1} parent=5 // pred_check_branch
      %3732 = sbr.rel (%p3730) target = $region92
    $region91: #{tpu_custom_call.1} parent=5 // pred_region
      %s3733 = ssub.s32 %s24, 2
      // Predicated region
      $region93: #{tpu_custom_call.1} parent=91 // pred_check
        %p3734 = pneg %p409
      $region94: #{tpu_custom_call.1} parent=91 // pred_check_branch
        %3736 = sbr.rel (%p3734) target = $region96
      $region95: #{tpu_custom_call.1} parent=91 // pred_region
        %s3737 = smul.u32 16, %s30
        %p3738 = scmp.lt.s32.totalorder %s3737, 31
        %s3739 = scalar_select %p3738, %s3737, 31
        %s3740 = smul.addr %s3739, 8
        %s3741 = scalar_lea.vmem %s16, %s3740
      $region96: #{tpu_custom_call.1} parent=91 // pred_fallthru
        _
    $region92: #{tpu_custom_call.1} parent=5 // pred_fallthru
      _
  $region6: #{tpu_custom_call.1} parent=0 // loop_footer
    %s28 = sadd.s32 1, %s24
  $region7: #{tpu_custom_call.1} parent=0 // loop_footer_branch
    %23 = sbr.rel target = $region3
  $region8: #{tpu_custom_call.1} parent=0 // loop_exit
    _

</llo_original>
